<compile_context>
chip_gen: v7x
topology: tpu7x:2x2x1
jax: 0.10.0
libtpu: 0.0.40
codegen_flags: <defaults>
</compile_context>

<pallas_src>
import functools

import jax
import jax.numpy as jnp
from jax.experimental import pallas as pl
from jax.experimental.pallas import tpu as pltpu


_VMEM_LIMIT = 48 * 1024 * 1024  # fits v7x's 64 MiB physical VMEM with headroom


def _cparams():
    return pltpu.CompilerParams(
        dimension_semantics=("parallel",),
        vmem_limit_bytes=_VMEM_LIMIT,
    )


def _row_blocks(n, max_tile=256):
    """Pick the largest row tile that satisfies the (8,128) block rule."""
    if n <= max_tile:
        return n, 1            # whole-extent block (always legal)
    return max_tile, pl.cdiv(n, max_tile)


# ----------------------------------------------------------------------------
# Pallas kernels
# ----------------------------------------------------------------------------
def _ln_linear_kernel(x_ref, g_ref, b_ref, w_ref, bias_ref, o_ref, *, gelu):
    """Fused LayerNorm (f32) -> matmul (bf16 in, f32 acc) -> bias (-> GELU)."""
    x = x_ref[...]                                    # (tm, Din) f32
    mu = jnp.mean(x, axis=-1, keepdims=True)
    var = jnp.mean((x - mu) ** 2, axis=-1, keepdims=True)
    xn = (x - mu) * jax.lax.rsqrt(var + 1e-5)         # nn.LayerNorm default eps
    xn = xn * g_ref[...] + b_ref[...]
    y = jnp.dot(xn.astype(jnp.bfloat16), w_ref[...],
                preferred_element_type=jnp.float32) + bias_ref[...]
    if gelu:
        # TODO(synk): torch.nn.GELU defaults to exact erf; tanh approximation
        # used for guaranteed Mosaic lowering (diff ~1e-3).
        y = jax.nn.gelu(y, approximate=True)
    o_ref[...] = y


def _linear_residual_kernel(x_ref, w_ref, bias_ref, res_ref, o_ref):
    """Fused matmul (bf16 in, f32 acc) + bias + residual add."""
    y = jnp.dot(x_ref[...].astype(jnp.bfloat16), w_ref[...],
                preferred_element_type=jnp.float32) + bias_ref[...]
    o_ref[...] = y + res_ref[...]


def _patchify_kernel(x_ref, w_ref, bias_ref, pos_ref, o_ref):
    """Fused patchify conv (im2col matmul) + bias + positional embedding add."""
    y = jnp.dot(x_ref[0].astype(jnp.bfloat16), w_ref[...],
                preferred_element_type=jnp.float32) + bias_ref[...]
    o_ref[0] = y + pos_ref[...]


def _layernorm_kernel(x_ref, g_ref, b_ref, o_ref):
    x = x_ref[...]
    mu = jnp.mean(x, axis=-1, keepdims=True)
    var = jnp.mean((x - mu) ** 2, axis=-1, keepdims=True)
    xn = (x - mu) * jax.lax.rsqrt(var + 1e-5)
    o_ref[...] = xn * g_ref[...] + b_ref[...]


def _attention_kernel(q_ref, k_ref, v_ref, o_ref, *, scale):
    """All heads of one batch element per grid step.  Softmax math in f32."""
    q = q_ref[0].astype(jnp.bfloat16)                 # (H, T, dh)
    k = k_ref[0].astype(jnp.bfloat16)
    v = v_ref[0].astype(jnp.bfloat16)
    s = jnp.einsum("hqd,hkd->hqk", q, k,
                   preferred_element_type=jnp.float32) * scale
    s = s - jnp.max(s, axis=-1, keepdims=True)
    p = jnp.exp(s)
    p = p * pl.reciprocal(jnp.sum(p, axis=-1, keepdims=True), approx=True)
    o = jnp.einsum("hqk,hkd->hqd", p.astype(jnp.bfloat16), v,
                   preferred_element_type=jnp.float32)
    o_ref[0] = o


# ----------------------------------------------------------------------------
# Pallas wrappers
# ----------------------------------------------------------------------------
def pallas_ln_linear(x, gamma, beta, w, b, gelu=False):
    n, din = x.shape
    dout = w.shape[1]
    tm, gm = _row_blocks(n)
    kern = functools.partial(_ln_linear_kernel, gelu=gelu)
    return pl.pallas_call(
        kern,
        out_shape=jax.ShapeDtypeStruct((n, dout), jnp.float32),
        grid=(gm,),
        in_specs=[
            pl.BlockSpec((tm, din), lambda i: (i, 0)),
            pl.BlockSpec((1, din), lambda i: (0, 0)),
            pl.BlockSpec((1, din), lambda i: (0, 0)),
            pl.BlockSpec((din, dout), lambda i: (0, 0)),
            pl.BlockSpec((1, dout), lambda i: (0, 0)),
        ],
        out_specs=pl.BlockSpec((tm, dout), lambda i: (i, 0)),
        compiler_params=_cparams(),
    )(x, gamma.reshape(1, din), beta.reshape(1, din), w, b.reshape(1, dout))


def pallas_linear_residual(x, w, b, res):
    n, din = x.shape
    dout = w.shape[1]
    tm, gm = _row_blocks(n)
    return pl.pallas_call(
        _linear_residual_kernel,
        out_shape=jax.ShapeDtypeStruct((n, dout), jnp.float32),
        grid=(gm,),
        in_specs=[
            pl.BlockSpec((tm, din), lambda i: (i, 0)),
            pl.BlockSpec((din, dout), lambda i: (0, 0)),
            pl.BlockSpec((1, dout), lambda i: (0, 0)),
            pl.BlockSpec((tm, dout), lambda i: (i, 0)),
        ],
        out_specs=pl.BlockSpec((tm, dout), lambda i: (i, 0)),
        compiler_params=_cparams(),
    )(x, w, b.reshape(1, dout), res)


def pallas_patchify(x, w, b, pos):
    """x: (G, hw, K) im2col rows per image; pos: (hw, D). Output (G, hw, D)."""
    g, hw, kdim = x.shape
    d = w.shape[1]
    return pl.pallas_call(
        _patchify_kernel,
        out_shape=jax.ShapeDtypeStruct((g, hw, d), jnp.float32),
        grid=(g,),
        in_specs=[
            pl.BlockSpec((1, hw, kdim), lambda i: (i, 0, 0)),
            pl.BlockSpec((kdim, d), lambda i: (0, 0)),   # weight stays resident
            pl.BlockSpec((1, d), lambda i: (0, 0)),
            pl.BlockSpec((hw, d), lambda i: (0, 0)),     # pos stays resident
        ],
        out_specs=pl.BlockSpec((1, hw, d), lambda i: (i, 0, 0)),
        compiler_params=_cparams(),
    )(x, w, b.reshape(1, d), pos)


def pallas_layernorm(x, gamma, beta):
    n, d = x.shape
    tm, gm = _row_blocks(n)
    return pl.pallas_call(
        _layernorm_kernel,
        out_shape=jax.ShapeDtypeStruct((n, d), jnp.float32),
        grid=(gm,),
        in_specs=[
            pl.BlockSpec((tm, d), lambda i: (i, 0)),
            pl.BlockSpec((1, d), lambda i: (0, 0)),
            pl.BlockSpec((1, d), lambda i: (0, 0)),
        ],
        out_specs=pl.BlockSpec((tm, d), lambda i: (i, 0)),
        compiler_params=_cparams(),
    )(x, gamma.reshape(1, d), beta.reshape(1, d))


def pallas_attention(q, k, v):
    """q/k/v: (B, H, T, dh) -> (B, H, T, dh); grid over batch, heads packed."""
    b, h, t, dh = q.shape
    kern = functools.partial(_attention_kernel, scale=1.0 / (dh ** 0.5))
    spec = pl.BlockSpec((1, h, t, dh), lambda i: (i, 0, 0, 0))
    return pl.pallas_call(
        kern,
        out_shape=jax.ShapeDtypeStruct((b, h, t, dh), jnp.float32),
        grid=(b,),
        in_specs=[spec, spec, spec],
        out_specs=spec,
        compiler_params=_cparams(),
    )(q, k, v)


# ----------------------------------------------------------------------------
# Model pieces (plain-JAX glue around the Pallas kernels)
# ----------------------------------------------------------------------------
def patch_embed_all(imgs, conv_w, conv_b, pos_embedding, patch_size):
    """imgs: (B, M, 3, H, W) -> per-modality patches (M, num_patches, B, D)."""
    b, m, c, hgt, wid = imgs.shape
    p = patch_size
    hh, ww = hgt // p, wid // p
    # im2col: one row per patch, feature order (c, ph, pw) to match Conv2d.
    x = imgs.reshape(b, m, c, hh, p, ww, p)
    x = x.transpose(1, 0, 3, 5, 2, 4, 6)               # (m, b, hh, ww, c, p, p)
    x = x.reshape(m * b, hh * ww, c * p * p)
    pos = pos_embedding.reshape(hh * ww, -1)            # (num_patches, D)
    out = pallas_patchify(x, conv_w, conv_b, pos)        # (m*b, hw, D)
    d = out.shape[-1]
    return out.reshape(m, b, hh * ww, d).transpose(0, 2, 1, 3)   # (m, hw, b, D)


def patch_shuffle(patches, ratio, key):
    """Batched random per-column shuffle + drop (argsort of uniform noise)."""
    t, b, _ = patches.shape
    remain_t = int(t * (1 - ratio))
    noise = jax.random.uniform(key, (t, b))
    fwd = jnp.argsort(noise, axis=0)                     # (T, B) permutations
    bwd = jnp.argsort(fwd, axis=0)                       # (T, B)
    shuffled = jnp.take_along_axis(patches, fwd[:, :, None], axis=0)
    return shuffled[:remain_t], fwd, bwd


def block_forward(x, p, num_head):
    """timm ViT Block: x + attn(norm1(x)); x + mlp(norm2(x)).  x: (B, T, D)."""
    b, t, d = x.shape
    h = num_head
    dh = d // h
    xf = x.reshape(b * t, d)

    # ---- attention branch: fused LN1+QKV, packed-head attention, fused proj+res
    qkv = pallas_ln_linear(xf, p["n1_g"], p["n1_b"], p["qkv_w"], p["qkv_b"])
    qkv = qkv.reshape(b, t, 3, h, dh).transpose(2, 0, 3, 1, 4)   # (3, B, h, T, dh)
    a = pallas_attention(qkv[0], qkv[1], qkv[2])                 # (B, h, T, dh)
    a = a.transpose(0, 2, 1, 3).reshape(b * t, d)
    x1 = pallas_linear_residual(a, p["proj_w"], p["proj_b"], xf)  # (B*T, D)

    # ---- MLP branch: fused LN2+FC1+GELU, fused FC2+residual
    y = pallas_ln_linear(x1, p["n2_g"], p["n2_b"], p["fc1_w"], p["fc1_b"],
                         gelu=True)
    x2 = pallas_linear_residual(y, p["fc2_w"], p["fc2_b"], x1)
    return x2.reshape(b, t, d)


def mae_encoder_forward(input_modality, params, shuffle_key, *,
                        patch_size, mask_ratio, num_head):
    """input_modality: (B, M, 3, H, W)."""
    b, m = input_modality.shape[:2]
    emb_dim = params["cls_token"].shape[-1]

    # One pallas_call for both modalities' patchify conv + bias + pos-embed.
    all_patches = patch_embed_all(input_modality, params["conv_w"],
                                  params["conv_b"], params["pos_embedding"],
                                  patch_size)                    # (M, hw, B, D)

    patches_list, backindx_list = [], []
    keys = jax.random.split(shuffle_key, m)
    for mi in range(m):
        pt, _, bwd = patch_shuffle(all_patches[mi], mask_ratio, keys[mi])
        patches_list.append(pt)
        backindx_list.append(bwd)

    concat_patches = jnp.concatenate(patches_list, axis=0)       # (M*remain_T, B, D)
    cls = jnp.broadcast_to(params["cls_token"], (1, b, emb_dim))
    tokens = jnp.concatenate([cls, concat_patches], axis=0)      # (T, B, D)

    x = tokens.transpose(1, 0, 2)                                # (B, T, D)
    for lp in params["layers"]:
        x = block_forward(x, lp, num_head)
    bb, tt, dd = x.shape
    x = pallas_layernorm(x.reshape(bb * tt, dd), params["ln_g"], params["ln_b"])
    features = x.reshape(bb, tt, dd).transpose(1, 0, 2)          # (T, B, D)

    # Faithful to the PyTorch code: returns the LAST modality's backward_indexes.
    return features, backindx_list[-1]


# ----------------------------------------------------------------------------
# Deterministic synthetic parameter init (shapes from MAE_Encoder.__init__)
# ----------------------------------------------------------------------------
def init_params(key, *, emb_dim, num_layer, num_head, patch_size, num_patches,
                in_chans=3):
    std = 0.02
    ks = jax.random.split(key, 4 + num_layer)
    wdt = jnp.bfloat16   # matmul weights stored bf16 for the MXU
    params = {
        "cls_token": jax.random.normal(ks[0], (1, 1, emb_dim), jnp.float32) * std,
        "pos_embedding": jax.random.normal(ks[1], (num_patches, 1, emb_dim),
                                           jnp.float32) * std,
        # Conv2d(3, emb, p, p) weight (emb, 3, p, p) flattened to (3*p*p, emb)
        "conv_w": (jax.random.normal(
            ks[2], (in_chans * patch_size * patch_size, emb_dim),
            jnp.float32) * std).astype(wdt),
        "conv_b": jax.random.normal(ks[3], (emb_dim,), jnp.float32) * std,
        "ln_g": jnp.ones((emb_dim,), jnp.float32),
        "ln_b": jnp.zeros((emb_dim,), jnp.float32),
        "layers": [],
    }
    mlp_dim = emb_dim * 4
    for li in range(num_layer):
        lk = jax.random.split(ks[4 + li], 4)
        params["layers"].append({
            "n1_g": jnp.ones((emb_dim,), jnp.float32),
            "n1_b": jnp.zeros((emb_dim,), jnp.float32),
            "qkv_w": (jax.random.normal(lk[0], (emb_dim, 3 * emb_dim),
                                        jnp.float32) * std).astype(wdt),
            "qkv_b": jnp.zeros((3 * emb_dim,), jnp.float32),
            "proj_w": (jax.random.normal(lk[1], (emb_dim, emb_dim),
                                         jnp.float32) * std).astype(wdt),
            "proj_b": jnp.zeros((emb_dim,), jnp.float32),
            "n2_g": jnp.ones((emb_dim,), jnp.float32),
            "n2_b": jnp.zeros((emb_dim,), jnp.float32),
            "fc1_w": (jax.random.normal(lk[2], (emb_dim, mlp_dim),
                                        jnp.float32) * std).astype(wdt),
            "fc1_b": jnp.zeros((mlp_dim,), jnp.float32),
            "fc2_w": (jax.random.normal(lk[3], (mlp_dim, emb_dim),
                                        jnp.float32) * std).astype(wdt),
            "fc2_b": jnp.zeros((emb_dim,), jnp.float32),
        })
    return params


# ----------------------------------------------------------------------------
if __name__ == "__main__":
    # Small-but-consistent config: image 16x16, patch 2 -> 64 patches/modality,
    # mask_ratio 0.75 -> 16 kept per modality, 2 modalities -> 33 tokens w/ cls.
    B, M, C, H, W = 2, 2, 3, 16, 16
    patch_size = 2
    emb_dim = 32
    num_layer = 2
    num_head = 2
    mask_ratio = 0.75
    num_patches = (H // patch_size) ** 2

    key = jax.random.PRNGKey(0)
    k_param, k_input, k_shuffle = jax.random.split(key, 3)

    params = init_params(
        k_param,
        emb_dim=emb_dim,
        num_layer=num_layer,
        num_head=num_head,
        patch_size=patch_size,
        num_patches=num_patches,
    )
    input_modality = jax.random.normal(k_input, (B, M, C, H, W), jnp.float32)

    fwd = jax.jit(functools.partial(
        mae_encoder_forward,
        patch_size=patch_size,
        mask_ratio=mask_ratio,
        num_head=num_head,
    ))
    features, backward_indexes = fwd(input_modality, params, k_shuffle)
    jax.block_until_ready(features)
    jax.block_until_ready(backward_indexes)

    remain_t = int(num_patches * (1 - mask_ratio))
    assert features.shape == (M * remain_t + 1, B, emb_dim), features.shape
    assert features.dtype == jnp.float32
    assert backward_indexes.shape == (num_patches, B), backward_indexes.shape

    print("KERNEL_OK")
</pallas_src>

<mosaic_0001>
module attributes {stable_mosaic.version = 11 : i64} {
  func.func @_patchify_kernel(%arg0: i32, %arg1: memref<1x64x12xf32, #tpu.memory_space<vmem>>, %arg2: memref<12x32xbf16, #tpu.memory_space<vmem>>, %arg3: memref<1x32xf32, #tpu.memory_space<vmem>>, %arg4: memref<64x32xf32, #tpu.memory_space<vmem>>, %arg5: memref<1x64x32xf32, #tpu.memory_space<vmem>>) attributes {dimension_semantics = [#tpu.dimension_semantics<parallel>], iteration_bounds = array<i64: 4>, scalar_prefetch = 0 : i64, scratch_operands = 0 : i64, tpu.core_type = #tpu.core_type<tc>, window_params = [{transform_indices = @transform_0, window_bounds = array<i64: 1, 64, 12>}, {pipeline_mode = #tpu.pipeline_mode<synchronous>, transform_indices = @transform_1, window_bounds = array<i64: 12, 32>}, {pipeline_mode = #tpu.pipeline_mode<synchronous>, transform_indices = @transform_2, window_bounds = array<i64: 1, 32>}, {pipeline_mode = #tpu.pipeline_mode<synchronous>, transform_indices = @transform_3, window_bounds = array<i64: 64, 32>}, {transform_indices = @transform_4, window_bounds = array<i64: 1, 64, 32>}]} {
    %c0 = arith.constant 0 : index
    %c0_0 = arith.constant 0 : index
    %c0_1 = arith.constant 0 : index
    %0 = vector.load %arg1[%c0, %c0_0, %c0_1] : memref<1x64x12xf32, #tpu.memory_space<vmem>>, vector<1x64x12xf32>
    %1 = vector.shape_cast %0 : vector<1x64x12xf32> to vector<64x12xf32>
    %2 = arith.truncf %1 : vector<64x12xf32> to vector<64x12xbf16>
    %c0_2 = arith.constant 0 : index
    %c0_3 = arith.constant 0 : index
    %3 = vector.load %arg2[%c0_2, %c0_3] : memref<12x32xbf16, #tpu.memory_space<vmem>>, vector<12x32xbf16>
    %cst = arith.constant dense<0.000000e+00> : vector<64x32xf32>
    %4 = tpu.matmul %2, %3, %cst {dimension_numbers = #tpu.dot_dimension_numbers<[1], [0], [0], [1], [0, 0, 1, 1], [], []>} : vector<64x12xbf16>, vector<12x32xbf16>, vector<64x32xf32> -> vector<64x32xf32>
    %c0_4 = arith.constant 0 : index
    %c0_5 = arith.constant 0 : index
    %5 = vector.load %arg3[%c0_4, %c0_5] : memref<1x32xf32, #tpu.memory_space<vmem>>, vector<1x32xf32>
    %6 = vector.broadcast %5 : vector<1x32xf32> to vector<64x32xf32>
    %7 = arith.addf %4, %6 : vector<64x32xf32>
    %c0_6 = arith.constant 0 : index
    %c0_7 = arith.constant 0 : index
    %8 = vector.load %arg4[%c0_6, %c0_7] : memref<64x32xf32, #tpu.memory_space<vmem>>, vector<64x32xf32>
    %9 = arith.addf %7, %8 : vector<64x32xf32>
    %c0_8 = arith.constant 0 : index
    %c0_9 = arith.constant 0 : index
    %c0_10 = arith.constant 0 : index
    %10 = vector.load %arg5[%c0_8, %c0_9, %c0_10] : memref<1x64x32xf32, #tpu.memory_space<vmem>>, vector<1x64x32xf32>
    %11 = vector.shape_cast %10 : vector<1x64x32xf32> to vector<64x32xf32>
    %12 = vector.shape_cast %9 : vector<64x32xf32> to vector<1x64x32xf32>
    tpu.vector_store %arg5[%c0_8, %c0_9, %c0_10], %12 {strides = array<i32>} : memref<1x64x32xf32, #tpu.memory_space<vmem>>, vector<1x64x32xf32>,
    return
  }
  func.func @transform_0(%arg0: i32) -> (i32, i32, i32) {
    %c0_i32 = arith.constant 0 : i32
    %c0_i32_0 = arith.constant 0 : i32
    %c0_i32_1 = arith.constant 0 : i32
    return %arg0, %c0_i32, %c0_i32_0 : i32, i32, i32
  }
  func.func @transform_1(%arg0: i32) -> (i32, i32) {
    %c0_i32 = arith.constant 0 : i32
    %c0_i32_0 = arith.constant 0 : i32
    %c0_i32_1 = arith.constant 0 : i32
    return %c0_i32, %c0_i32_0 : i32, i32
  }
  func.func @transform_2(%arg0: i32) -> (i32, i32) {
    %c0_i32 = arith.constant 0 : i32
    %c0_i32_0 = arith.constant 0 : i32
    %c0_i32_1 = arith.constant 0 : i32
    return %c0_i32, %c0_i32_0 : i32, i32
  }
  func.func @transform_3(%arg0: i32) -> (i32, i32) {
    %c0_i32 = arith.constant 0 : i32
    %c0_i32_0 = arith.constant 0 : i32
    %c0_i32_1 = arith.constant 0 : i32
    return %c0_i32, %c0_i32_0 : i32, i32
  }
  func.func @transform_4(%arg0: i32) -> (i32, i32, i32) {
    %c0_i32 = arith.constant 0 : i32
    %c0_i32_0 = arith.constant 0 : i32
    %c0_i32_1 = arith.constant 0 : i32
    return %arg0, %c0_i32, %c0_i32_0 : i32, i32, i32
  }
}

module attributes {stable_mosaic.version = 11 : i64} {
  func.func @_ln_linear_kernel(%arg0: i32, %arg1: memref<66x32xf32, #tpu.memory_space<vmem>>, %arg2: memref<1x32xf32, #tpu.memory_space<vmem>>, %arg3: memref<1x32xf32, #tpu.memory_space<vmem>>, %arg4: memref<32x96xbf16, #tpu.memory_space<vmem>>, %arg5: memref<1x96xf32, #tpu.memory_space<vmem>>, %arg6: memref<66x96xf32, #tpu.memory_space<vmem>>) attributes {dimension_semantics = [#tpu.dimension_semantics<parallel>], iteration_bounds = array<i64: 1>, scalar_prefetch = 0 : i64, scratch_operands = 0 : i64, tpu.core_type = #tpu.core_type<tc>, window_params = [{transform_indices = @transform_0, window_bounds = array<i64: 66, 32>}, {pipeline_mode = #tpu.pipeline_mode<synchronous>, transform_indices = @transform_1, window_bounds = array<i64: 1, 32>}, {pipeline_mode = #tpu.pipeline_mode<synchronous>, transform_indices = @transform_2, window_bounds = array<i64: 1, 32>}, {pipeline_mode = #tpu.pipeline_mode<synchronous>, transform_indices = @transform_3, window_bounds = array<i64: 32, 96>}, {pipeline_mode = #tpu.pipeline_mode<synchronous>, transform_indices = @transform_4, window_bounds = array<i64: 1, 96>}, {transform_indices = @transform_5, window_bounds = array<i64: 66, 96>}]} {
    %c0 = arith.constant 0 : index
    %c0_0 = arith.constant 0 : index
    %0 = vector.load %arg1[%c0, %c0_0] : memref<66x32xf32, #tpu.memory_space<vmem>>, vector<66x32xf32>
    %cst = arith.constant dense<0.000000e+00> : vector<66xf32>
    %1 = vector.multi_reduction <add>, %0, %cst [1] : vector<66x32xf32> to vector<66xf32>
    %2 = vector.shape_cast %1 : vector<66xf32> to vector<66x1xf32>
    %cst_1 = arith.constant 3.200000e+01 : f32
    %3 = vector.broadcast %cst_1 : f32 to vector<66x1xf32>
    %4 = arith.divf %2, %3 : vector<66x1xf32>
    %5 = vector.broadcast %4 : vector<66x1xf32> to vector<66x32xf32>
    %6 = arith.subf %0, %5 : vector<66x32xf32>
    %7 = arith.mulf %6, %6 : vector<66x32xf32>
    %cst_2 = arith.constant dense<0.000000e+00> : vector<66xf32>
    %8 = vector.multi_reduction <add>, %7, %cst_2 [1] : vector<66x32xf32> to vector<66xf32>
    %9 = vector.shape_cast %8 : vector<66xf32> to vector<66x1xf32>
    %cst_3 = arith.constant 3.200000e+01 : f32
    %10 = vector.broadcast %cst_3 : f32 to vector<66x1xf32>
    %11 = arith.divf %9, %10 : vector<66x1xf32>
    %12 = vector.broadcast %4 : vector<66x1xf32> to vector<66x32xf32>
    %13 = arith.subf %0, %12 : vector<66x32xf32>
    %cst_4 = arith.constant 9.99999974E-6 : f32
    %14 = vector.broadcast %cst_4 : f32 to vector<66x1xf32>
    %15 = arith.addf %11, %14 : vector<66x1xf32>
    %16 = math.rsqrt %15 : vector<66x1xf32>
    %17 = vector.broadcast %16 : vector<66x1xf32> to vector<66x32xf32>
    %18 = arith.mulf %13, %17 : vector<66x32xf32>
    %c0_5 = arith.constant 0 : index
    %c0_6 = arith.constant 0 : index
    %19 = vector.load %arg2[%c0_5, %c0_6] : memref<1x32xf32, #tpu.memory_space<vmem>>, vector<1x32xf32>
    %20 = vector.broadcast %19 : vector<1x32xf32> to vector<66x32xf32>
    %21 = arith.mulf %18, %20 : vector<66x32xf32>
    %c0_7 = arith.constant 0 : index
    %c0_8 = arith.constant 0 : index
    %22 = vector.load %arg3[%c0_7, %c0_8] : memref<1x32xf32, #tpu.memory_space<vmem>>, vector<1x32xf32>
    %23 = vector.broadcast %22 : vector<1x32xf32> to vector<66x32xf32>
    %24 = arith.addf %21, %23 : vector<66x32xf32>
    %25 = arith.truncf %24 : vector<66x32xf32> to vector<66x32xbf16>
    %c0_9 = arith.constant 0 : index
    %c0_10 = arith.constant 0 : index
    %26 = vector.load %arg4[%c0_9, %c0_10] : memref<32x96xbf16, #tpu.memory_space<vmem>>, vector<32x96xbf16>
    %cst_11 = arith.constant dense<0.000000e+00> : vector<66x96xf32>
    %27 = tpu.matmul %25, %26, %cst_11 {dimension_numbers = #tpu.dot_dimension_numbers<[1], [0], [0], [1], [0, 0, 1, 1], [], []>} : vector<66x32xbf16>, vector<32x96xbf16>, vector<66x96xf32> -> vector<66x96xf32>
    %c0_12 = arith.constant 0 : index
    %c0_13 = arith.constant 0 : index
    %28 = vector.load %arg5[%c0_12, %c0_13] : memref<1x96xf32, #tpu.memory_space<vmem>>, vector<1x96xf32>
    %29 = vector.broadcast %28 : vector<1x96xf32> to vector<66x96xf32>
    %30 = arith.addf %27, %29 : vector<66x96xf32>
    %c0_14 = arith.constant 0 : index
    %c0_15 = arith.constant 0 : index
    %31 = vector.load %arg6[%c0_14, %c0_15] : memref<66x96xf32, #tpu.memory_space<vmem>>, vector<66x96xf32>
    tpu.vector_store %arg6[%c0_14, %c0_15], %30 {strides = array<i32>} : memref<66x96xf32, #tpu.memory_space<vmem>>, vector<66x96xf32>,
    return
  }
  func.func @transform_0(%arg0: i32) -> (i32, i32) {
    %c0_i32 = arith.constant 0 : i32
    %c0_i32_0 = arith.constant 0 : i32
    return %arg0, %c0_i32 : i32, i32
  }
  func.func @transform_1(%arg0: i32) -> (i32, i32) {
    %c0_i32 = arith.constant 0 : i32
    %c0_i32_0 = arith.constant 0 : i32
    %c0_i32_1 = arith.constant 0 : i32
    return %c0_i32, %c0_i32_0 : i32, i32
  }
  func.func @transform_2(%arg0: i32) -> (i32, i32) {
    %c0_i32 = arith.constant 0 : i32
    %c0_i32_0 = arith.constant 0 : i32
    %c0_i32_1 = arith.constant 0 : i32
    return %c0_i32, %c0_i32_0 : i32, i32
  }
  func.func @transform_3(%arg0: i32) -> (i32, i32) {
    %c0_i32 = arith.constant 0 : i32
    %c0_i32_0 = arith.constant 0 : i32
    %c0_i32_1 = arith.constant 0 : i32
    return %c0_i32, %c0_i32_0 : i32, i32
  }
  func.func @transform_4(%arg0: i32) -> (i32, i32) {
    %c0_i32 = arith.constant 0 : i32
    %c0_i32_0 = arith.constant 0 : i32
    %c0_i32_1 = arith.constant 0 : i32
    return %c0_i32, %c0_i32_0 : i32, i32
  }
  func.func @transform_5(%arg0: i32) -> (i32, i32) {
    %c0_i32 = arith.constant 0 : i32
    %c0_i32_0 = arith.constant 0 : i32
    return %arg0, %c0_i32 : i32, i32
  }
}

module attributes {stable_mosaic.version = 11 : i64} {
  func.func @_attention_kernel(%arg0: i32, %arg1: memref<1x2x33x16xf32, #tpu.memory_space<vmem>>, %arg2: memref<1x2x33x16xf32, #tpu.memory_space<vmem>>, %arg3: memref<1x2x33x16xf32, #tpu.memory_space<vmem>>, %arg4: memref<1x2x33x16xf32, #tpu.memory_space<vmem>>) attributes {dimension_semantics = [#tpu.dimension_semantics<parallel>], iteration_bounds = array<i64: 2>, scalar_prefetch = 0 : i64, scratch_operands = 0 : i64, tpu.core_type = #tpu.core_type<tc>, window_params = [{transform_indices = @transform_0, window_bounds = array<i64: 1, 2, 33, 16>}, {transform_indices = @transform_1, window_bounds = array<i64: 1, 2, 33, 16>}, {transform_indices = @transform_2, window_bounds = array<i64: 1, 2, 33, 16>}, {transform_indices = @transform_3, window_bounds = array<i64: 1, 2, 33, 16>}]} {
    %c0 = arith.constant 0 : index
    %c0_0 = arith.constant 0 : index
    %c0_1 = arith.constant 0 : index
    %c0_2 = arith.constant 0 : index
    %0 = vector.load %arg1[%c0, %c0_0, %c0_1, %c0_2] : memref<1x2x33x16xf32, #tpu.memory_space<vmem>>, vector<1x2x33x16xf32>
    %1 = vector.shape_cast %0 : vector<1x2x33x16xf32> to vector<2x33x16xf32>
    %2 = arith.truncf %1 : vector<2x33x16xf32> to vector<2x33x16xbf16>
    %c0_3 = arith.constant 0 : index
    %c0_4 = arith.constant 0 : index
    %c0_5 = arith.constant 0 : index
    %c0_6 = arith.constant 0 : index
    %3 = vector.load %arg2[%c0_3, %c0_4, %c0_5, %c0_6] : memref<1x2x33x16xf32, #tpu.memory_space<vmem>>, vector<1x2x33x16xf32>
    %4 = vector.shape_cast %3 : vector<1x2x33x16xf32> to vector<2x33x16xf32>
    %5 = arith.truncf %4 : vector<2x33x16xf32> to vector<2x33x16xbf16>
    %c0_7 = arith.constant 0 : index
    %c0_8 = arith.constant 0 : index
    %c0_9 = arith.constant 0 : index
    %c0_10 = arith.constant 0 : index
    %6 = vector.load %arg3[%c0_7, %c0_8, %c0_9, %c0_10] : memref<1x2x33x16xf32, #tpu.memory_space<vmem>>, vector<1x2x33x16xf32>
    %7 = vector.shape_cast %6 : vector<1x2x33x16xf32> to vector<2x33x16xf32>
    %8 = arith.truncf %7 : vector<2x33x16xf32> to vector<2x33x16xbf16>
    "tpu.trace_start"() <{level = 10 : i32, message = "hqd,hkd->hqk"}> : () -> ()
    %cst = arith.constant dense<0.000000e+00> : vector<2x33x33xf32>
    %9 = tpu.matmul %2, %5, %cst {dimension_numbers = #tpu.dot_dimension_numbers<[2], [2], [1], [1], [0, 0, 0, 1, 1, 1], [0], [0]>} : vector<2x33x16xbf16>, vector<2x33x16xbf16>, vector<2x33x33xf32> -> vector<2x33x33xf32>
    "tpu.trace_stop"() : () -> ()
    %cst_11 = arith.constant 2.500000e-01 : f32
    %10 = vector.broadcast %cst_11 : f32 to vector<2x33x33xf32>
    %11 = arith.mulf %9, %10 : vector<2x33x33xf32>
    %cst_12 = arith.constant dense<0xFF800000> : vector<2x33xf32>
    %12 = vector.multi_reduction <maximumf>, %11, %cst_12 [2] : vector<2x33x33xf32> to vector<2x33xf32>
    %13 = vector.shape_cast %12 : vector<2x33xf32> to vector<2x33x1xf32>
    %14 = vector.broadcast %13 : vector<2x33x1xf32> to vector<2x33x33xf32>
    %15 = arith.subf %11, %14 : vector<2x33x33xf32>
    %16 = math.exp %15 : vector<2x33x33xf32>
    %cst_13 = arith.constant dense<0.000000e+00> : vector<2x33xf32>
    %17 = vector.multi_reduction <add>, %16, %cst_13 [2] : vector<2x33x33xf32> to vector<2x33xf32>
    %18 = vector.shape_cast %17 : vector<2x33xf32> to vector<2x33x1xf32>
    %19 = tpu.reciprocal %18 {approx = true} : vector<2x33x1xf32> -> vector<2x33x1xf32>
    %20 = vector.broadcast %19 : vector<2x33x1xf32> to vector<2x33x33xf32>
    %21 = arith.mulf %16, %20 : vector<2x33x33xf32>
    %22 = arith.truncf %21 : vector<2x33x33xf32> to vector<2x33x33xbf16>
    "tpu.trace_start"() <{level = 10 : i32, message = "hqk,hkd->hqd"}> : () -> ()
    %cst_14 = arith.constant dense<0.000000e+00> : vector<2x33x16xf32>
    %23 = tpu.matmul %22, %8, %cst_14 {dimension_numbers = #tpu.dot_dimension_numbers<[2], [1], [1], [2], [0, 0, 0, 1, 1, 2], [0], [0]>} : vector<2x33x33xbf16>, vector<2x33x16xbf16>, vector<2x33x16xf32> -> vector<2x33x16xf32>
    "tpu.trace_stop"() : () -> ()
    %c0_15 = arith.constant 0 : index
    %c0_16 = arith.constant 0 : index
    %c0_17 = arith.constant 0 : index
    %c0_18 = arith.constant 0 : index
    %24 = vector.load %arg4[%c0_15, %c0_16, %c0_17, %c0_18] : memref<1x2x33x16xf32, #tpu.memory_space<vmem>>, vector<1x2x33x16xf32>
    %25 = vector.shape_cast %24 : vector<1x2x33x16xf32> to vector<2x33x16xf32>
    %26 = vector.shape_cast %23 : vector<2x33x16xf32> to vector<1x2x33x16xf32>
    tpu.vector_store %arg4[%c0_15, %c0_16, %c0_17, %c0_18], %26 {strides = array<i32>} : memref<1x2x33x16xf32, #tpu.memory_space<vmem>>, vector<1x2x33x16xf32>,
    return
  }
  func.func @transform_0(%arg0: i32) -> (i32, i32, i32, i32) {
    %c0_i32 = arith.constant 0 : i32
    %c0_i32_0 = arith.constant 0 : i32
    %c0_i32_1 = arith.constant 0 : i32
    %c0_i32_2 = arith.constant 0 : i32
    return %arg0, %c0_i32, %c0_i32_0, %c0_i32_1 : i32, i32, i32, i32
  }
  func.func @transform_1(%arg0: i32) -> (i32, i32, i32, i32) {
    %c0_i32 = arith.constant 0 : i32
    %c0_i32_0 = arith.constant 0 : i32
    %c0_i32_1 = arith.constant 0 : i32
    %c0_i32_2 = arith.constant 0 : i32
    return %arg0, %c0_i32, %c0_i32_0, %c0_i32_1 : i32, i32, i32, i32
  }
  func.func @transform_2(%arg0: i32) -> (i32, i32, i32, i32) {
    %c0_i32 = arith.constant 0 : i32
    %c0_i32_0 = arith.constant 0 : i32
    %c0_i32_1 = arith.constant 0 : i32
    %c0_i32_2 = arith.constant 0 : i32
    return %arg0, %c0_i32, %c0_i32_0, %c0_i32_1 : i32, i32, i32, i32
  }
  func.func @transform_3(%arg0: i32) -> (i32, i32, i32, i32) {
    %c0_i32 = arith.constant 0 : i32
    %c0_i32_0 = arith.constant 0 : i32
    %c0_i32_1 = arith.constant 0 : i32
    %c0_i32_2 = arith.constant 0 : i32
    return %arg0, %c0_i32, %c0_i32_0, %c0_i32_1 : i32, i32, i32, i32
  }
}

module attributes {stable_mosaic.version = 11 : i64} {
  func.func @_ln_linear_kernel(%arg0: i32, %arg1: memref<66x32xf32, #tpu.memory_space<vmem>>, %arg2: memref<1x32xf32, #tpu.memory_space<vmem>>, %arg3: memref<1x32xf32, #tpu.memory_space<vmem>>, %arg4: memref<32x128xbf16, #tpu.memory_space<vmem>>, %arg5: memref<1x128xf32, #tpu.memory_space<vmem>>, %arg6: memref<66x128xf32, #tpu.memory_space<vmem>>) attributes {dimension_semantics = [#tpu.dimension_semantics<parallel>], iteration_bounds = array<i64: 1>, scalar_prefetch = 0 : i64, scratch_operands = 0 : i64, tpu.core_type = #tpu.core_type<tc>, window_params = [{transform_indices = @transform_0, window_bounds = array<i64: 66, 32>}, {pipeline_mode = #tpu.pipeline_mode<synchronous>, transform_indices = @transform_1, window_bounds = array<i64: 1, 32>}, {pipeline_mode = #tpu.pipeline_mode<synchronous>, transform_indices = @transform_2, window_bounds = array<i64: 1, 32>}, {pipeline_mode = #tpu.pipeline_mode<synchronous>, transform_indices = @transform_3, window_bounds = array<i64: 32, 128>}, {pipeline_mode = #tpu.pipeline_mode<synchronous>, transform_indices = @transform_4, window_bounds = array<i64: 1, 128>}, {transform_indices = @transform_5, window_bounds = array<i64: 66, 128>}]} {
    %c0 = arith.constant 0 : index
    %c0_0 = arith.constant 0 : index
    %0 = vector.load %arg1[%c0, %c0_0] : memref<66x32xf32, #tpu.memory_space<vmem>>, vector<66x32xf32>
    %cst = arith.constant dense<0.000000e+00> : vector<66xf32>
    %1 = vector.multi_reduction <add>, %0, %cst [1] : vector<66x32xf32> to vector<66xf32>
    %2 = vector.shape_cast %1 : vector<66xf32> to vector<66x1xf32>
    %cst_1 = arith.constant 3.200000e+01 : f32
    %3 = vector.broadcast %cst_1 : f32 to vector<66x1xf32>
    %4 = arith.divf %2, %3 : vector<66x1xf32>
    %5 = vector.broadcast %4 : vector<66x1xf32> to vector<66x32xf32>
    %6 = arith.subf %0, %5 : vector<66x32xf32>
    %7 = arith.mulf %6, %6 : vector<66x32xf32>
    %cst_2 = arith.constant dense<0.000000e+00> : vector<66xf32>
    %8 = vector.multi_reduction <add>, %7, %cst_2 [1] : vector<66x32xf32> to vector<66xf32>
    %9 = vector.shape_cast %8 : vector<66xf32> to vector<66x1xf32>
    %cst_3 = arith.constant 3.200000e+01 : f32
    %10 = vector.broadcast %cst_3 : f32 to vector<66x1xf32>
    %11 = arith.divf %9, %10 : vector<66x1xf32>
    %12 = vector.broadcast %4 : vector<66x1xf32> to vector<66x32xf32>
    %13 = arith.subf %0, %12 : vector<66x32xf32>
    %cst_4 = arith.constant 9.99999974E-6 : f32
    %14 = vector.broadcast %cst_4 : f32 to vector<66x1xf32>
    %15 = arith.addf %11, %14 : vector<66x1xf32>
    %16 = math.rsqrt %15 : vector<66x1xf32>
    %17 = vector.broadcast %16 : vector<66x1xf32> to vector<66x32xf32>
    %18 = arith.mulf %13, %17 : vector<66x32xf32>
    %c0_5 = arith.constant 0 : index
    %c0_6 = arith.constant 0 : index
    %19 = vector.load %arg2[%c0_5, %c0_6] : memref<1x32xf32, #tpu.memory_space<vmem>>, vector<1x32xf32>
    %20 = vector.broadcast %19 : vector<1x32xf32> to vector<66x32xf32>
    %21 = arith.mulf %18, %20 : vector<66x32xf32>
    %c0_7 = arith.constant 0 : index
    %c0_8 = arith.constant 0 : index
    %22 = vector.load %arg3[%c0_7, %c0_8] : memref<1x32xf32, #tpu.memory_space<vmem>>, vector<1x32xf32>
    %23 = vector.broadcast %22 : vector<1x32xf32> to vector<66x32xf32>
    %24 = arith.addf %21, %23 : vector<66x32xf32>
    %25 = arith.truncf %24 : vector<66x32xf32> to vector<66x32xbf16>
    %c0_9 = arith.constant 0 : index
    %c0_10 = arith.constant 0 : index
    %26 = vector.load %arg4[%c0_9, %c0_10] : memref<32x128xbf16, #tpu.memory_space<vmem>>, vector<32x128xbf16>
    %cst_11 = arith.constant dense<0.000000e+00> : vector<66x128xf32>
    %27 = tpu.matmul %25, %26, %cst_11 {dimension_numbers = #tpu.dot_dimension_numbers<[1], [0], [0], [1], [0, 0, 1, 1], [], []>} : vector<66x32xbf16>, vector<32x128xbf16>, vector<66x128xf32> -> vector<66x128xf32>
    %c0_12 = arith.constant 0 : index
    %c0_13 = arith.constant 0 : index
    %28 = vector.load %arg5[%c0_12, %c0_13] : memref<1x128xf32, #tpu.memory_space<vmem>>, vector<1x128xf32>
    %29 = vector.broadcast %28 : vector<1x128xf32> to vector<66x128xf32>
    %30 = arith.addf %27, %29 : vector<66x128xf32>
    %31 = arith.mulf %30, %30 : vector<66x128xf32>
    %32 = arith.mulf %30, %31 : vector<66x128xf32>
    %cst_14 = arith.constant 4.471500e-02 : f32
    %33 = vector.broadcast %cst_14 : f32 to vector<66x128xf32>
    %34 = arith.mulf %33, %32 : vector<66x128xf32>
    %35 = arith.addf %30, %34 : vector<66x128xf32>
    %cst_15 = arith.constant 0.797884583 : f32
    %36 = vector.broadcast %cst_15 : f32 to vector<66x128xf32>
    %37 = arith.mulf %36, %35 : vector<66x128xf32>
    %38 = math.tanh %37 : vector<66x128xf32>
    %cst_16 = arith.constant 1.000000e+00 : f32
    %39 = vector.broadcast %cst_16 : f32 to vector<66x128xf32>
    %40 = arith.addf %39, %38 : vector<66x128xf32>
    %cst_17 = arith.constant 5.000000e-01 : f32
    %41 = vector.broadcast %cst_17 : f32 to vector<66x128xf32>
    %42 = arith.mulf %41, %40 : vector<66x128xf32>
    %43 = arith.mulf %30, %42 : vector<66x128xf32>
    %c0_18 = arith.constant 0 : index
    %c0_19 = arith.constant 0 : index
    %44 = vector.load %arg6[%c0_18, %c0_19] : memref<66x128xf32, #tpu.memory_space<vmem>>, vector<66x128xf32>
    tpu.vector_store %arg6[%c0_18, %c0_19], %43 {strides = array<i32>} : memref<66x128xf32, #tpu.memory_space<vmem>>, vector<66x128xf32>,
    return
  }
  func.func @transform_0(%arg0: i32) -> (i32, i32) {
    %c0_i32 = arith.constant 0 : i32
    %c0_i32_0 = arith.constant 0 : i32
    return %arg0, %c0_i32 : i32, i32
  }
  func.func @transform_1(%arg0: i32) -> (i32, i32) {
    %c0_i32 = arith.constant 0 : i32
    %c0_i32_0 = arith.constant 0 : i32
    %c0_i32_1 = arith.constant 0 : i32
    return %c0_i32, %c0_i32_0 : i32, i32
  }
  func.func @transform_2(%arg0: i32) -> (i32, i32) {
    %c0_i32 = arith.constant 0 : i32
    %c0_i32_0 = arith.constant 0 : i32
    %c0_i32_1 = arith.constant 0 : i32
    return %c0_i32, %c0_i32_0 : i32, i32
  }
  func.func @transform_3(%arg0: i32) -> (i32, i32) {
    %c0_i32 = arith.constant 0 : i32
    %c0_i32_0 = arith.constant 0 : i32
    %c0_i32_1 = arith.constant 0 : i32
    return %c0_i32, %c0_i32_0 : i32, i32
  }
  func.func @transform_4(%arg0: i32) -> (i32, i32) {
    %c0_i32 = arith.constant 0 : i32
    %c0_i32_0 = arith.constant 0 : i32
    %c0_i32_1 = arith.constant 0 : i32
    return %c0_i32, %c0_i32_0 : i32, i32
  }
  func.func @transform_5(%arg0: i32) -> (i32, i32) {
    %c0_i32 = arith.constant 0 : i32
    %c0_i32_0 = arith.constant 0 : i32
    return %arg0, %c0_i32 : i32, i32
  }
}

module attributes {stable_mosaic.version = 11 : i64} {
  func.func @_linear_residual_kernel(%arg0: i32, %arg1: memref<66x32xf32, #tpu.memory_space<vmem>>, %arg2: memref<32x32xbf16, #tpu.memory_space<vmem>>, %arg3: memref<1x32xf32, #tpu.memory_space<vmem>>, %arg4: memref<66x32xf32, #tpu.memory_space<vmem>>, %arg5: memref<66x32xf32, #tpu.memory_space<vmem>>) attributes {dimension_semantics = [#tpu.dimension_semantics<parallel>], iteration_bounds = array<i64: 1>, scalar_prefetch = 0 : i64, scratch_operands = 0 : i64, tpu.core_type = #tpu.core_type<tc>, window_params = [{transform_indices = @transform_0, window_bounds = array<i64: 66, 32>}, {pipeline_mode = #tpu.pipeline_mode<synchronous>, transform_indices = @transform_1, window_bounds = array<i64: 32, 32>}, {pipeline_mode = #tpu.pipeline_mode<synchronous>, transform_indices = @transform_2, window_bounds = array<i64: 1, 32>}, {transform_indices = @transform_3, window_bounds = array<i64: 66, 32>}, {transform_indices = @transform_4, window_bounds = array<i64: 66, 32>}]} {
    %c0 = arith.constant 0 : index
    %c0_0 = arith.constant 0 : index
    %0 = vector.load %arg1[%c0, %c0_0] : memref<66x32xf32, #tpu.memory_space<vmem>>, vector<66x32xf32>
    %1 = arith.truncf %0 : vector<66x32xf32> to vector<66x32xbf16>
    %c0_1 = arith.constant 0 : index
    %c0_2 = arith.constant 0 : index
    %2 = vector.load %arg2[%c0_1, %c0_2] : memref<32x32xbf16, #tpu.memory_space<vmem>>, vector<32x32xbf16>
    %cst = arith.constant dense<0.000000e+00> : vector<66x32xf32>
    %3 = tpu.matmul %1, %2, %cst {dimension_numbers = #tpu.dot_dimension_numbers<[1], [0], [0], [1], [0, 0, 1, 1], [], []>} : vector<66x32xbf16>, vector<32x32xbf16>, vector<66x32xf32> -> vector<66x32xf32>
    %c0_3 = arith.constant 0 : index
    %c0_4 = arith.constant 0 : index
    %4 = vector.load %arg3[%c0_3, %c0_4] : memref<1x32xf32, #tpu.memory_space<vmem>>, vector<1x32xf32>
    %5 = vector.broadcast %4 : vector<1x32xf32> to vector<66x32xf32>
    %6 = arith.addf %3, %5 : vector<66x32xf32>
    %c0_5 = arith.constant 0 : index
    %c0_6 = arith.constant 0 : index
    %7 = vector.load %arg4[%c0_5, %c0_6] : memref<66x32xf32, #tpu.memory_space<vmem>>, vector<66x32xf32>
    %8 = arith.addf %6, %7 : vector<66x32xf32>
    %c0_7 = arith.constant 0 : index
    %c0_8 = arith.constant 0 : index
    %9 = vector.load %arg5[%c0_7, %c0_8] : memref<66x32xf32, #tpu.memory_space<vmem>>, vector<66x32xf32>
    tpu.vector_store %arg5[%c0_7, %c0_8], %8 {strides = array<i32>} : memref<66x32xf32, #tpu.memory_space<vmem>>, vector<66x32xf32>,
    return
  }
  func.func @transform_0(%arg0: i32) -> (i32, i32) {
    %c0_i32 = arith.constant 0 : i32
    %c0_i32_0 = arith.constant 0 : i32
    return %arg0, %c0_i32 : i32, i32
  }
  func.func @transform_1(%arg0: i32) -> (i32, i32) {
    %c0_i32 = arith.constant 0 : i32
    %c0_i32_0 = arith.constant 0 : i32
    %c0_i32_1 = arith.constant 0 : i32
    return %c0_i32, %c0_i32_0 : i32, i32
  }
  func.func @transform_2(%arg0: i32) -> (i32, i32) {
    %c0_i32 = arith.constant 0 : i32
    %c0_i32_0 = arith.constant 0 : i32
    %c0_i32_1 = arith.constant 0 : i32
    return %c0_i32, %c0_i32_0 : i32, i32
  }
  func.func @transform_3(%arg0: i32) -> (i32, i32) {
    %c0_i32 = arith.constant 0 : i32
    %c0_i32_0 = arith.constant 0 : i32
    return %arg0, %c0_i32 : i32, i32
  }
  func.func @transform_4(%arg0: i32) -> (i32, i32) {
    %c0_i32 = arith.constant 0 : i32
    %c0_i32_0 = arith.constant 0 : i32
    return %arg0, %c0_i32 : i32, i32
  }
}

module attributes {stable_mosaic.version = 11 : i64} {
  func.func @_layernorm_kernel(%arg0: i32, %arg1: memref<66x32xf32, #tpu.memory_space<vmem>>, %arg2: memref<1x32xf32, #tpu.memory_space<vmem>>, %arg3: memref<1x32xf32, #tpu.memory_space<vmem>>, %arg4: memref<66x32xf32, #tpu.memory_space<vmem>>) attributes {dimension_semantics = [#tpu.dimension_semantics<parallel>], iteration_bounds = array<i64: 1>, scalar_prefetch = 0 : i64, scratch_operands = 0 : i64, tpu.core_type = #tpu.core_type<tc>, window_params = [{transform_indices = @transform_0, window_bounds = array<i64: 66, 32>}, {pipeline_mode = #tpu.pipeline_mode<synchronous>, transform_indices = @transform_1, window_bounds = array<i64: 1, 32>}, {pipeline_mode = #tpu.pipeline_mode<synchronous>, transform_indices = @transform_2, window_bounds = array<i64: 1, 32>}, {transform_indices = @transform_3, window_bounds = array<i64: 66, 32>}]} {
    %c0 = arith.constant 0 : index
    %c0_0 = arith.constant 0 : index
    %0 = vector.load %arg1[%c0, %c0_0] : memref<66x32xf32, #tpu.memory_space<vmem>>, vector<66x32xf32>
    %cst = arith.constant dense<0.000000e+00> : vector<66xf32>
    %1 = vector.multi_reduction <add>, %0, %cst [1] : vector<66x32xf32> to vector<66xf32>
    %2 = vector.shape_cast %1 : vector<66xf32> to vector<66x1xf32>
    %cst_1 = arith.constant 3.200000e+01 : f32
    %3 = vector.broadcast %cst_1 : f32 to vector<66x1xf32>
    %4 = arith.divf %2, %3 : vector<66x1xf32>
    %5 = vector.broadcast %4 : vector<66x1xf32> to vector<66x32xf32>
    %6 = arith.subf %0, %5 : vector<66x32xf32>
    %7 = arith.mulf %6, %6 : vector<66x32xf32>
    %cst_2 = arith.constant dense<0.000000e+00> : vector<66xf32>
    %8 = vector.multi_reduction <add>, %7, %cst_2 [1] : vector<66x32xf32> to vector<66xf32>
    %9 = vector.shape_cast %8 : vector<66xf32> to vector<66x1xf32>
    %cst_3 = arith.constant 3.200000e+01 : f32
    %10 = vector.broadcast %cst_3 : f32 to vector<66x1xf32>
    %11 = arith.divf %9, %10 : vector<66x1xf32>
    %12 = vector.broadcast %4 : vector<66x1xf32> to vector<66x32xf32>
    %13 = arith.subf %0, %12 : vector<66x32xf32>
    %cst_4 = arith.constant 9.99999974E-6 : f32
    %14 = vector.broadcast %cst_4 : f32 to vector<66x1xf32>
    %15 = arith.addf %11, %14 : vector<66x1xf32>
    %16 = math.rsqrt %15 : vector<66x1xf32>
    %17 = vector.broadcast %16 : vector<66x1xf32> to vector<66x32xf32>
    %18 = arith.mulf %13, %17 : vector<66x32xf32>
    %c0_5 = arith.constant 0 : index
    %c0_6 = arith.constant 0 : index
    %19 = vector.load %arg2[%c0_5, %c0_6] : memref<1x32xf32, #tpu.memory_space<vmem>>, vector<1x32xf32>
    %20 = vector.broadcast %19 : vector<1x32xf32> to vector<66x32xf32>
    %21 = arith.mulf %18, %20 : vector<66x32xf32>
    %c0_7 = arith.constant 0 : index
    %c0_8 = arith.constant 0 : index
    %22 = vector.load %arg3[%c0_7, %c0_8] : memref<1x32xf32, #tpu.memory_space<vmem>>, vector<1x32xf32>
    %23 = vector.broadcast %22 : vector<1x32xf32> to vector<66x32xf32>
    %24 = arith.addf %21, %23 : vector<66x32xf32>
    %c0_9 = arith.constant 0 : index
    %c0_10 = arith.constant 0 : index
    %25 = vector.load %arg4[%c0_9, %c0_10] : memref<66x32xf32, #tpu.memory_space<vmem>>, vector<66x32xf32>
    tpu.vector_store %arg4[%c0_9, %c0_10], %24 {strides = array<i32>} : memref<66x32xf32, #tpu.memory_space<vmem>>, vector<66x32xf32>,
    return
  }
  func.func @transform_0(%arg0: i32) -> (i32, i32) {
    %c0_i32 = arith.constant 0 : i32
    %c0_i32_0 = arith.constant 0 : i32
    return %arg0, %c0_i32 : i32, i32
  }
  func.func @transform_1(%arg0: i32) -> (i32, i32) {
    %c0_i32 = arith.constant 0 : i32
    %c0_i32_0 = arith.constant 0 : i32
    %c0_i32_1 = arith.constant 0 : i32
    return %c0_i32, %c0_i32_0 : i32, i32
  }
  func.func @transform_2(%arg0: i32) -> (i32, i32) {
    %c0_i32 = arith.constant 0 : i32
    %c0_i32_0 = arith.constant 0 : i32
    %c0_i32_1 = arith.constant 0 : i32
    return %c0_i32, %c0_i32_0 : i32, i32
  }
  func.func @transform_3(%arg0: i32) -> (i32, i32) {
    %c0_i32 = arith.constant 0 : i32
    %c0_i32_0 = arith.constant 0 : i32
    return %arg0, %c0_i32 : i32, i32
  }
}

module attributes {stable_mosaic.version = 11 : i64} {
  func.func @_linear_residual_kernel(%arg0: i32, %arg1: memref<66x128xf32, #tpu.memory_space<vmem>>, %arg2: memref<128x32xbf16, #tpu.memory_space<vmem>>, %arg3: memref<1x32xf32, #tpu.memory_space<vmem>>, %arg4: memref<66x32xf32, #tpu.memory_space<vmem>>, %arg5: memref<66x32xf32, #tpu.memory_space<vmem>>) attributes {dimension_semantics = [#tpu.dimension_semantics<parallel>], iteration_bounds = array<i64: 1>, scalar_prefetch = 0 : i64, scratch_operands = 0 : i64, tpu.core_type = #tpu.core_type<tc>, window_params = [{transform_indices = @transform_0, window_bounds = array<i64: 66, 128>}, {pipeline_mode = #tpu.pipeline_mode<synchronous>, transform_indices = @transform_1, window_bounds = array<i64: 128, 32>}, {pipeline_mode = #tpu.pipeline_mode<synchronous>, transform_indices = @transform_2, window_bounds = array<i64: 1, 32>}, {transform_indices = @transform_3, window_bounds = array<i64: 66, 32>}, {transform_indices = @transform_4, window_bounds = array<i64: 66, 32>}]} {
    %c0 = arith.constant 0 : index
    %c0_0 = arith.constant 0 : index
    %0 = vector.load %arg1[%c0, %c0_0] : memref<66x128xf32, #tpu.memory_space<vmem>>, vector<66x128xf32>
    %1 = arith.truncf %0 : vector<66x128xf32> to vector<66x128xbf16>
    %c0_1 = arith.constant 0 : index
    %c0_2 = arith.constant 0 : index
    %2 = vector.load %arg2[%c0_1, %c0_2] : memref<128x32xbf16, #tpu.memory_space<vmem>>, vector<128x32xbf16>
    %cst = arith.constant dense<0.000000e+00> : vector<66x32xf32>
    %3 = tpu.matmul %1, %2, %cst {dimension_numbers = #tpu.dot_dimension_numbers<[1], [0], [0], [1], [0, 0, 1, 1], [], []>} : vector<66x128xbf16>, vector<128x32xbf16>, vector<66x32xf32> -> vector<66x32xf32>
    %c0_3 = arith.constant 0 : index
    %c0_4 = arith.constant 0 : index
    %4 = vector.load %arg3[%c0_3, %c0_4] : memref<1x32xf32, #tpu.memory_space<vmem>>, vector<1x32xf32>
    %5 = vector.broadcast %4 : vector<1x32xf32> to vector<66x32xf32>
    %6 = arith.addf %3, %5 : vector<66x32xf32>
    %c0_5 = arith.constant 0 : index
    %c0_6 = arith.constant 0 : index
    %7 = vector.load %arg4[%c0_5, %c0_6] : memref<66x32xf32, #tpu.memory_space<vmem>>, vector<66x32xf32>
    %8 = arith.addf %6, %7 : vector<66x32xf32>
    %c0_7 = arith.constant 0 : index
    %c0_8 = arith.constant 0 : index
    %9 = vector.load %arg5[%c0_7, %c0_8] : memref<66x32xf32, #tpu.memory_space<vmem>>, vector<66x32xf32>
    tpu.vector_store %arg5[%c0_7, %c0_8], %8 {strides = array<i32>} : memref<66x32xf32, #tpu.memory_space<vmem>>, vector<66x32xf32>,
    return
  }
  func.func @transform_0(%arg0: i32) -> (i32, i32) {
    %c0_i32 = arith.constant 0 : i32
    %c0_i32_0 = arith.constant 0 : i32
    return %arg0, %c0_i32 : i32, i32
  }
  func.func @transform_1(%arg0: i32) -> (i32, i32) {
    %c0_i32 = arith.constant 0 : i32
    %c0_i32_0 = arith.constant 0 : i32
    %c0_i32_1 = arith.constant 0 : i32
    return %c0_i32, %c0_i32_0 : i32, i32
  }
  func.func @transform_2(%arg0: i32) -> (i32, i32) {
    %c0_i32 = arith.constant 0 : i32
    %c0_i32_0 = arith.constant 0 : i32
    %c0_i32_1 = arith.constant 0 : i32
    return %c0_i32, %c0_i32_0 : i32, i32
  }
  func.func @transform_3(%arg0: i32) -> (i32, i32) {
    %c0_i32 = arith.constant 0 : i32
    %c0_i32_0 = arith.constant 0 : i32
    return %arg0, %c0_i32 : i32, i32
  }
  func.func @transform_4(%arg0: i32) -> (i32, i32) {
    %c0_i32 = arith.constant 0 : i32
    %c0_i32_0 = arith.constant 0 : i32
    return %arg0, %c0_i32 : i32, i32
  }
}

</mosaic_0001>

<llo_original>
// kernel: mae_encoder_forward.14
$region0: #{mae_encoder_forward.14}
  #allocation0 [shape = 'u32[]', space=smem, size = 0x4, offset = 0x4, fixed_abs, tag = 'smem constant byte address 0x4 - core index']
  #allocation1 [shape = 'u32[144,128]{1,0:T(1,128)}', space=vmem, size = 0x12000, scoped, tag = 'internal scratch']
  %s0 = inlined_call_operand.vmem [shape: f32[4,64,12], index: 0, kind: input, shape index: {}]
  %s1 = inlined_call_operand.vmem [shape: bf16[12,32], index: 1, kind: input, shape index: {}]
  %s2 = inlined_call_operand.vmem [shape: f32[1,32], index: 2, kind: input, shape index: {}]
  %s3 = inlined_call_operand.vmem [shape: f32[64,32], index: 3, kind: input, shape index: {}]
  %s4 = inlined_call_operand.vmem [shape: f32[4,64,32], index: 4, kind: output, shape index: {}]
  %s5 = sld [smem:[#allocation0]]
  $region49: #{mae_encoder_forward.14} parent=0
    _
  %s7 = ssub.s32 1, %s5
  %s8 = scalar_select 0, %s7, %s5
  loop: start=0, step=1, limit=6
  $region2: #{mae_encoder_forward.14} parent=0 // loop_pre_header
    _
  $region3: #{mae_encoder_forward.14} parent=0 // loop_header
    %s10 = sphi 0, %s14
    %p11 = scmp.ge.s32.totalorder %s10, 6
    %s20 = sphi 0, %s22
    %s23 = sphi 0, %s20
    %s24 = sphi 0, %s23
    %s40 = sphi 0, %s24
    %s44 = sphi 0, %s44
    %s46 = sphi 0, %s44
    %s47 = sphi 0, %s46
    %s61 = sphi 0, %s47
    %s65 = sphi 0, %s65
    %s67 = sphi 0, %s65
    %s68 = sphi 0, %s67
    %s82 = sphi 0, %s68
    %s86 = sphi 0, %s86
    %s88 = sphi 0, %s86
    %s89 = sphi 0, %s88
    %s103 = sphi 0, %s89
    %s109 = sphi 0, %s111
    %s112 = sphi 0, %s109
    %s113 = sphi 0, %s112
    %s129 = sphi 0, %s113
  $region4: #{mae_encoder_forward.14} parent=0 // loop_header_branch
    %13 = sbr.rel (%p11) target = $region8
  $region5: #{mae_encoder_forward.14} parent=0 // loop_body
    %s15 = ssub.s32 %s10, 1
    %s16 = ssub.s32 %s10, 2
    %s17 = sadd.s32 %s10, 1
    %s18 = ssub.s32 %s10, %s17
    %p19 = scmp.eq.s32.totalorder %s18, 0
    %s21 = sadd.s32 %s20, 1
    %s22 = scalar_select %p19, %s20, %s21
    %p25 = pneg %p19
    %p26 = scmp.eq.s32.totalorder %s10, 3
    %p27 = por %p25, %p26
    %p28 = scmp.ne.s32.totalorder %s20, %s23
    %p29 = scmp.eq.s32.totalorder %s10, 0
    %p30 = por %p28, %p29
    %p31 = scmp.ne.s32.totalorder %s20, %s23
    %p32 = scmp.eq.s32.totalorder %s15, 3
    %p33 = por %p31, %p32
    %p34 = scmp.ne.s32.totalorder %s23, %s24
    %p35 = scmp.eq.s32.totalorder %s15, 0
    %p36 = por %p34, %p35
    %p37 = scmp.ne.s32.totalorder %s23, %s24
    %p38 = scmp.eq.s32.totalorder %s16, 3
    %p39 = por %p37, %p38
    %p41 = scmp.ne.s32.totalorder %s24, %s40
    %p42 = scmp.eq.s32.totalorder %s16, 0
    %p43 = por %p41, %p42
    %s45 = sadd.s32 %s44, 1
    %p48 = scmp.eq.s32.totalorder %s10, 3
    %p49 = scmp.ne.s32.totalorder %s44, %s46
    %p50 = scmp.eq.s32.totalorder %s10, 0
    %p51 = por %p49, %p50
    %p52 = scmp.ne.s32.totalorder %s44, %s46
    %p53 = scmp.eq.s32.totalorder %s15, 3
    %p54 = por %p52, %p53
    %p55 = scmp.ne.s32.totalorder %s46, %s47
    %p56 = scmp.eq.s32.totalorder %s15, 0
    %p57 = por %p55, %p56
    %p58 = scmp.ne.s32.totalorder %s46, %s47
    %p59 = scmp.eq.s32.totalorder %s16, 3
    %p60 = por %p58, %p59
    %p62 = scmp.ne.s32.totalorder %s47, %s61
    %p63 = scmp.eq.s32.totalorder %s16, 0
    %p64 = por %p62, %p63
    %s66 = sadd.s32 %s65, 1
    %p69 = scmp.eq.s32.totalorder %s10, 3
    %p70 = scmp.ne.s32.totalorder %s65, %s67
    %p71 = scmp.eq.s32.totalorder %s10, 0
    %p72 = por %p70, %p71
    %p73 = scmp.ne.s32.totalorder %s65, %s67
    %p74 = scmp.eq.s32.totalorder %s15, 3
    %p75 = por %p73, %p74
    %p76 = scmp.ne.s32.totalorder %s67, %s68
    %p77 = scmp.eq.s32.totalorder %s15, 0
    %p78 = por %p76, %p77
    %p79 = scmp.ne.s32.totalorder %s67, %s68
    %p80 = scmp.eq.s32.totalorder %s16, 3
    %p81 = por %p79, %p80
    %p83 = scmp.ne.s32.totalorder %s68, %s82
    %p84 = scmp.eq.s32.totalorder %s16, 0
    %p85 = por %p83, %p84
    %s87 = sadd.s32 %s86, 1
    %p90 = scmp.eq.s32.totalorder %s10, 3
    %p91 = scmp.ne.s32.totalorder %s86, %s88
    %p92 = scmp.eq.s32.totalorder %s10, 0
    %p93 = por %p91, %p92
    %p94 = scmp.ne.s32.totalorder %s86, %s88
    %p95 = scmp.eq.s32.totalorder %s15, 3
    %p96 = por %p94, %p95
    %p97 = scmp.ne.s32.totalorder %s88, %s89
    %p98 = scmp.eq.s32.totalorder %s15, 0
    %p99 = por %p97, %p98
    %p100 = scmp.ne.s32.totalorder %s88, %s89
    %p101 = scmp.eq.s32.totalorder %s16, 3
    %p102 = por %p100, %p101
    %p104 = scmp.ne.s32.totalorder %s89, %s103
    %p105 = scmp.eq.s32.totalorder %s16, 0
    %p106 = por %p104, %p105
    %s107 = ssub.s32 %s10, %s17
    %p108 = scmp.eq.s32.totalorder %s107, 0
    %s110 = sadd.s32 %s109, 1
    %s111 = scalar_select %p108, %s109, %s110
    %p114 = pneg %p108
    %p115 = scmp.eq.s32.totalorder %s10, 3
    %p116 = por %p114, %p115
    %p117 = scmp.ne.s32.totalorder %s109, %s112
    %p118 = scmp.eq.s32.totalorder %s10, 0
    %p119 = por %p117, %p118
    %p120 = scmp.ne.s32.totalorder %s109, %s112
    %p121 = scmp.eq.s32.totalorder %s15, 3
    %p122 = por %p120, %p121
    %p123 = scmp.ne.s32.totalorder %s112, %s113
    %p124 = scmp.eq.s32.totalorder %s15, 0
    %p125 = por %p123, %p124
    %p126 = scmp.ne.s32.totalorder %s112, %s113
    %p127 = scmp.eq.s32.totalorder %s16, 3
    %p128 = por %p126, %p127
    %p130 = scmp.ne.s32.totalorder %s113, %s129
    %p131 = scmp.eq.s32.totalorder %s16, 0
    %p132 = por %p130, %p131
    %p133 = scmp.le.s32.totalorder 1, %s10
    %p134 = scmp.lt.s32.totalorder %s10, 5
    %p135 = pnand %p133, %p134
    %p136 = pneg %p135
    // Predicated region
    $region9: #{mae_encoder_forward.14} parent=5 // pred_check
      _
    $region10: #{mae_encoder_forward.14} parent=5 // pred_check_branch
      %138 = sbr.rel (%p135) target = $region12
    $region11: #{mae_encoder_forward.14} parent=5 // pred_region
      %s139 = ssub.s32 %s10, 1
      // Predicated region
      $region13: #{mae_encoder_forward.14} parent=11 // pred_check
        %p140 = pneg %p57
      $region14: #{mae_encoder_forward.14} parent=11 // pred_check_branch
        %142 = sbr.rel (%p140) target = $region16
      $region15: #{mae_encoder_forward.14} parent=11 // pred_region
        _
      $region16: #{mae_encoder_forward.14} parent=11 // pred_fallthru
        _
      // Predicated region
      $region17: #{mae_encoder_forward.14} parent=11 // pred_check
        %p143 = pneg %p78
      $region18: #{mae_encoder_forward.14} parent=11 // pred_check_branch
        %145 = sbr.rel (%p143) target = $region20
      $region19: #{mae_encoder_forward.14} parent=11 // pred_region
        _
      $region20: #{mae_encoder_forward.14} parent=11 // pred_fallthru
        _
      // Predicated region
      $region21: #{mae_encoder_forward.14} parent=11 // pred_check
        %p146 = pneg %p99
      $region22: #{mae_encoder_forward.14} parent=11 // pred_check_branch
        %148 = sbr.rel (%p146) target = $region24
      $region23: #{mae_encoder_forward.14} parent=11 // pred_region
        _
      $region24: #{mae_encoder_forward.14} parent=11 // pred_fallthru
        _
    $region12: #{mae_encoder_forward.14} parent=5 // pred_fallthru
      _
    %p149 = scmp.lt.s32.totalorder %s10, 4
    // Predicated region
    $region25: #{mae_encoder_forward.14} parent=5 // pred_check
      %p150 = pneg %p149
    $region26: #{mae_encoder_forward.14} parent=5 // pred_check_branch
      %152 = sbr.rel (%p150) target = $region28
    $region27: #{mae_encoder_forward.14} parent=5 // pred_region
      // Predicated region
      $region29: #{mae_encoder_forward.14} parent=27 // pred_check
        %p153 = pneg %p30
      $region30: #{mae_encoder_forward.14} parent=27 // pred_check_branch
        %155 = sbr.rel (%p153) target = $region32
      $region31: #{mae_encoder_forward.14} parent=27 // pred_region
        %p156 = scmp.lt.s32.totalorder %s10, 3
        %s157 = scalar_select %p156, %s10, 3
        %s158 = smul.addr %s157, 8
        %s159 = smul.addr %s158, 8
        %s160 = scalar_lea.vmem %s0, %s159
      $region32: #{mae_encoder_forward.14} parent=27 // pred_fallthru
        _
    $region28: #{mae_encoder_forward.14} parent=5 // pred_fallthru
      _
    %p161 = scmp.le.s32.totalorder 1, %s10
    %p162 = scmp.lt.s32.totalorder %s10, 5
    %p163 = pnand %p161, %p162
    %p164 = pneg %p163
    // Predicated region
    $region33: #{mae_encoder_forward.14} parent=5 // pred_check
      _
    $region34: #{mae_encoder_forward.14} parent=5 // pred_check_branch
      %166 = sbr.rel (%p163) target = $region36
    $region35: #{mae_encoder_forward.14} parent=5 // pred_region
      %s167 = ssub.s32 %s10, 1
      %p168 = scmp.lt.s32.totalorder %s15, 3
      %s169 = scalar_select %p168, %s15, 3
      %s170 = smul.addr %s169, 8
      %s171 = smul.addr %s170, 8
      %s172 = scalar_lea.vmem %s0, %s171
      %p173 = pneg %p36
      %p174 = pneg %p33
      %p175 = pneg %p57
      %p176 = pneg %p54
      %p177 = pneg %p78
      %p178 = pneg %p75
      %p179 = pneg %p99
      %p180 = pneg %p96
      %p181 = pneg %p125
      %p182 = pneg %p122
      %p183 = scmp.lt.s32.totalorder %s15, 3
      %s184 = scalar_select %p183, %s15, 3
      %s185 = smul.addr %s184, 8
      %s186 = smul.addr %s185, 8
      %s187 = scalar_lea.vmem %s4, %s186
      %p188 = scmp.lt.s32.totalorder %s15, 3
      %s189 = scalar_select %p188, %s15, 3
      %s190 = smul.addr %s189, 8
      %s191 = smul.addr %s190, 8
      %s192 = scalar_lea.vmem %s0, %s191
      %p193 = scmp.lt.s32.totalorder %s15, 3
      %s194 = scalar_select %p193, %s15, 3
      %s195 = smul.addr %s194, 8
      %s196 = smul.addr %s195, 8
      %s197 = scalar_lea.vmem %s4, %s196
      %v199 = vld [vmem:[%s192] sm:$0xff]
      %v200 = vld [vmem:[%s192 + $0x8] sm:$0xff]
      %v201 = vld [vmem:[%s192 + $0x10] sm:$0xff]
      %v202 = vld [vmem:[%s192 + $0x18] sm:$0xff]
      %v203 = vld [vmem:[%s192 + $0x20] sm:$0xff]
      %v204 = vld [vmem:[%s192 + $0x28] sm:$0xff]
      %v205 = vld [vmem:[%s192 + $0x30] sm:$0xff]
      %v206 = vld [vmem:[%s192 + $0x38] sm:$0xff]
      %v207 = vpack.c.bf16 %v200, %v199
      %v208 = vpack.c.bf16 %v202, %v201
      %v209 = vpack.c.bf16 %v204, %v203
      %v210 = vpack.c.bf16 %v206, %v205
      %v211 = vld [vmem:[%s1] sm:$0xf]
      %v212 = vld [vmem:[%s1 + $0x4] sm:$0x3]
      %v213 = vld [vmem:[%s2] sm:$0x1]
      %v215 = vlaneseq
      %v216 = vshrl.u32 %v215, 7
      %v217 = vsub.s32 0, %v216
      %v218 = vrot.slane %v213, %v217
      %v222 = vunpack.c.l.b16 %v211
      %v223 = vunpack.c.l.b16 %v212
      %v224 = vpack.c.b16 %v223, %v222
      %vm225 = vcmask 97280
      %v227 = vsel %vm225, %v207, 0
      %v230 = vsel %vm225, %v208, 0
      %v233 = vsel %vm225, %v209, 0
      %v236 = vsel %vm225, %v210, 0
      %vm238 = vcmask 1045504
      %v240 = vsel %vm238, %v224, 0
      %242 = vmatprep.subr.bf16.mxu0 0
      %243 = vmatpush1.bf16.msra.mxu0 %v240
      %244 = vmatprep.subr.bf16.mxu0 0
      %245 = vmatpush1.bf16.msra.mxu0 0
      %246 = vmatprep.subr.bf16.mxu0 0
      %247 = vmatpush1.bf16.msra.mxu0 0
      %248 = vmatprep.subr.bf16.mxu0 0
      %249 = vmatpush1.bf16.msra.mxu0 0
      %250 = vmatprep.subr.bf16.mxu0 0
      %251 = vmatpush1.bf16.msra.mxu0 0
      %252 = vmatprep.subr.bf16.mxu0 0
      %253 = vmatpush1.bf16.msra.mxu0 0
      %254 = vmatprep.subr.bf16.mxu0 0
      %255 = vmatpush1.bf16.msra.mxu0 0
      %256 = vmatprep.subr.bf16.mxu0 0
      %257 = vmatpush1.bf16.msra.mxu0 0
      %258 = vmatprep.subr.bf16.mxu0 0
      %259 = vmatpush1.bf16.msra.mxu0 0
      %260 = vmatprep.subr.bf16.mxu0 0
      %261 = vmatpush1.bf16.msra.mxu0 0
      %262 = vmatprep.subr.bf16.mxu0 0
      %263 = vmatpush1.bf16.msra.mxu0 0
      %264 = vmatprep.subr.bf16.mxu0 0
      %265 = vmatpush1.bf16.msra.mxu0 0
      %266 = vmatprep.subr.bf16.mxu0 0
      %267 = vmatpush1.bf16.msra.mxu0 0
      %268 = vmatprep.subr.bf16.mxu0 0
      %269 = vmatpush1.bf16.msra.mxu0 0
      %270 = vmatprep.subr.bf16.mxu0 0
      %271 = vmatpush1.bf16.msra.mxu0 0
      %272 = vmatprep.subr.bf16.mxu0 0
      %273 = vmatpush1.bf16.msra.mxu0 0
      %274 = vmatprep.mubr.bf16.mxu0 0
      %275 = vmatmul.mubr.bf16.gmra.mrb[0].mxu0 %v227
      %v276 = vpop.f32.mrb[0].mxu0
      %v277 = vadd.f32 %v218, %v276
      %v278 = vpop.f32.mrb[0].mxu0
      %v279 = vpop.f32.mrb[0].mxu0
      %v280 = vadd.f32 %v218, %v279
      %v281 = vpop.f32.mrb[0].mxu0
      %282 = vmatprep.mubr.bf16.mxu0 0
      %283 = vmatmul.mubr.bf16.gmra.mrb[0].mxu0 %v230
      %v284 = vpop.f32.mrb[0].mxu0
      %v285 = vadd.f32 %v218, %v284
      %v286 = vpop.f32.mrb[0].mxu0
      %v287 = vpop.f32.mrb[0].mxu0
      %v288 = vadd.f32 %v218, %v287
      %v289 = vpop.f32.mrb[0].mxu0
      %290 = vmatprep.mubr.bf16.mxu0 0
      %291 = vmatmul.mubr.bf16.gmra.mrb[0].mxu0 %v233
      %v292 = vpop.f32.mrb[0].mxu0
      %v293 = vadd.f32 %v218, %v292
      %v294 = vpop.f32.mrb[0].mxu0
      %v295 = vpop.f32.mrb[0].mxu0
      %v296 = vadd.f32 %v218, %v295
      %v297 = vpop.f32.mrb[0].mxu0
      %298 = vmatprep.mubr.bf16.mxu0 0
      %299 = vmatmul.mubr.bf16.gmra.mrb[0].mxu0 %v236
      %v300 = vpop.f32.mrb[0].mxu0
      %v301 = vadd.f32 %v218, %v300
      %v302 = vpop.f32.mrb[0].mxu0
      %v303 = vpop.f32.mrb[0].mxu0
      %v304 = vadd.f32 %v218, %v303
      %v305 = vpop.f32.mrb[0].mxu0
      %306 = vdwg.mxu0
      %v307 = vld [vmem:[%s3] sm:$0xff]
      %v308 = vld [vmem:[%s3 + $0x8] sm:$0xff]
      %v309 = vld [vmem:[%s3 + $0x10] sm:$0xff]
      %v310 = vld [vmem:[%s3 + $0x18] sm:$0xff]
      %v311 = vld [vmem:[%s3 + $0x20] sm:$0xff]
      %v312 = vld [vmem:[%s3 + $0x28] sm:$0xff]
      %v313 = vld [vmem:[%s3 + $0x30] sm:$0xff]
      %v314 = vld [vmem:[%s3 + $0x38] sm:$0xff]
      %v315 = vadd.f32 %v277, %v307
      %v316 = vadd.f32 %v280, %v308
      %v317 = vadd.f32 %v285, %v309
      %v318 = vadd.f32 %v288, %v310
      %v319 = vadd.f32 %v293, %v311
      %v320 = vadd.f32 %v296, %v312
      %v321 = vadd.f32 %v301, %v313
      %v322 = vadd.f32 %v304, %v314
      %vm323 = vcmask 261120
      %324 = vst.msk [vmem:[%s197] sm:$0xff] %vm323, %v315
      %325 = vst.msk [vmem:[%s197 + $0x8] sm:$0xff] %vm323, %v316
      %326 = vst.msk [vmem:[%s197 + $0x10] sm:$0xff] %vm323, %v317
      %327 = vst.msk [vmem:[%s197 + $0x18] sm:$0xff] %vm323, %v318
      %328 = vst.msk [vmem:[%s197 + $0x20] sm:$0xff] %vm323, %v319
      %329 = vst.msk [vmem:[%s197 + $0x28] sm:$0xff] %vm323, %v320
      %330 = vst.msk [vmem:[%s197 + $0x30] sm:$0xff] %vm323, %v321
      %331 = vst.msk [vmem:[%s197 + $0x38] sm:$0xff] %vm323, %v322
      %p332 = scmp.lt.s32.totalorder %s15, 3
      %s333 = scalar_select %p332, %s15, 3
      %s334 = smul.addr %s333, 8
      %s335 = smul.addr %s334, 8
      %s336 = scalar_lea.vmem %s4, %s335
      // Predicated region
      $region37: #{mae_encoder_forward.14} parent=35 // pred_check
        %p337 = pneg %p122
      $region38: #{mae_encoder_forward.14} parent=35 // pred_check_branch
        %339 = sbr.rel (%p337) target = $region40
      $region39: #{mae_encoder_forward.14} parent=35 // pred_region
        _
      $region40: #{mae_encoder_forward.14} parent=35 // pred_fallthru
        _
    $region36: #{mae_encoder_forward.14} parent=5 // pred_fallthru
      _
    %p340 = scmp.le.s32.totalorder 2, %s10
    // Predicated region
    $region41: #{mae_encoder_forward.14} parent=5 // pred_check
      %p341 = pneg %p340
    $region42: #{mae_encoder_forward.14} parent=5 // pred_check_branch
      %343 = sbr.rel (%p341) target = $region44
    $region43: #{mae_encoder_forward.14} parent=5 // pred_region
      %s344 = ssub.s32 %s10, 2
      // Predicated region
      $region45: #{mae_encoder_forward.14} parent=43 // pred_check
        %p345 = pneg %p128
      $region46: #{mae_encoder_forward.14} parent=43 // pred_check_branch
        %347 = sbr.rel (%p345) target = $region48
      $region47: #{mae_encoder_forward.14} parent=43 // pred_region
        %p348 = scmp.lt.s32.totalorder %s16, 3
        %s349 = scalar_select %p348, %s16, 3
        %s350 = smul.addr %s349, 8
        %s351 = smul.addr %s350, 8
        %s352 = scalar_lea.vmem %s4, %s351
      $region48: #{mae_encoder_forward.14} parent=43 // pred_fallthru
        _
    $region44: #{mae_encoder_forward.14} parent=5 // pred_fallthru
      _
  $region6: #{mae_encoder_forward.14} parent=0 // loop_footer
    %s14 = sadd.s32 1, %s10
  $region7: #{mae_encoder_forward.14} parent=0 // loop_footer_branch
    %9 = sbr.rel target = $region3
  $region8: #{mae_encoder_forward.14} parent=0 // loop_exit
    _

// kernel: mae_encoder_forward.15
$region0: #{mae_encoder_forward.15}
  #allocation0 [shape = 'u32[]', space=smem, size = 0x4, offset = 0x4, fixed_abs, tag = 'smem constant byte address 0x4 - core index']
  #allocation1 [shape = 'u32[144,128]{1,0:T(1,128)}', space=vmem, size = 0x12000, scoped, tag = 'internal scratch']
  %s0 = inlined_call_operand.vmem [shape: f32[66,32], index: 0, kind: input, shape index: {}]
  %s1 = inlined_call_operand.vmem [shape: f32[1,32], index: 1, kind: input, shape index: {}]
  %s2 = inlined_call_operand.vmem [shape: f32[1,32], index: 2, kind: input, shape index: {}]
  %s3 = inlined_call_operand.vmem [shape: bf16[32,96], index: 3, kind: input, shape index: {}]
  %s4 = inlined_call_operand.vmem [shape: f32[1,96], index: 4, kind: input, shape index: {}]
  %s5 = inlined_call_operand.vmem [shape: f32[66,96], index: 5, kind: output, shape index: {}]
  %s6 = sld [smem:[#allocation0]]
  $region30: #{mae_encoder_forward.15} parent=0
    _
  %s8 = ssub.s32 1, %s6
  %s9 = scalar_select 0, %s8, %s6
  // Predicated region
  $region2: #{mae_encoder_forward.15} parent=0 // pred_check
    _
  $region3: #{mae_encoder_forward.15} parent=0 // pred_check_branch
    %11 = sbr.rel (0) target = $region5
  $region4: #{mae_encoder_forward.15} parent=0 // pred_region
    _
  $region5: #{mae_encoder_forward.15} parent=0 // pred_fallthru
    _
  // Predicated region
  $region6: #{mae_encoder_forward.15} parent=0 // pred_check
    _
  $region7: #{mae_encoder_forward.15} parent=0 // pred_check_branch
    %13 = sbr.rel (0) target = $region9
  $region8: #{mae_encoder_forward.15} parent=0 // pred_region
    _
  $region9: #{mae_encoder_forward.15} parent=0 // pred_fallthru
    _
  // Predicated region
  $region10: #{mae_encoder_forward.15} parent=0 // pred_check
    _
  $region11: #{mae_encoder_forward.15} parent=0 // pred_check_branch
    %15 = sbr.rel (0) target = $region13
  $region12: #{mae_encoder_forward.15} parent=0 // pred_region
    _
  $region13: #{mae_encoder_forward.15} parent=0 // pred_fallthru
    _
  // Predicated region
  $region14: #{mae_encoder_forward.15} parent=0 // pred_check
    _
  $region15: #{mae_encoder_forward.15} parent=0 // pred_check_branch
    %17 = sbr.rel (0) target = $region17
  $region16: #{mae_encoder_forward.15} parent=0 // pred_region
    _
  $region17: #{mae_encoder_forward.15} parent=0 // pred_fallthru
    _
  // Predicated region
  $region18: #{mae_encoder_forward.15} parent=0 // pred_check
    _
  $region19: #{mae_encoder_forward.15} parent=0 // pred_check_branch
    %19 = sbr.rel (0) target = $region21
  $region20: #{mae_encoder_forward.15} parent=0 // pred_region
    _
  $region21: #{mae_encoder_forward.15} parent=0 // pred_fallthru
    _
  %v21 = vld [vmem:[%s0] sm:$0xff]
  %v22 = vld [vmem:[%s0 + $0x8] sm:$0xff]
  %v23 = vld [vmem:[%s0 + $0x10] sm:$0xff]
  %v24 = vld [vmem:[%s0 + $0x18] sm:$0xff]
  %v25 = vld [vmem:[%s0 + $0x20] sm:$0xff]
  %v26 = vld [vmem:[%s0 + $0x28] sm:$0xff]
  %v27 = vld [vmem:[%s0 + $0x30] sm:$0xff]
  %v28 = vld [vmem:[%s0 + $0x38] sm:$0xff]
  %v29 = vld [vmem:[%s0 + $0x40] sm:$0x3]
  %vm30 = vcmask 261120
  %v31 = vsel %vm30, %v21, 0.0
  %32 = vadd.xlane.f32.xlu0 %v31
  %v33 = vpop.xlane.xlu0 %32
  %v34 = vsel %vm30, %v22, 0.0
  %35 = vadd.xlane.f32.xlu0 %v34
  %v36 = vpop.xlane.xlu0 %35
  %v37 = vsel %vm30, %v23, 0.0
  %38 = vadd.xlane.f32.xlu0 %v37
  %v39 = vpop.xlane.xlu0 %38
  %v40 = vsel %vm30, %v24, 0.0
  %41 = vadd.xlane.f32.xlu0 %v40
  %v42 = vpop.xlane.xlu0 %41
  %v43 = vsel %vm30, %v25, 0.0
  %44 = vadd.xlane.f32.xlu0 %v43
  %v45 = vpop.xlane.xlu0 %44
  %v46 = vsel %vm30, %v26, 0.0
  %47 = vadd.xlane.f32.xlu0 %v46
  %v48 = vpop.xlane.xlu0 %47
  %v49 = vsel %vm30, %v27, 0.0
  %50 = vadd.xlane.f32.xlu0 %v49
  %v51 = vpop.xlane.xlu0 %50
  %v52 = vsel %vm30, %v28, 0.0
  %53 = vadd.xlane.f32.xlu0 %v52
  %v54 = vpop.xlane.xlu0 %53
  %vm55 = vcmask 254976
  %v56 = vsel %vm55, %v29, 0.0
  %57 = vadd.xlane.f32.xlu0 %v56
  %v58 = vpop.xlane.xlu0 %57
  %v59 = vrcp.pop 32.0
  %v60 = vmul.f32 %v33, %v59
  %v61 = vmul.f32 %v36, %v59
  %v62 = vmul.f32 %v39, %v59
  %v63 = vmul.f32 %v42, %v59
  %v64 = vmul.f32 %v45, %v59
  %v65 = vmul.f32 %v48, %v59
  %v66 = vmul.f32 %v51, %v59
  %v67 = vmul.f32 %v54, %v59
  %v68 = vmul.f32 %v58, %v59
  %v69 = vsub.f32 %v21, %v60
  %v70 = vsub.f32 %v22, %v61
  %v71 = vsub.f32 %v23, %v62
  %v72 = vsub.f32 %v24, %v63
  %v73 = vsub.f32 %v25, %v64
  %v74 = vsub.f32 %v26, %v65
  %v75 = vsub.f32 %v27, %v66
  %v76 = vsub.f32 %v28, %v67
  %v77 = vsub.f32 %v29, %v68
  %v78 = vmul.f32 %v69, %v69
  %v79 = vmul.f32 %v70, %v70
  %v80 = vmul.f32 %v71, %v71
  %v81 = vmul.f32 %v72, %v72
  %v82 = vmul.f32 %v73, %v73
  %v83 = vmul.f32 %v74, %v74
  %v84 = vmul.f32 %v75, %v75
  %v85 = vmul.f32 %v76, %v76
  %v86 = vmul.f32 %v77, %v77
  %v87 = vsel %vm30, %v78, 0.0
  %88 = vadd.xlane.f32.xlu0 %v87
  %v89 = vpop.xlane.xlu0 %88
  %v90 = vsel %vm30, %v79, 0.0
  %91 = vadd.xlane.f32.xlu0 %v90
  %v92 = vpop.xlane.xlu0 %91
  %v93 = vsel %vm30, %v80, 0.0
  %94 = vadd.xlane.f32.xlu0 %v93
  %v95 = vpop.xlane.xlu0 %94
  %v96 = vsel %vm30, %v81, 0.0
  %97 = vadd.xlane.f32.xlu0 %v96
  %v98 = vpop.xlane.xlu0 %97
  %v99 = vsel %vm30, %v82, 0.0
  %100 = vadd.xlane.f32.xlu0 %v99
  %v101 = vpop.xlane.xlu0 %100
  %v102 = vsel %vm30, %v83, 0.0
  %103 = vadd.xlane.f32.xlu0 %v102
  %v104 = vpop.xlane.xlu0 %103
  %v105 = vsel %vm30, %v84, 0.0
  %106 = vadd.xlane.f32.xlu0 %v105
  %v107 = vpop.xlane.xlu0 %106
  %v108 = vsel %vm30, %v85, 0.0
  %109 = vadd.xlane.f32.xlu0 %v108
  %v110 = vpop.xlane.xlu0 %109
  %v111 = vsel %vm55, %v86, 0.0
  %112 = vadd.xlane.f32.xlu0 %v111
  %v113 = vpop.xlane.xlu0 %112
  %v114 = vmul.f32 %v89, %v59
  %v115 = vmul.f32 %v92, %v59
  %v116 = vmul.f32 %v95, %v59
  %v117 = vmul.f32 %v98, %v59
  %v118 = vmul.f32 %v101, %v59
  %v119 = vmul.f32 %v104, %v59
  %v120 = vmul.f32 %v107, %v59
  %v121 = vmul.f32 %v110, %v59
  %v122 = vmul.f32 %v113, %v59
  %v123 = vadd.f32 %v114, 1e-05
  %v124 = vadd.f32 %v115, 1e-05
  %v125 = vadd.f32 %v116, 1e-05
  %v126 = vadd.f32 %v117, 1e-05
  %v127 = vadd.f32 %v118, 1e-05
  %v128 = vadd.f32 %v119, 1e-05
  %v129 = vadd.f32 %v120, 1e-05
  %v130 = vadd.f32 %v121, 1e-05
  %v131 = vadd.f32 %v122, 1e-05
  %v132 = vrsqrt.pop %v123
  %v133 = vrsqrt.pop %v124
  %v134 = vrsqrt.pop %v125
  %v135 = vrsqrt.pop %v126
  %v136 = vrsqrt.pop %v127
  %v137 = vrsqrt.pop %v128
  %v138 = vrsqrt.pop %v129
  %v139 = vrsqrt.pop %v130
  %v140 = vrsqrt.pop %v131
  %v141 = vmul.f32 %v69, %v132
  %v142 = vmul.f32 %v70, %v133
  %v143 = vmul.f32 %v71, %v134
  %v144 = vmul.f32 %v72, %v135
  %v145 = vmul.f32 %v73, %v136
  %v146 = vmul.f32 %v74, %v137
  %v147 = vmul.f32 %v75, %v138
  %v148 = vmul.f32 %v76, %v139
  %v149 = vmul.f32 %v77, %v140
  %v150 = vld [vmem:[%s1] sm:$0x1]
  %v152 = vlaneseq
  %v153 = vshrl.u32 %v152, 7
  %v154 = vsub.s32 0, %v153
  %v155 = vrot.slane %v150, %v154
  %v157 = vmul.f32 %v141, %v155
  %v158 = vmul.f32 %v142, %v155
  %v159 = vmul.f32 %v143, %v155
  %v160 = vmul.f32 %v144, %v155
  %v161 = vmul.f32 %v145, %v155
  %v162 = vmul.f32 %v146, %v155
  %v163 = vmul.f32 %v147, %v155
  %v164 = vmul.f32 %v148, %v155
  %v165 = vmul.f32 %v149, %v155
  %v166 = vld [vmem:[%s2] sm:$0x1]
  %v168 = vlaneseq
  %v169 = vshrl.u32 %v168, 7
  %v170 = vsub.s32 0, %v169
  %v171 = vrot.slane %v166, %v170
  %v173 = vadd.f32 %v157, %v171
  %v174 = vadd.f32 %v158, %v171
  %v175 = vadd.f32 %v159, %v171
  %v176 = vadd.f32 %v160, %v171
  %v177 = vadd.f32 %v161, %v171
  %v178 = vadd.f32 %v162, %v171
  %v179 = vadd.f32 %v163, %v171
  %v180 = vadd.f32 %v164, %v171
  %v181 = vadd.f32 %v165, %v171
  %v182 = vpack.c.bf16 %v174, %v173
  %v183 = vpack.c.bf16 %v176, %v175
  %v184 = vpack.c.bf16 %v178, %v177
  %v185 = vpack.c.bf16 %v180, %v179
  %v186 = vpack.c.bf16 %v181, %v181
  %v187 = vld [vmem:[%s3] sm:$0xf]
  %v188 = vld [vmem:[%s3 + $0x4] sm:$0xf]
  %v189 = vld [vmem:[%s3 + $0x8] sm:$0xf]
  %v190 = vld [vmem:[%s3 + $0xc] sm:$0xf]
  %v191 = vld [vmem:[%s4] sm:$0x1]
  %v193 = vlaneseq
  %v194 = vshrl.u32 %v193, 7
  %v195 = vsub.s32 0, %v194
  %v196 = vrot.slane %v191, %v195
  %v202 = vunpack.c.l.b16 %v187
  %v203 = vunpack.c.l.b16 %v188
  %v204 = vunpack.c.l.b16 %v189
  %v205 = vunpack.c.l.b16 %v190
  %v206 = vpack.c.b16 %v203, %v202
  %v207 = vpack.c.b16 %v205, %v204
  %v211 = vsel %vm30, %v182, 0
  %v214 = vsel %vm30, %v183, 0
  %v217 = vsel %vm30, %v184, 0
  %v220 = vsel %vm30, %v185, 0
  %v223 = vsel %vm30, %v186, 0
  %225 = vmatprep.subr.bf16.mxu0 0
  %226 = vmatpush1.bf16.msra.mxu0 %v206
  %227 = vmatprep.subr.bf16.mxu0 0
  %228 = vmatpush1.bf16.msra.mxu0 %v207
  %229 = vmatprep.subr.bf16.mxu0 0
  %230 = vmatpush1.bf16.msra.mxu0 0
  %231 = vmatprep.subr.bf16.mxu0 0
  %232 = vmatpush1.bf16.msra.mxu0 0
  %233 = vmatprep.subr.bf16.mxu0 0
  %234 = vmatpush1.bf16.msra.mxu0 0
  %235 = vmatprep.subr.bf16.mxu0 0
  %236 = vmatpush1.bf16.msra.mxu0 0
  %237 = vmatprep.subr.bf16.mxu0 0
  %238 = vmatpush1.bf16.msra.mxu0 0
  %239 = vmatprep.subr.bf16.mxu0 0
  %240 = vmatpush1.bf16.msra.mxu0 0
  %241 = vmatprep.subr.bf16.mxu0 0
  %242 = vmatpush1.bf16.msra.mxu0 0
  %243 = vmatprep.subr.bf16.mxu0 0
  %244 = vmatpush1.bf16.msra.mxu0 0
  %245 = vmatprep.subr.bf16.mxu0 0
  %246 = vmatpush1.bf16.msra.mxu0 0
  %247 = vmatprep.subr.bf16.mxu0 0
  %248 = vmatpush1.bf16.msra.mxu0 0
  %249 = vmatprep.subr.bf16.mxu0 0
  %250 = vmatpush1.bf16.msra.mxu0 0
  %251 = vmatprep.subr.bf16.mxu0 0
  %252 = vmatpush1.bf16.msra.mxu0 0
  %253 = vmatprep.subr.bf16.mxu0 0
  %254 = vmatpush1.bf16.msra.mxu0 0
  %255 = vmatprep.subr.bf16.mxu0 0
  %256 = vmatpush1.bf16.msra.mxu0 0
  %257 = vmatprep.mubr.bf16.mxu0 0
  %258 = vmatmul.mubr.bf16.gmra.mrb[0].mxu0 %v211
  %v259 = vpop.f32.mrb[0].mxu0
  %v260 = vadd.f32 %v196, %v259
  %v261 = vpop.f32.mrb[0].mxu0
  %v262 = vpop.f32.mrb[0].mxu0
  %v263 = vadd.f32 %v196, %v262
  %v264 = vpop.f32.mrb[0].mxu0
  %265 = vmatprep.mubr.bf16.mxu0 0
  %266 = vmatmul.mubr.bf16.gmra.mrb[0].mxu0 %v214
  %v267 = vpop.f32.mrb[0].mxu0
  %v268 = vadd.f32 %v196, %v267
  %v269 = vpop.f32.mrb[0].mxu0
  %v270 = vpop.f32.mrb[0].mxu0
  %v271 = vadd.f32 %v196, %v270
  %v272 = vpop.f32.mrb[0].mxu0
  %273 = vmatprep.mubr.bf16.mxu0 0
  %274 = vmatmul.mubr.bf16.gmra.mrb[0].mxu0 %v217
  %v275 = vpop.f32.mrb[0].mxu0
  %v276 = vadd.f32 %v196, %v275
  %v277 = vpop.f32.mrb[0].mxu0
  %v278 = vpop.f32.mrb[0].mxu0
  %v279 = vadd.f32 %v196, %v278
  %v280 = vpop.f32.mrb[0].mxu0
  %281 = vmatprep.mubr.bf16.mxu0 0
  %282 = vmatmul.mubr.bf16.gmra.mrb[0].mxu0 %v220
  %v283 = vpop.f32.mrb[0].mxu0
  %v284 = vadd.f32 %v196, %v283
  %v285 = vpop.f32.mrb[0].mxu0
  %v286 = vpop.f32.mrb[0].mxu0
  %v287 = vadd.f32 %v196, %v286
  %v288 = vpop.f32.mrb[0].mxu0
  %289 = vmatprep.mubr.bf16.mxu0 0
  %290 = vmatmul.mubr.bf16.gmra.mrb[0].mxu0 %v223
  %v291 = vpop.f32.mrb[0].mxu0
  %v292 = vadd.f32 %v196, %v291
  %v293 = vpop.f32.mrb[0].mxu0
  %v294 = vpop.f32.mrb[0].mxu0
  %v295 = vpop.f32.mrb[0].mxu0
  %296 = vdwg.mxu0
  %vm297 = vcmask 785408
  %298 = vst.msk [vmem:[%s5] sm:$0xff] %vm297, %v260
  %299 = vst.msk [vmem:[%s5 + $0x8] sm:$0xff] %vm297, %v263
  %300 = vst.msk [vmem:[%s5 + $0x10] sm:$0xff] %vm297, %v268
  %301 = vst.msk [vmem:[%s5 + $0x18] sm:$0xff] %vm297, %v271
  %302 = vst.msk [vmem:[%s5 + $0x20] sm:$0xff] %vm297, %v276
  %303 = vst.msk [vmem:[%s5 + $0x28] sm:$0xff] %vm297, %v279
  %304 = vst.msk [vmem:[%s5 + $0x30] sm:$0xff] %vm297, %v284
  %305 = vst.msk [vmem:[%s5 + $0x38] sm:$0xff] %vm297, %v287
  %vm306 = vcmask 779264
  %307 = vst.msk [vmem:[%s5 + $0x40] sm:$0x3] %vm306, %v292
  // Predicated region
  $region22: #{mae_encoder_forward.15} parent=0 // pred_check
    _
  $region23: #{mae_encoder_forward.15} parent=0 // pred_check_branch
    %309 = sbr.rel (0) target = $region25
  $region24: #{mae_encoder_forward.15} parent=0 // pred_region
    _
  $region25: #{mae_encoder_forward.15} parent=0 // pred_fallthru
    _
  // Predicated region
  $region26: #{mae_encoder_forward.15} parent=0 // pred_check
    _
  $region27: #{mae_encoder_forward.15} parent=0 // pred_check_branch
    %311 = sbr.rel (0) target = $region29
  $region28: #{mae_encoder_forward.15} parent=0 // pred_region
    _
  $region29: #{mae_encoder_forward.15} parent=0 // pred_fallthru
    _

// kernel: mae_encoder_forward.16
$region0: #{mae_encoder_forward.16}
  #allocation0 [shape = 'u32[]', space=smem, size = 0x4, offset = 0x4, fixed_abs, tag = 'smem constant byte address 0x4 - core index']
  #allocation1 [shape = 'u32[144,128]{1,0:T(1,128)}', space=vmem, size = 0x12000, scoped, tag = 'internal scratch']
  %s0 = inlined_call_operand.vmem [shape: f32[2,2,33,16], index: 0, kind: input, shape index: {}]
  %s1 = inlined_call_operand.vmem [shape: f32[2,2,33,16], index: 1, kind: input, shape index: {}]
  %s2 = inlined_call_operand.vmem [shape: f32[2,2,33,16], index: 2, kind: input, shape index: {}]
  %s3 = inlined_call_operand.vmem [shape: f32[2,2,33,16], index: 3, kind: output, shape index: {}]
  %s4 = sld [smem:[#allocation0]]
  $region45: #{mae_encoder_forward.16} parent=0
    _
  %s6 = ssub.s32 1, %s4
  %s7 = scalar_select 0, %s6, %s4
  loop: start=0, step=1, limit=4
  $region2: #{mae_encoder_forward.16} parent=0 // loop_pre_header
    _
  $region3: #{mae_encoder_forward.16} parent=0 // loop_header
    %s9 = sphi 0, %s13
    %p10 = scmp.ge.s32.totalorder %s9, 4
    %s19 = sphi 0, %s21
    %s22 = sphi 0, %s19
    %s23 = sphi 0, %s22
    %s39 = sphi 0, %s23
    %s45 = sphi 0, %s47
    %s48 = sphi 0, %s45
    %s49 = sphi 0, %s48
    %s65 = sphi 0, %s49
    %s71 = sphi 0, %s73
    %s74 = sphi 0, %s71
    %s75 = sphi 0, %s74
    %s91 = sphi 0, %s75
    %s97 = sphi 0, %s99
    %s100 = sphi 0, %s97
    %s101 = sphi 0, %s100
    %s117 = sphi 0, %s101
  $region4: #{mae_encoder_forward.16} parent=0 // loop_header_branch
    %12 = sbr.rel (%p10) target = $region8
  $region5: #{mae_encoder_forward.16} parent=0 // loop_body
    %s14 = ssub.s32 %s9, 1
    %s15 = ssub.s32 %s9, 2
    %s16 = sadd.s32 %s9, 1
    %s17 = ssub.s32 %s9, %s16
    %p18 = scmp.eq.s32.totalorder %s17, 0
    %s20 = sadd.s32 %s19, 1
    %s21 = scalar_select %p18, %s19, %s20
    %p24 = pneg %p18
    %p25 = scmp.eq.s32.totalorder %s9, 1
    %p26 = por %p24, %p25
    %p27 = scmp.ne.s32.totalorder %s19, %s22
    %p28 = scmp.eq.s32.totalorder %s9, 0
    %p29 = por %p27, %p28
    %p30 = scmp.ne.s32.totalorder %s19, %s22
    %p31 = scmp.eq.s32.totalorder %s14, 1
    %p32 = por %p30, %p31
    %p33 = scmp.ne.s32.totalorder %s22, %s23
    %p34 = scmp.eq.s32.totalorder %s14, 0
    %p35 = por %p33, %p34
    %p36 = scmp.ne.s32.totalorder %s22, %s23
    %p37 = scmp.eq.s32.totalorder %s15, 1
    %p38 = por %p36, %p37
    %p40 = scmp.ne.s32.totalorder %s23, %s39
    %p41 = scmp.eq.s32.totalorder %s15, 0
    %p42 = por %p40, %p41
    %s43 = ssub.s32 %s9, %s16
    %p44 = scmp.eq.s32.totalorder %s43, 0
    %s46 = sadd.s32 %s45, 1
    %s47 = scalar_select %p44, %s45, %s46
    %p50 = pneg %p44
    %p51 = scmp.eq.s32.totalorder %s9, 1
    %p52 = por %p50, %p51
    %p53 = scmp.ne.s32.totalorder %s45, %s48
    %p54 = scmp.eq.s32.totalorder %s9, 0
    %p55 = por %p53, %p54
    %p56 = scmp.ne.s32.totalorder %s45, %s48
    %p57 = scmp.eq.s32.totalorder %s14, 1
    %p58 = por %p56, %p57
    %p59 = scmp.ne.s32.totalorder %s48, %s49
    %p60 = scmp.eq.s32.totalorder %s14, 0
    %p61 = por %p59, %p60
    %p62 = scmp.ne.s32.totalorder %s48, %s49
    %p63 = scmp.eq.s32.totalorder %s15, 1
    %p64 = por %p62, %p63
    %p66 = scmp.ne.s32.totalorder %s49, %s65
    %p67 = scmp.eq.s32.totalorder %s15, 0
    %p68 = por %p66, %p67
    %s69 = ssub.s32 %s9, %s16
    %p70 = scmp.eq.s32.totalorder %s69, 0
    %s72 = sadd.s32 %s71, 1
    %s73 = scalar_select %p70, %s71, %s72
    %p76 = pneg %p70
    %p77 = scmp.eq.s32.totalorder %s9, 1
    %p78 = por %p76, %p77
    %p79 = scmp.ne.s32.totalorder %s71, %s74
    %p80 = scmp.eq.s32.totalorder %s9, 0
    %p81 = por %p79, %p80
    %p82 = scmp.ne.s32.totalorder %s71, %s74
    %p83 = scmp.eq.s32.totalorder %s14, 1
    %p84 = por %p82, %p83
    %p85 = scmp.ne.s32.totalorder %s74, %s75
    %p86 = scmp.eq.s32.totalorder %s14, 0
    %p87 = por %p85, %p86
    %p88 = scmp.ne.s32.totalorder %s74, %s75
    %p89 = scmp.eq.s32.totalorder %s15, 1
    %p90 = por %p88, %p89
    %p92 = scmp.ne.s32.totalorder %s75, %s91
    %p93 = scmp.eq.s32.totalorder %s15, 0
    %p94 = por %p92, %p93
    %s95 = ssub.s32 %s9, %s16
    %p96 = scmp.eq.s32.totalorder %s95, 0
    %s98 = sadd.s32 %s97, 1
    %s99 = scalar_select %p96, %s97, %s98
    %p102 = pneg %p96
    %p103 = scmp.eq.s32.totalorder %s9, 1
    %p104 = por %p102, %p103
    %p105 = scmp.ne.s32.totalorder %s97, %s100
    %p106 = scmp.eq.s32.totalorder %s9, 0
    %p107 = por %p105, %p106
    %p108 = scmp.ne.s32.totalorder %s97, %s100
    %p109 = scmp.eq.s32.totalorder %s14, 1
    %p110 = por %p108, %p109
    %p111 = scmp.ne.s32.totalorder %s100, %s101
    %p112 = scmp.eq.s32.totalorder %s14, 0
    %p113 = por %p111, %p112
    %p114 = scmp.ne.s32.totalorder %s100, %s101
    %p115 = scmp.eq.s32.totalorder %s15, 1
    %p116 = por %p114, %p115
    %p118 = scmp.ne.s32.totalorder %s101, %s117
    %p119 = scmp.eq.s32.totalorder %s15, 0
    %p120 = por %p118, %p119
    %p121 = scmp.le.s32.totalorder 1, %s9
    %p122 = scmp.lt.s32.totalorder %s9, 3
    %p123 = pnand %p121, %p122
    %p124 = pneg %p123
    // Predicated region
    $region9: #{mae_encoder_forward.16} parent=5 // pred_check
      _
    $region10: #{mae_encoder_forward.16} parent=5 // pred_check_branch
      %126 = sbr.rel (%p123) target = $region12
    $region11: #{mae_encoder_forward.16} parent=5 // pred_region
      %s127 = ssub.s32 %s9, 1
    $region12: #{mae_encoder_forward.16} parent=5 // pred_fallthru
      _
    %p128 = scmp.lt.s32.totalorder %s9, 2
    // Predicated region
    $region13: #{mae_encoder_forward.16} parent=5 // pred_check
      %p129 = pneg %p128
    $region14: #{mae_encoder_forward.16} parent=5 // pred_check_branch
      %131 = sbr.rel (%p129) target = $region16
    $region15: #{mae_encoder_forward.16} parent=5 // pred_region
      // Predicated region
      $region17: #{mae_encoder_forward.16} parent=15 // pred_check
        %p132 = pneg %p29
      $region18: #{mae_encoder_forward.16} parent=15 // pred_check_branch
        %134 = sbr.rel (%p132) target = $region20
      $region19: #{mae_encoder_forward.16} parent=15 // pred_region
        %p135 = scmp.lt.s32.totalorder %s9, 1
        %s136 = scalar_select %p135, %s9, 1
        %s137 = smul.addr %s136, 10
        %s138 = smul.addr %s137, 8
        %s139 = scalar_lea.vmem %s0, %s138
      $region20: #{mae_encoder_forward.16} parent=15 // pred_fallthru
        _
      // Predicated region
      $region21: #{mae_encoder_forward.16} parent=15 // pred_check
        %p140 = pneg %p55
      $region22: #{mae_encoder_forward.16} parent=15 // pred_check_branch
        %142 = sbr.rel (%p140) target = $region24
      $region23: #{mae_encoder_forward.16} parent=15 // pred_region
        %p143 = scmp.lt.s32.totalorder %s9, 1
        %s144 = scalar_select %p143, %s9, 1
        %s145 = smul.addr %s144, 10
        %s146 = smul.addr %s145, 8
        %s147 = scalar_lea.vmem %s1, %s146
      $region24: #{mae_encoder_forward.16} parent=15 // pred_fallthru
        _
      // Predicated region
      $region25: #{mae_encoder_forward.16} parent=15 // pred_check
        %p148 = pneg %p81
      $region26: #{mae_encoder_forward.16} parent=15 // pred_check_branch
        %150 = sbr.rel (%p148) target = $region28
      $region27: #{mae_encoder_forward.16} parent=15 // pred_region
        %p151 = scmp.lt.s32.totalorder %s9, 1
        %s152 = scalar_select %p151, %s9, 1
        %s153 = smul.addr %s152, 10
        %s154 = smul.addr %s153, 8
        %s155 = scalar_lea.vmem %s2, %s154
      $region28: #{mae_encoder_forward.16} parent=15 // pred_fallthru
        _
    $region16: #{mae_encoder_forward.16} parent=5 // pred_fallthru
      _
    %p156 = scmp.le.s32.totalorder 1, %s9
    %p157 = scmp.lt.s32.totalorder %s9, 3
    %p158 = pnand %p156, %p157
    %p159 = pneg %p158
    // Predicated region
    $region29: #{mae_encoder_forward.16} parent=5 // pred_check
      _
    $region30: #{mae_encoder_forward.16} parent=5 // pred_check_branch
      %161 = sbr.rel (%p158) target = $region32
    $region31: #{mae_encoder_forward.16} parent=5 // pred_region
      %s162 = ssub.s32 %s9, 1
      %p163 = scmp.lt.s32.totalorder %s14, 1
      %s164 = scalar_select %p163, %s14, 1
      %s165 = smul.addr %s164, 10
      %s166 = smul.addr %s165, 8
      %s167 = scalar_lea.vmem %s0, %s166
      %p168 = pneg %p35
      %p169 = pneg %p32
      %p170 = scmp.lt.s32.totalorder %s14, 1
      %s171 = scalar_select %p170, %s14, 1
      %s172 = smul.addr %s171, 10
      %s173 = smul.addr %s172, 8
      %s174 = scalar_lea.vmem %s1, %s173
      %p175 = pneg %p61
      %p176 = pneg %p58
      %p177 = scmp.lt.s32.totalorder %s14, 1
      %s178 = scalar_select %p177, %s14, 1
      %s179 = smul.addr %s178, 10
      %s180 = smul.addr %s179, 8
      %s181 = scalar_lea.vmem %s2, %s180
      %p182 = pneg %p87
      %p183 = pneg %p84
      %p184 = pneg %p113
      %p185 = pneg %p110
      %p186 = scmp.lt.s32.totalorder %s14, 1
      %s187 = scalar_select %p186, %s14, 1
      %s188 = smul.addr %s187, 10
      %s189 = smul.addr %s188, 8
      %s190 = scalar_lea.vmem %s3, %s189
      %p191 = scmp.lt.s32.totalorder %s14, 1
      %s192 = scalar_select %p191, %s14, 1
      %s193 = smul.addr %s192, 10
      %s194 = smul.addr %s193, 8
      %s195 = scalar_lea.vmem %s0, %s194
      %p196 = scmp.lt.s32.totalorder %s14, 1
      %s197 = scalar_select %p196, %s14, 1
      %s198 = smul.addr %s197, 10
      %s199 = smul.addr %s198, 8
      %s200 = scalar_lea.vmem %s1, %s199
      %p201 = scmp.lt.s32.totalorder %s14, 1
      %s202 = scalar_select %p201, %s14, 1
      %s203 = smul.addr %s202, 10
      %s204 = smul.addr %s203, 8
      %s205 = scalar_lea.vmem %s2, %s204
      %p206 = scmp.lt.s32.totalorder %s14, 1
      %s207 = scalar_select %p206, %s14, 1
      %s208 = smul.addr %s207, 10
      %s209 = smul.addr %s208, 8
      %s210 = scalar_lea.vmem %s3, %s209
      %v212 = vld [vmem:[%s195] sm:$0xff]
      %v213 = vld [vmem:[%s195 + $0x8] sm:$0xff]
      %v214 = vld [vmem:[%s195 + $0x10] sm:$0xff]
      %v215 = vld [vmem:[%s195 + $0x18] sm:$0xff]
      %v216 = vld [vmem:[%s195 + $0x20] sm:$0x1]
      %v217 = vld [vmem:[%s195 + $0x28] sm:$0xff]
      %v218 = vld [vmem:[%s195 + $0x30] sm:$0xff]
      %v219 = vld [vmem:[%s195 + $0x38] sm:$0xff]
      %v220 = vld [vmem:[%s195 + $0x40] sm:$0xff]
      %v221 = vld [vmem:[%s195 + $0x48] sm:$0x1]
      %v222 = vpack.c.bf16 %v213, %v212
      %v223 = vpack.c.bf16 %v215, %v214
      %v224 = vpack.c.bf16 %v216, %v216
      %v225 = vpack.c.bf16 %v218, %v217
      %v226 = vpack.c.bf16 %v220, %v219
      %v227 = vpack.c.bf16 %v221, %v221
      %v228 = vld [vmem:[%s200] sm:$0xff]
      %v229 = vld [vmem:[%s200 + $0x8] sm:$0xff]
      %v230 = vld [vmem:[%s200 + $0x10] sm:$0xff]
      %v231 = vld [vmem:[%s200 + $0x18] sm:$0xff]
      %v232 = vld [vmem:[%s200 + $0x20] sm:$0x1]
      %v233 = vld [vmem:[%s200 + $0x28] sm:$0xff]
      %v234 = vld [vmem:[%s200 + $0x30] sm:$0xff]
      %v235 = vld [vmem:[%s200 + $0x38] sm:$0xff]
      %v236 = vld [vmem:[%s200 + $0x40] sm:$0xff]
      %v237 = vld [vmem:[%s200 + $0x48] sm:$0x1]
      %v238 = vpack.c.bf16 %v229, %v228
      %v239 = vpack.c.bf16 %v231, %v230
      %v240 = vpack.c.bf16 %v232, %v232
      %v241 = vpack.c.bf16 %v234, %v233
      %v242 = vpack.c.bf16 %v236, %v235
      %v243 = vpack.c.bf16 %v237, %v237
      %v244 = vld [vmem:[%s205] sm:$0xff]
      %v245 = vld [vmem:[%s205 + $0x8] sm:$0xff]
      %v246 = vld [vmem:[%s205 + $0x10] sm:$0xff]
      %v247 = vld [vmem:[%s205 + $0x18] sm:$0xff]
      %v248 = vld [vmem:[%s205 + $0x20] sm:$0x1]
      %v249 = vld [vmem:[%s205 + $0x28] sm:$0xff]
      %v250 = vld [vmem:[%s205 + $0x30] sm:$0xff]
      %v251 = vld [vmem:[%s205 + $0x38] sm:$0xff]
      %v252 = vld [vmem:[%s205 + $0x40] sm:$0xff]
      %v253 = vld [vmem:[%s205 + $0x48] sm:$0x1]
      %v254 = vpack.c.bf16 %v245, %v244
      %v255 = vpack.c.bf16 %v247, %v246
      %v256 = vpack.c.bf16 %v248, %v248
      %v257 = vpack.c.bf16 %v250, %v249
      %v258 = vpack.c.bf16 %v252, %v251
      %v259 = vpack.c.bf16 %v253, %v253
      %vm260 = vcmask 130048
      %v262 = vsel %vm260, %v222, 0
      %v265 = vsel %vm260, %v223, 0
      %v268 = vsel %vm260, %v224, 0
      %v271 = vsel %vm260, %v238, 0
      %v274 = vsel %vm260, %v239, 0
      %v277 = vsel %vm260, %v240, 0
      %279 = vmatprep.subr.bf16.mxu0 0
      %280 = vmatpush1.bf16.xpose.msra.mxu0 %v271
      %281 = vmatprep.subr.bf16.mxu0 0
      %282 = vmatpush1.bf16.xpose.msra.mxu0 %v274
      %283 = vmatprep.subr.bf16.mxu0 0
      %284 = vmatpush1.bf16.xpose.msra.mxu0 %v277
      %285 = vmatprep.subr.bf16.mxu0 0
      %286 = vmatpush1.bf16.xpose.msra.mxu0 0
      %287 = vmatprep.subr.bf16.mxu0 0
      %288 = vmatpush1.bf16.xpose.msra.mxu0 0
      %289 = vmatprep.subr.bf16.mxu0 0
      %290 = vmatpush1.bf16.xpose.msra.mxu0 0
      %291 = vmatprep.subr.bf16.mxu0 0
      %292 = vmatpush1.bf16.xpose.msra.mxu0 0
      %293 = vmatprep.subr.bf16.mxu0 0
      %294 = vmatpush1.bf16.xpose.msra.mxu0 0
      %295 = vmatprep.subr.bf16.mxu0 0
      %296 = vmatpush1.bf16.xpose.msra.mxu0 0
      %297 = vmatprep.subr.bf16.mxu0 0
      %298 = vmatpush1.bf16.xpose.msra.mxu0 0
      %299 = vmatprep.subr.bf16.mxu0 0
      %300 = vmatpush1.bf16.xpose.msra.mxu0 0
      %301 = vmatprep.subr.bf16.mxu0 0
      %302 = vmatpush1.bf16.xpose.msra.mxu0 0
      %303 = vmatprep.subr.bf16.mxu0 0
      %304 = vmatpush1.bf16.xpose.msra.mxu0 0
      %305 = vmatprep.subr.bf16.mxu0 0
      %306 = vmatpush1.bf16.xpose.msra.mxu0 0
      %307 = vmatprep.subr.bf16.mxu0 0
      %308 = vmatpush1.bf16.xpose.msra.mxu0 0
      %309 = vmatprep.subr.bf16.mxu0 0
      %310 = vmatpush1.bf16.xpose.msra.mxu0 0
      %311 = vmatprep.mubr.bf16.mxu0 0
      %312 = vmatmul.mubr.bf16.gmra.mrb[0].mxu0 %v262
      %v313 = vpop.f32.mrb[0].mxu0
      %v314 = vadd.f32 0.0, %v313
      %v315 = vpop.f32.mrb[0].mxu0
      %v316 = vpop.f32.mrb[0].mxu0
      %v317 = vadd.f32 0.0, %v316
      %v318 = vpop.f32.mrb[0].mxu0
      %319 = vmatprep.mubr.bf16.mxu0 0
      %320 = vmatmul.mubr.bf16.gmra.mrb[0].mxu0 %v265
      %v321 = vpop.f32.mrb[0].mxu0
      %v322 = vadd.f32 0.0, %v321
      %v323 = vpop.f32.mrb[0].mxu0
      %v324 = vpop.f32.mrb[0].mxu0
      %v325 = vadd.f32 0.0, %v324
      %v326 = vpop.f32.mrb[0].mxu0
      %327 = vmatprep.mubr.bf16.mxu0 0
      %328 = vmatmul.mubr.bf16.gmra.mrb[0].mxu0 %v268
      %v329 = vpop.f32.mrb[0].mxu0
      %v330 = vadd.f32 0.0, %v329
      %v331 = vpop.f32.mrb[0].mxu0
      %v332 = vpop.f32.mrb[0].mxu0
      %v333 = vpop.f32.mrb[0].mxu0
      %334 = vdwg.mxu0
      %v336 = vsel %vm260, %v225, 0
      %v339 = vsel %vm260, %v226, 0
      %v342 = vsel %vm260, %v227, 0
      %v345 = vsel %vm260, %v241, 0
      %v348 = vsel %vm260, %v242, 0
      %v351 = vsel %vm260, %v243, 0
      %353 = vmatprep.subr.bf16.mxu0 0
      %354 = vmatpush1.bf16.xpose.msra.mxu0 %v345
      %355 = vmatprep.subr.bf16.mxu0 0
      %356 = vmatpush1.bf16.xpose.msra.mxu0 %v348
      %357 = vmatprep.subr.bf16.mxu0 0
      %358 = vmatpush1.bf16.xpose.msra.mxu0 %v351
      %359 = vmatprep.subr.bf16.mxu0 0
      %360 = vmatpush1.bf16.xpose.msra.mxu0 0
      %361 = vmatprep.subr.bf16.mxu0 0
      %362 = vmatpush1.bf16.xpose.msra.mxu0 0
      %363 = vmatprep.subr.bf16.mxu0 0
      %364 = vmatpush1.bf16.xpose.msra.mxu0 0
      %365 = vmatprep.subr.bf16.mxu0 0
      %366 = vmatpush1.bf16.xpose.msra.mxu0 0
      %367 = vmatprep.subr.bf16.mxu0 0
      %368 = vmatpush1.bf16.xpose.msra.mxu0 0
      %369 = vmatprep.subr.bf16.mxu0 0
      %370 = vmatpush1.bf16.xpose.msra.mxu0 0
      %371 = vmatprep.subr.bf16.mxu0 0
      %372 = vmatpush1.bf16.xpose.msra.mxu0 0
      %373 = vmatprep.subr.bf16.mxu0 0
      %374 = vmatpush1.bf16.xpose.msra.mxu0 0
      %375 = vmatprep.subr.bf16.mxu0 0
      %376 = vmatpush1.bf16.xpose.msra.mxu0 0
      %377 = vmatprep.subr.bf16.mxu0 0
      %378 = vmatpush1.bf16.xpose.msra.mxu0 0
      %379 = vmatprep.subr.bf16.mxu0 0
      %380 = vmatpush1.bf16.xpose.msra.mxu0 0
      %381 = vmatprep.subr.bf16.mxu0 0
      %382 = vmatpush1.bf16.xpose.msra.mxu0 0
      %383 = vmatprep.subr.bf16.mxu0 0
      %384 = vmatpush1.bf16.xpose.msra.mxu0 0
      %385 = vmatprep.mubr.bf16.mxu0 0
      %386 = vmatmul.mubr.bf16.gmra.mrb[0].mxu0 %v336
      %v387 = vpop.f32.mrb[0].mxu0
      %v388 = vadd.f32 0.0, %v387
      %v389 = vpop.f32.mrb[0].mxu0
      %v390 = vpop.f32.mrb[0].mxu0
      %v391 = vadd.f32 0.0, %v390
      %v392 = vpop.f32.mrb[0].mxu0
      %393 = vmatprep.mubr.bf16.mxu0 0
      %394 = vmatmul.mubr.bf16.gmra.mrb[0].mxu0 %v339
      %v395 = vpop.f32.mrb[0].mxu0
      %v396 = vadd.f32 0.0, %v395
      %v397 = vpop.f32.mrb[0].mxu0
      %v398 = vpop.f32.mrb[0].mxu0
      %v399 = vadd.f32 0.0, %v398
      %v400 = vpop.f32.mrb[0].mxu0
      %401 = vmatprep.mubr.bf16.mxu0 0
      %402 = vmatmul.mubr.bf16.gmra.mrb[0].mxu0 %v342
      %v403 = vpop.f32.mrb[0].mxu0
      %v404 = vadd.f32 0.0, %v403
      %v405 = vpop.f32.mrb[0].mxu0
      %v406 = vpop.f32.mrb[0].mxu0
      %v407 = vpop.f32.mrb[0].mxu0
      %408 = vdwg.mxu0
      %v409 = vmul.f32 %v314, 0.25
      %v410 = vmul.f32 %v317, 0.25
      %v411 = vmul.f32 %v322, 0.25
      %v412 = vmul.f32 %v325, 0.25
      %v413 = vmul.f32 %v330, 0.25
      %v414 = vmul.f32 %v388, 0.25
      %v415 = vmul.f32 %v391, 0.25
      %v416 = vmul.f32 %v396, 0.25
      %v417 = vmul.f32 %v399, 0.25
      %v418 = vmul.f32 %v404, 0.25
      %vm419 = vcmask 269312
      %v420 = vsel %vm419, %v409, -inf
      %421 = vmax.xlane.f32.xlu0 %v420
      %v422 = vpop.xlane.xlu0 %421
      %v423 = vsel %vm419, %v410, -inf
      %424 = vmax.xlane.f32.xlu0 %v423
      %v425 = vpop.xlane.xlu0 %424
      %v426 = vsel %vm419, %v411, -inf
      %427 = vmax.xlane.f32.xlu0 %v426
      %v428 = vpop.xlane.xlu0 %427
      %v429 = vsel %vm419, %v412, -inf
      %430 = vmax.xlane.f32.xlu0 %v429
      %v431 = vpop.xlane.xlu0 %430
      %vm432 = vcmask 262144
      %v433 = vsel %vm432, %v413, -inf
      %434 = vmax.xlane.f32.xlu0 %v433
      %v435 = vpop.xlane.xlu0 %434
      %v436 = vsel %vm419, %v414, -inf
      %437 = vmax.xlane.f32.xlu0 %v436
      %v438 = vpop.xlane.xlu0 %437
      %v439 = vsel %vm419, %v415, -inf
      %440 = vmax.xlane.f32.xlu0 %v439
      %v441 = vpop.xlane.xlu0 %440
      %v442 = vsel %vm419, %v416, -inf
      %443 = vmax.xlane.f32.xlu0 %v442
      %v444 = vpop.xlane.xlu0 %443
      %v445 = vsel %vm419, %v417, -inf
      %446 = vmax.xlane.f32.xlu0 %v445
      %v447 = vpop.xlane.xlu0 %446
      %v448 = vsel %vm432, %v418, -inf
      %449 = vmax.xlane.f32.xlu0 %v448
      %v450 = vpop.xlane.xlu0 %449
      %v451 = vsub.f32 %v409, %v422
      %v452 = vsub.f32 %v410, %v425
      %v453 = vsub.f32 %v411, %v428
      %v454 = vsub.f32 %v412, %v431
      %v455 = vsub.f32 %v413, %v435
      %v456 = vsub.f32 %v414, %v438
      %v457 = vsub.f32 %v415, %v441
      %v458 = vsub.f32 %v416, %v444
      %v459 = vsub.f32 %v417, %v447
      %v460 = vsub.f32 %v418, %v450
      %v461 = vmul.f32 %v451, 1.442695
      %v462 = vpow.pop %v461
      %v463 = vmul.f32 %v452, 1.442695
      %v464 = vpow.pop %v463
      %v465 = vmul.f32 %v453, 1.442695
      %v466 = vpow.pop %v465
      %v467 = vmul.f32 %v454, 1.442695
      %v468 = vpow.pop %v467
      %v469 = vmul.f32 %v455, 1.442695
      %v470 = vpow.pop %v469
      %v471 = vmul.f32 %v456, 1.442695
      %v472 = vpow.pop %v471
      %v473 = vmul.f32 %v457, 1.442695
      %v474 = vpow.pop %v473
      %v475 = vmul.f32 %v458, 1.442695
      %v476 = vpow.pop %v475
      %v477 = vmul.f32 %v459, 1.442695
      %v478 = vpow.pop %v477
      %v479 = vmul.f32 %v460, 1.442695
      %v480 = vpow.pop %v479
      %v481 = vsel %vm419, %v462, 0.0
      %482 = vadd.xlane.f32.xlu0 %v481
      %v483 = vpop.xlane.xlu0 %482
      %v484 = vsel %vm419, %v464, 0.0
      %485 = vadd.xlane.f32.xlu0 %v484
      %v486 = vpop.xlane.xlu0 %485
      %v487 = vsel %vm419, %v466, 0.0
      %488 = vadd.xlane.f32.xlu0 %v487
      %v489 = vpop.xlane.xlu0 %488
      %v490 = vsel %vm419, %v468, 0.0
      %491 = vadd.xlane.f32.xlu0 %v490
      %v492 = vpop.xlane.xlu0 %491
      %v493 = vsel %vm432, %v470, 0.0
      %494 = vadd.xlane.f32.xlu0 %v493
      %v495 = vpop.xlane.xlu0 %494
      %v496 = vsel %vm419, %v472, 0.0
      %497 = vadd.xlane.f32.xlu0 %v496
      %v498 = vpop.xlane.xlu0 %497
      %v499 = vsel %vm419, %v474, 0.0
      %500 = vadd.xlane.f32.xlu0 %v499
      %v501 = vpop.xlane.xlu0 %500
      %v502 = vsel %vm419, %v476, 0.0
      %503 = vadd.xlane.f32.xlu0 %v502
      %v504 = vpop.xlane.xlu0 %503
      %v505 = vsel %vm419, %v478, 0.0
      %506 = vadd.xlane.f32.xlu0 %v505
      %v507 = vpop.xlane.xlu0 %506
      %v508 = vsel %vm432, %v480, 0.0
      %509 = vadd.xlane.f32.xlu0 %v508
      %v510 = vpop.xlane.xlu0 %509
      %v511 = vrcp.pop %v483
      %v512 = vrcp.pop %v486
      %v513 = vrcp.pop %v489
      %v514 = vrcp.pop %v492
      %v515 = vrcp.pop %v495
      %v516 = vrcp.pop %v498
      %v517 = vrcp.pop %v501
      %v518 = vrcp.pop %v504
      %v519 = vrcp.pop %v507
      %v520 = vrcp.pop %v510
      %v521 = vmul.f32 %v462, %v511
      %v522 = vmul.f32 %v464, %v512
      %v523 = vmul.f32 %v466, %v513
      %v524 = vmul.f32 %v468, %v514
      %v525 = vmul.f32 %v470, %v515
      %v526 = vmul.f32 %v472, %v516
      %v527 = vmul.f32 %v474, %v517
      %v528 = vmul.f32 %v476, %v518
      %v529 = vmul.f32 %v478, %v519
      %v530 = vmul.f32 %v480, %v520
      %v531 = vpack.c.bf16 %v522, %v521
      %v532 = vpack.c.bf16 %v524, %v523
      %v533 = vpack.c.bf16 %v525, %v525
      %v534 = vpack.c.bf16 %v527, %v526
      %v535 = vpack.c.bf16 %v529, %v528
      %v536 = vpack.c.bf16 %v530, %v530
      %v538 = vsel %vm419, %v531, 0
      %v541 = vsel %vm419, %v532, 0
      %v544 = vsel %vm419, %v533, 0
      %vm546 = vcmask 1040384
      %v547 = vsel 0, 4294967295, 65535
      %v548 = vsel %vm546, %v547, 0
      %v550 = vand.u32 %v256, %v548
      %552 = vmatprep.subr.bf16.mxu0 0
      %553 = vmatpush1.bf16.msra.mxu0 %v254
      %554 = vmatprep.subr.bf16.mxu0 0
      %555 = vmatpush1.bf16.msra.mxu0 %v255
      %556 = vmatprep.subr.bf16.mxu0 0
      %557 = vmatpush1.bf16.msra.mxu0 %v550
      %558 = vmatprep.subr.bf16.mxu0 0
      %559 = vmatpush1.bf16.msra.mxu0 0
      %560 = vmatprep.subr.bf16.mxu0 0
      %561 = vmatpush1.bf16.msra.mxu0 0
      %562 = vmatprep.subr.bf16.mxu0 0
      %563 = vmatpush1.bf16.msra.mxu0 0
      %564 = vmatprep.subr.bf16.mxu0 0
      %565 = vmatpush1.bf16.msra.mxu0 0
      %566 = vmatprep.subr.bf16.mxu0 0
      %567 = vmatpush1.bf16.msra.mxu0 0
      %568 = vmatprep.subr.bf16.mxu0 0
      %569 = vmatpush1.bf16.msra.mxu0 0
      %570 = vmatprep.subr.bf16.mxu0 0
      %571 = vmatpush1.bf16.msra.mxu0 0
      %572 = vmatprep.subr.bf16.mxu0 0
      %573 = vmatpush1.bf16.msra.mxu0 0
      %574 = vmatprep.subr.bf16.mxu0 0
      %575 = vmatpush1.bf16.msra.mxu0 0
      %576 = vmatprep.subr.bf16.mxu0 0
      %577 = vmatpush1.bf16.msra.mxu0 0
      %578 = vmatprep.subr.bf16.mxu0 0
      %579 = vmatpush1.bf16.msra.mxu0 0
      %580 = vmatprep.subr.bf16.mxu0 0
      %581 = vmatpush1.bf16.msra.mxu0 0
      %582 = vmatprep.subr.bf16.mxu0 0
      %583 = vmatpush1.bf16.msra.mxu0 0
      %584 = vmatprep.mubr.bf16.mxu0 0
      %585 = vmatmul.mubr.bf16.gmra.mrb[0].mxu0 %v538
      %v586 = vpop.f32.mrb[0].mxu0
      %v587 = vadd.f32 0.0, %v586
      %v588 = vpop.f32.mrb[0].mxu0
      %v589 = vpop.f32.mrb[0].mxu0
      %v590 = vadd.f32 0.0, %v589
      %v591 = vpop.f32.mrb[0].mxu0
      %592 = vmatprep.mubr.bf16.mxu0 0
      %593 = vmatmul.mubr.bf16.gmra.mrb[0].mxu0 %v541
      %v594 = vpop.f32.mrb[0].mxu0
      %v595 = vadd.f32 0.0, %v594
      %v596 = vpop.f32.mrb[0].mxu0
      %v597 = vpop.f32.mrb[0].mxu0
      %v598 = vadd.f32 0.0, %v597
      %v599 = vpop.f32.mrb[0].mxu0
      %600 = vmatprep.mubr.bf16.mxu0 0
      %601 = vmatmul.mubr.bf16.gmra.mrb[0].mxu0 %v544
      %v602 = vpop.f32.mrb[0].mxu0
      %v603 = vadd.f32 0.0, %v602
      %v604 = vpop.f32.mrb[0].mxu0
      %v605 = vpop.f32.mrb[0].mxu0
      %v606 = vpop.f32.mrb[0].mxu0
      %607 = vdwg.mxu0
      %v609 = vsel %vm419, %v534, 0
      %v612 = vsel %vm419, %v535, 0
      %v615 = vsel %vm419, %v536, 0
      %v618 = vand.u32 %v259, %v548
      %620 = vmatprep.subr.bf16.mxu0 0
      %621 = vmatpush1.bf16.msra.mxu0 %v257
      %622 = vmatprep.subr.bf16.mxu0 0
      %623 = vmatpush1.bf16.msra.mxu0 %v258
      %624 = vmatprep.subr.bf16.mxu0 0
      %625 = vmatpush1.bf16.msra.mxu0 %v618
      %626 = vmatprep.subr.bf16.mxu0 0
      %627 = vmatpush1.bf16.msra.mxu0 0
      %628 = vmatprep.subr.bf16.mxu0 0
      %629 = vmatpush1.bf16.msra.mxu0 0
      %630 = vmatprep.subr.bf16.mxu0 0
      %631 = vmatpush1.bf16.msra.mxu0 0
      %632 = vmatprep.subr.bf16.mxu0 0
      %633 = vmatpush1.bf16.msra.mxu0 0
      %634 = vmatprep.subr.bf16.mxu0 0
      %635 = vmatpush1.bf16.msra.mxu0 0
      %636 = vmatprep.subr.bf16.mxu0 0
      %637 = vmatpush1.bf16.msra.mxu0 0
      %638 = vmatprep.subr.bf16.mxu0 0
      %639 = vmatpush1.bf16.msra.mxu0 0
      %640 = vmatprep.subr.bf16.mxu0 0
      %641 = vmatpush1.bf16.msra.mxu0 0
      %642 = vmatprep.subr.bf16.mxu0 0
      %643 = vmatpush1.bf16.msra.mxu0 0
      %644 = vmatprep.subr.bf16.mxu0 0
      %645 = vmatpush1.bf16.msra.mxu0 0
      %646 = vmatprep.subr.bf16.mxu0 0
      %647 = vmatpush1.bf16.msra.mxu0 0
      %648 = vmatprep.subr.bf16.mxu0 0
      %649 = vmatpush1.bf16.msra.mxu0 0
      %650 = vmatprep.subr.bf16.mxu0 0
      %651 = vmatpush1.bf16.msra.mxu0 0
      %652 = vmatprep.mubr.bf16.mxu0 0
      %653 = vmatmul.mubr.bf16.gmra.mrb[0].mxu0 %v609
      %v654 = vpop.f32.mrb[0].mxu0
      %v655 = vadd.f32 0.0, %v654
      %v656 = vpop.f32.mrb[0].mxu0
      %v657 = vpop.f32.mrb[0].mxu0
      %v658 = vadd.f32 0.0, %v657
      %v659 = vpop.f32.mrb[0].mxu0
      %660 = vmatprep.mubr.bf16.mxu0 0
      %661 = vmatmul.mubr.bf16.gmra.mrb[0].mxu0 %v612
      %v662 = vpop.f32.mrb[0].mxu0
      %v663 = vadd.f32 0.0, %v662
      %v664 = vpop.f32.mrb[0].mxu0
      %v665 = vpop.f32.mrb[0].mxu0
      %v666 = vadd.f32 0.0, %v665
      %v667 = vpop.f32.mrb[0].mxu0
      %668 = vmatprep.mubr.bf16.mxu0 0
      %669 = vmatmul.mubr.bf16.gmra.mrb[0].mxu0 %v615
      %v670 = vpop.f32.mrb[0].mxu0
      %v671 = vadd.f32 0.0, %v670
      %v672 = vpop.f32.mrb[0].mxu0
      %v673 = vpop.f32.mrb[0].mxu0
      %v674 = vpop.f32.mrb[0].mxu0
      %675 = vdwg.mxu0
      %676 = vst.msk [vmem:[%s210] sm:$0xff] %vm260, %v587
      %677 = vst.msk [vmem:[%s210 + $0x8] sm:$0xff] %vm260, %v590
      %678 = vst.msk [vmem:[%s210 + $0x10] sm:$0xff] %vm260, %v595
      %679 = vst.msk [vmem:[%s210 + $0x18] sm:$0xff] %vm260, %v598
      %vm680 = vcmask 122880
      %681 = vst.msk [vmem:[%s210 + $0x20] sm:$0x1] %vm680, %v603
      %682 = vst.msk [vmem:[%s210 + $0x28] sm:$0xff] %vm260, %v655
      %683 = vst.msk [vmem:[%s210 + $0x30] sm:$0xff] %vm260, %v658
      %684 = vst.msk [vmem:[%s210 + $0x38] sm:$0xff] %vm260, %v663
      %685 = vst.msk [vmem:[%s210 + $0x40] sm:$0xff] %vm260, %v666
      %686 = vst.msk [vmem:[%s210 + $0x48] sm:$0x1] %vm680, %v671
      %p687 = scmp.lt.s32.totalorder %s14, 1
      %s688 = scalar_select %p687, %s14, 1
      %s689 = smul.addr %s688, 10
      %s690 = smul.addr %s689, 8
      %s691 = scalar_lea.vmem %s3, %s690
      // Predicated region
      $region33: #{mae_encoder_forward.16} parent=31 // pred_check
        %p692 = pneg %p110
      $region34: #{mae_encoder_forward.16} parent=31 // pred_check_branch
        %694 = sbr.rel (%p692) target = $region36
      $region35: #{mae_encoder_forward.16} parent=31 // pred_region
        _
      $region36: #{mae_encoder_forward.16} parent=31 // pred_fallthru
        _
    $region32: #{mae_encoder_forward.16} parent=5 // pred_fallthru
      _
    %p695 = scmp.le.s32.totalorder 2, %s9
    // Predicated region
    $region37: #{mae_encoder_forward.16} parent=5 // pred_check
      %p696 = pneg %p695
    $region38: #{mae_encoder_forward.16} parent=5 // pred_check_branch
      %698 = sbr.rel (%p696) target = $region40
    $region39: #{mae_encoder_forward.16} parent=5 // pred_region
      %s699 = ssub.s32 %s9, 2
      // Predicated region
      $region41: #{mae_encoder_forward.16} parent=39 // pred_check
        %p700 = pneg %p116
      $region42: #{mae_encoder_forward.16} parent=39 // pred_check_branch
        %702 = sbr.rel (%p700) target = $region44
      $region43: #{mae_encoder_forward.16} parent=39 // pred_region
        %p703 = scmp.lt.s32.totalorder %s15, 1
        %s704 = scalar_select %p703, %s15, 1
        %s705 = smul.addr %s704, 10
        %s706 = smul.addr %s705, 8
        %s707 = scalar_lea.vmem %s3, %s706
      $region44: #{mae_encoder_forward.16} parent=39 // pred_fallthru
        _
    $region40: #{mae_encoder_forward.16} parent=5 // pred_fallthru
      _
  $region6: #{mae_encoder_forward.16} parent=0 // loop_footer
    %s13 = sadd.s32 1, %s9
  $region7: #{mae_encoder_forward.16} parent=0 // loop_footer_branch
    %8 = sbr.rel target = $region3
  $region8: #{mae_encoder_forward.16} parent=0 // loop_exit
    _

// kernel: mae_encoder_forward.17
$region0: #{mae_encoder_forward.17}
  #allocation0 [shape = 'u32[]', space=smem, size = 0x4, offset = 0x4, fixed_abs, tag = 'smem constant byte address 0x4 - core index']
  #allocation1 [shape = 'u32[144,128]{1,0:T(1,128)}', space=vmem, size = 0x12000, scoped, tag = 'internal scratch']
  %s0 = inlined_call_operand.vmem [shape: f32[66,32], index: 0, kind: input, shape index: {}]
  %s1 = inlined_call_operand.vmem [shape: bf16[32,32], index: 1, kind: input, shape index: {}]
  %s2 = inlined_call_operand.vmem [shape: f32[1,32], index: 2, kind: input, shape index: {}]
  %s3 = inlined_call_operand.vmem [shape: f32[66,32], index: 3, kind: input, shape index: {}]
  %s4 = inlined_call_operand.vmem [shape: f32[66,32], index: 4, kind: output, shape index: {}]
  %s5 = sld [smem:[#allocation0]]
  $region26: #{mae_encoder_forward.17} parent=0
    _
  %s7 = ssub.s32 1, %s5
  %s8 = scalar_select 0, %s7, %s5
  // Predicated region
  $region2: #{mae_encoder_forward.17} parent=0 // pred_check
    _
  $region3: #{mae_encoder_forward.17} parent=0 // pred_check_branch
    %10 = sbr.rel (0) target = $region5
  $region4: #{mae_encoder_forward.17} parent=0 // pred_region
    _
  $region5: #{mae_encoder_forward.17} parent=0 // pred_fallthru
    _
  // Predicated region
  $region6: #{mae_encoder_forward.17} parent=0 // pred_check
    _
  $region7: #{mae_encoder_forward.17} parent=0 // pred_check_branch
    %12 = sbr.rel (0) target = $region9
  $region8: #{mae_encoder_forward.17} parent=0 // pred_region
    _
  $region9: #{mae_encoder_forward.17} parent=0 // pred_fallthru
    _
  // Predicated region
  $region10: #{mae_encoder_forward.17} parent=0 // pred_check
    _
  $region11: #{mae_encoder_forward.17} parent=0 // pred_check_branch
    %14 = sbr.rel (0) target = $region13
  $region12: #{mae_encoder_forward.17} parent=0 // pred_region
    _
  $region13: #{mae_encoder_forward.17} parent=0 // pred_fallthru
    _
  // Predicated region
  $region14: #{mae_encoder_forward.17} parent=0 // pred_check
    _
  $region15: #{mae_encoder_forward.17} parent=0 // pred_check_branch
    %16 = sbr.rel (0) target = $region17
  $region16: #{mae_encoder_forward.17} parent=0 // pred_region
    _
  $region17: #{mae_encoder_forward.17} parent=0 // pred_fallthru
    _
  %v18 = vld [vmem:[%s0] sm:$0xff]
  %v19 = vld [vmem:[%s0 + $0x8] sm:$0xff]
  %v20 = vld [vmem:[%s0 + $0x10] sm:$0xff]
  %v21 = vld [vmem:[%s0 + $0x18] sm:$0xff]
  %v22 = vld [vmem:[%s0 + $0x20] sm:$0xff]
  %v23 = vld [vmem:[%s0 + $0x28] sm:$0xff]
  %v24 = vld [vmem:[%s0 + $0x30] sm:$0xff]
  %v25 = vld [vmem:[%s0 + $0x38] sm:$0xff]
  %v26 = vld [vmem:[%s0 + $0x40] sm:$0x3]
  %v27 = vpack.c.bf16 %v19, %v18
  %v28 = vpack.c.bf16 %v21, %v20
  %v29 = vpack.c.bf16 %v23, %v22
  %v30 = vpack.c.bf16 %v25, %v24
  %v31 = vpack.c.bf16 %v26, %v26
  %v32 = vld [vmem:[%s1] sm:$0xf]
  %v33 = vld [vmem:[%s1 + $0x4] sm:$0xf]
  %v34 = vld [vmem:[%s1 + $0x8] sm:$0xf]
  %v35 = vld [vmem:[%s1 + $0xc] sm:$0xf]
  %v36 = vld [vmem:[%s2] sm:$0x1]
  %v38 = vlaneseq
  %v39 = vshrl.u32 %v38, 7
  %v40 = vsub.s32 0, %v39
  %v41 = vrot.slane %v36, %v40
  %v47 = vunpack.c.l.b16 %v32
  %v48 = vunpack.c.l.b16 %v33
  %v49 = vunpack.c.l.b16 %v34
  %v50 = vunpack.c.l.b16 %v35
  %v51 = vpack.c.b16 %v48, %v47
  %v52 = vpack.c.b16 %v50, %v49
  %vm55 = vcmask 261120
  %v57 = vsel %vm55, %v27, 0
  %v60 = vsel %vm55, %v28, 0
  %v63 = vsel %vm55, %v29, 0
  %v66 = vsel %vm55, %v30, 0
  %v69 = vsel %vm55, %v31, 0
  %71 = vmatprep.subr.bf16.mxu0 0
  %72 = vmatpush1.bf16.msra.mxu0 %v51
  %73 = vmatprep.subr.bf16.mxu0 0
  %74 = vmatpush1.bf16.msra.mxu0 %v52
  %75 = vmatprep.subr.bf16.mxu0 0
  %76 = vmatpush1.bf16.msra.mxu0 0
  %77 = vmatprep.subr.bf16.mxu0 0
  %78 = vmatpush1.bf16.msra.mxu0 0
  %79 = vmatprep.subr.bf16.mxu0 0
  %80 = vmatpush1.bf16.msra.mxu0 0
  %81 = vmatprep.subr.bf16.mxu0 0
  %82 = vmatpush1.bf16.msra.mxu0 0
  %83 = vmatprep.subr.bf16.mxu0 0
  %84 = vmatpush1.bf16.msra.mxu0 0
  %85 = vmatprep.subr.bf16.mxu0 0
  %86 = vmatpush1.bf16.msra.mxu0 0
  %87 = vmatprep.subr.bf16.mxu0 0
  %88 = vmatpush1.bf16.msra.mxu0 0
  %89 = vmatprep.subr.bf16.mxu0 0
  %90 = vmatpush1.bf16.msra.mxu0 0
  %91 = vmatprep.subr.bf16.mxu0 0
  %92 = vmatpush1.bf16.msra.mxu0 0
  %93 = vmatprep.subr.bf16.mxu0 0
  %94 = vmatpush1.bf16.msra.mxu0 0
  %95 = vmatprep.subr.bf16.mxu0 0
  %96 = vmatpush1.bf16.msra.mxu0 0
  %97 = vmatprep.subr.bf16.mxu0 0
  %98 = vmatpush1.bf16.msra.mxu0 0
  %99 = vmatprep.subr.bf16.mxu0 0
  %100 = vmatpush1.bf16.msra.mxu0 0
  %101 = vmatprep.subr.bf16.mxu0 0
  %102 = vmatpush1.bf16.msra.mxu0 0
  %103 = vmatprep.mubr.bf16.mxu0 0
  %104 = vmatmul.mubr.bf16.gmra.mrb[0].mxu0 %v57
  %v105 = vpop.f32.mrb[0].mxu0
  %v106 = vadd.f32 %v41, %v105
  %v107 = vpop.f32.mrb[0].mxu0
  %v108 = vpop.f32.mrb[0].mxu0
  %v109 = vadd.f32 %v41, %v108
  %v110 = vpop.f32.mrb[0].mxu0
  %111 = vmatprep.mubr.bf16.mxu0 0
  %112 = vmatmul.mubr.bf16.gmra.mrb[0].mxu0 %v60
  %v113 = vpop.f32.mrb[0].mxu0
  %v114 = vadd.f32 %v41, %v113
  %v115 = vpop.f32.mrb[0].mxu0
  %v116 = vpop.f32.mrb[0].mxu0
  %v117 = vadd.f32 %v41, %v116
  %v118 = vpop.f32.mrb[0].mxu0
  %119 = vmatprep.mubr.bf16.mxu0 0
  %120 = vmatmul.mubr.bf16.gmra.mrb[0].mxu0 %v63
  %v121 = vpop.f32.mrb[0].mxu0
  %v122 = vadd.f32 %v41, %v121
  %v123 = vpop.f32.mrb[0].mxu0
  %v124 = vpop.f32.mrb[0].mxu0
  %v125 = vadd.f32 %v41, %v124
  %v126 = vpop.f32.mrb[0].mxu0
  %127 = vmatprep.mubr.bf16.mxu0 0
  %128 = vmatmul.mubr.bf16.gmra.mrb[0].mxu0 %v66
  %v129 = vpop.f32.mrb[0].mxu0
  %v130 = vadd.f32 %v41, %v129
  %v131 = vpop.f32.mrb[0].mxu0
  %v132 = vpop.f32.mrb[0].mxu0
  %v133 = vadd.f32 %v41, %v132
  %v134 = vpop.f32.mrb[0].mxu0
  %135 = vmatprep.mubr.bf16.mxu0 0
  %136 = vmatmul.mubr.bf16.gmra.mrb[0].mxu0 %v69
  %v137 = vpop.f32.mrb[0].mxu0
  %v138 = vadd.f32 %v41, %v137
  %v139 = vpop.f32.mrb[0].mxu0
  %v140 = vpop.f32.mrb[0].mxu0
  %v141 = vpop.f32.mrb[0].mxu0
  %142 = vdwg.mxu0
  %v143 = vld [vmem:[%s3] sm:$0xff]
  %v144 = vld [vmem:[%s3 + $0x8] sm:$0xff]
  %v145 = vld [vmem:[%s3 + $0x10] sm:$0xff]
  %v146 = vld [vmem:[%s3 + $0x18] sm:$0xff]
  %v147 = vld [vmem:[%s3 + $0x20] sm:$0xff]
  %v148 = vld [vmem:[%s3 + $0x28] sm:$0xff]
  %v149 = vld [vmem:[%s3 + $0x30] sm:$0xff]
  %v150 = vld [vmem:[%s3 + $0x38] sm:$0xff]
  %v151 = vld [vmem:[%s3 + $0x40] sm:$0x3]
  %v152 = vadd.f32 %v106, %v143
  %v153 = vadd.f32 %v109, %v144
  %v154 = vadd.f32 %v114, %v145
  %v155 = vadd.f32 %v117, %v146
  %v156 = vadd.f32 %v122, %v147
  %v157 = vadd.f32 %v125, %v148
  %v158 = vadd.f32 %v130, %v149
  %v159 = vadd.f32 %v133, %v150
  %v160 = vadd.f32 %v138, %v151
  %161 = vst.msk [vmem:[%s4] sm:$0xff] %vm55, %v152
  %162 = vst.msk [vmem:[%s4 + $0x8] sm:$0xff] %vm55, %v153
  %163 = vst.msk [vmem:[%s4 + $0x10] sm:$0xff] %vm55, %v154
  %164 = vst.msk [vmem:[%s4 + $0x18] sm:$0xff] %vm55, %v155
  %165 = vst.msk [vmem:[%s4 + $0x20] sm:$0xff] %vm55, %v156
  %166 = vst.msk [vmem:[%s4 + $0x28] sm:$0xff] %vm55, %v157
  %167 = vst.msk [vmem:[%s4 + $0x30] sm:$0xff] %vm55, %v158
  %168 = vst.msk [vmem:[%s4 + $0x38] sm:$0xff] %vm55, %v159
  %vm169 = vcmask 254976
  %170 = vst.msk [vmem:[%s4 + $0x40] sm:$0x3] %vm169, %v160
  // Predicated region
  $region18: #{mae_encoder_forward.17} parent=0 // pred_check
    _
  $region19: #{mae_encoder_forward.17} parent=0 // pred_check_branch
    %172 = sbr.rel (0) target = $region21
  $region20: #{mae_encoder_forward.17} parent=0 // pred_region
    _
  $region21: #{mae_encoder_forward.17} parent=0 // pred_fallthru
    _
  // Predicated region
  $region22: #{mae_encoder_forward.17} parent=0 // pred_check
    _
  $region23: #{mae_encoder_forward.17} parent=0 // pred_check_branch
    %174 = sbr.rel (0) target = $region25
  $region24: #{mae_encoder_forward.17} parent=0 // pred_region
    _
  $region25: #{mae_encoder_forward.17} parent=0 // pred_fallthru
    _

// kernel: mae_encoder_forward.18
$region0: #{mae_encoder_forward.18}
  #allocation0 [shape = 'u32[]', space=smem, size = 0x4, offset = 0x4, fixed_abs, tag = 'smem constant byte address 0x4 - core index']
  #allocation1 [shape = 'u32[144,128]{1,0:T(1,128)}', space=vmem, size = 0x12000, scoped, tag = 'internal scratch']
  %s0 = inlined_call_operand.vmem [shape: f32[66,32], index: 0, kind: input, shape index: {}]
  %s1 = inlined_call_operand.vmem [shape: f32[1,32], index: 1, kind: input, shape index: {}]
  %s2 = inlined_call_operand.vmem [shape: f32[1,32], index: 2, kind: input, shape index: {}]
  %s3 = inlined_call_operand.vmem [shape: bf16[32,128], index: 3, kind: input, shape index: {}]
  %s4 = inlined_call_operand.vmem [shape: f32[1,128], index: 4, kind: input, shape index: {}]
  %s5 = inlined_call_operand.vmem [shape: f32[66,128], index: 5, kind: output, shape index: {}]
  %s6 = sld [smem:[#allocation0]]
  $region30: #{mae_encoder_forward.18} parent=0
    _
  %s8 = ssub.s32 1, %s6
  %s9 = scalar_select 0, %s8, %s6
  // Predicated region
  $region2: #{mae_encoder_forward.18} parent=0 // pred_check
    _
  $region3: #{mae_encoder_forward.18} parent=0 // pred_check_branch
    %11 = sbr.rel (0) target = $region5
  $region4: #{mae_encoder_forward.18} parent=0 // pred_region
    _
  $region5: #{mae_encoder_forward.18} parent=0 // pred_fallthru
    _
  // Predicated region
  $region6: #{mae_encoder_forward.18} parent=0 // pred_check
    _
  $region7: #{mae_encoder_forward.18} parent=0 // pred_check_branch
    %13 = sbr.rel (0) target = $region9
  $region8: #{mae_encoder_forward.18} parent=0 // pred_region
    _
  $region9: #{mae_encoder_forward.18} parent=0 // pred_fallthru
    _
  // Predicated region
  $region10: #{mae_encoder_forward.18} parent=0 // pred_check
    _
  $region11: #{mae_encoder_forward.18} parent=0 // pred_check_branch
    %15 = sbr.rel (0) target = $region13
  $region12: #{mae_encoder_forward.18} parent=0 // pred_region
    _
  $region13: #{mae_encoder_forward.18} parent=0 // pred_fallthru
    _
  // Predicated region
  $region14: #{mae_encoder_forward.18} parent=0 // pred_check
    _
  $region15: #{mae_encoder_forward.18} parent=0 // pred_check_branch
    %17 = sbr.rel (0) target = $region17
  $region16: #{mae_encoder_forward.18} parent=0 // pred_region
    _
  $region17: #{mae_encoder_forward.18} parent=0 // pred_fallthru
    _
  // Predicated region
  $region18: #{mae_encoder_forward.18} parent=0 // pred_check
    _
  $region19: #{mae_encoder_forward.18} parent=0 // pred_check_branch
    %19 = sbr.rel (0) target = $region21
  $region20: #{mae_encoder_forward.18} parent=0 // pred_region
    _
  $region21: #{mae_encoder_forward.18} parent=0 // pred_fallthru
    _
  %v21 = vld [vmem:[%s0] sm:$0xff]
  %v22 = vld [vmem:[%s0 + $0x8] sm:$0xff]
  %v23 = vld [vmem:[%s0 + $0x10] sm:$0xff]
  %v24 = vld [vmem:[%s0 + $0x18] sm:$0xff]
  %v25 = vld [vmem:[%s0 + $0x20] sm:$0xff]
  %v26 = vld [vmem:[%s0 + $0x28] sm:$0xff]
  %v27 = vld [vmem:[%s0 + $0x30] sm:$0xff]
  %v28 = vld [vmem:[%s0 + $0x38] sm:$0xff]
  %v29 = vld [vmem:[%s0 + $0x40] sm:$0x3]
  %vm30 = vcmask 261120
  %v31 = vsel %vm30, %v21, 0.0
  %32 = vadd.xlane.f32.xlu0 %v31
  %v33 = vpop.xlane.xlu0 %32
  %v34 = vsel %vm30, %v22, 0.0
  %35 = vadd.xlane.f32.xlu0 %v34
  %v36 = vpop.xlane.xlu0 %35
  %v37 = vsel %vm30, %v23, 0.0
  %38 = vadd.xlane.f32.xlu0 %v37
  %v39 = vpop.xlane.xlu0 %38
  %v40 = vsel %vm30, %v24, 0.0
  %41 = vadd.xlane.f32.xlu0 %v40
  %v42 = vpop.xlane.xlu0 %41
  %v43 = vsel %vm30, %v25, 0.0
  %44 = vadd.xlane.f32.xlu0 %v43
  %v45 = vpop.xlane.xlu0 %44
  %v46 = vsel %vm30, %v26, 0.0
  %47 = vadd.xlane.f32.xlu0 %v46
  %v48 = vpop.xlane.xlu0 %47
  %v49 = vsel %vm30, %v27, 0.0
  %50 = vadd.xlane.f32.xlu0 %v49
  %v51 = vpop.xlane.xlu0 %50
  %v52 = vsel %vm30, %v28, 0.0
  %53 = vadd.xlane.f32.xlu0 %v52
  %v54 = vpop.xlane.xlu0 %53
  %vm55 = vcmask 254976
  %v56 = vsel %vm55, %v29, 0.0
  %57 = vadd.xlane.f32.xlu0 %v56
  %v58 = vpop.xlane.xlu0 %57
  %v59 = vrcp.pop 32.0
  %v60 = vmul.f32 %v33, %v59
  %v61 = vmul.f32 %v36, %v59
  %v62 = vmul.f32 %v39, %v59
  %v63 = vmul.f32 %v42, %v59
  %v64 = vmul.f32 %v45, %v59
  %v65 = vmul.f32 %v48, %v59
  %v66 = vmul.f32 %v51, %v59
  %v67 = vmul.f32 %v54, %v59
  %v68 = vmul.f32 %v58, %v59
  %v69 = vsub.f32 %v21, %v60
  %v70 = vsub.f32 %v22, %v61
  %v71 = vsub.f32 %v23, %v62
  %v72 = vsub.f32 %v24, %v63
  %v73 = vsub.f32 %v25, %v64
  %v74 = vsub.f32 %v26, %v65
  %v75 = vsub.f32 %v27, %v66
  %v76 = vsub.f32 %v28, %v67
  %v77 = vsub.f32 %v29, %v68
  %v78 = vmul.f32 %v69, %v69
  %v79 = vmul.f32 %v70, %v70
  %v80 = vmul.f32 %v71, %v71
  %v81 = vmul.f32 %v72, %v72
  %v82 = vmul.f32 %v73, %v73
  %v83 = vmul.f32 %v74, %v74
  %v84 = vmul.f32 %v75, %v75
  %v85 = vmul.f32 %v76, %v76
  %v86 = vmul.f32 %v77, %v77
  %v87 = vsel %vm30, %v78, 0.0
  %88 = vadd.xlane.f32.xlu0 %v87
  %v89 = vpop.xlane.xlu0 %88
  %v90 = vsel %vm30, %v79, 0.0
  %91 = vadd.xlane.f32.xlu0 %v90
  %v92 = vpop.xlane.xlu0 %91
  %v93 = vsel %vm30, %v80, 0.0
  %94 = vadd.xlane.f32.xlu0 %v93
  %v95 = vpop.xlane.xlu0 %94
  %v96 = vsel %vm30, %v81, 0.0
  %97 = vadd.xlane.f32.xlu0 %v96
  %v98 = vpop.xlane.xlu0 %97
  %v99 = vsel %vm30, %v82, 0.0
  %100 = vadd.xlane.f32.xlu0 %v99
  %v101 = vpop.xlane.xlu0 %100
  %v102 = vsel %vm30, %v83, 0.0
  %103 = vadd.xlane.f32.xlu0 %v102
  %v104 = vpop.xlane.xlu0 %103
  %v105 = vsel %vm30, %v84, 0.0
  %106 = vadd.xlane.f32.xlu0 %v105
  %v107 = vpop.xlane.xlu0 %106
  %v108 = vsel %vm30, %v85, 0.0
  %109 = vadd.xlane.f32.xlu0 %v108
  %v110 = vpop.xlane.xlu0 %109
  %v111 = vsel %vm55, %v86, 0.0
  %112 = vadd.xlane.f32.xlu0 %v111
  %v113 = vpop.xlane.xlu0 %112
  %v114 = vmul.f32 %v89, %v59
  %v115 = vmul.f32 %v92, %v59
  %v116 = vmul.f32 %v95, %v59
  %v117 = vmul.f32 %v98, %v59
  %v118 = vmul.f32 %v101, %v59
  %v119 = vmul.f32 %v104, %v59
  %v120 = vmul.f32 %v107, %v59
  %v121 = vmul.f32 %v110, %v59
  %v122 = vmul.f32 %v113, %v59
  %v123 = vadd.f32 %v114, 1e-05
  %v124 = vadd.f32 %v115, 1e-05
  %v125 = vadd.f32 %v116, 1e-05
  %v126 = vadd.f32 %v117, 1e-05
  %v127 = vadd.f32 %v118, 1e-05
  %v128 = vadd.f32 %v119, 1e-05
  %v129 = vadd.f32 %v120, 1e-05
  %v130 = vadd.f32 %v121, 1e-05
  %v131 = vadd.f32 %v122, 1e-05
  %v132 = vrsqrt.pop %v123
  %v133 = vrsqrt.pop %v124
  %v134 = vrsqrt.pop %v125
  %v135 = vrsqrt.pop %v126
  %v136 = vrsqrt.pop %v127
  %v137 = vrsqrt.pop %v128
  %v138 = vrsqrt.pop %v129
  %v139 = vrsqrt.pop %v130
  %v140 = vrsqrt.pop %v131
  %v141 = vmul.f32 %v69, %v132
  %v142 = vmul.f32 %v70, %v133
  %v143 = vmul.f32 %v71, %v134
  %v144 = vmul.f32 %v72, %v135
  %v145 = vmul.f32 %v73, %v136
  %v146 = vmul.f32 %v74, %v137
  %v147 = vmul.f32 %v75, %v138
  %v148 = vmul.f32 %v76, %v139
  %v149 = vmul.f32 %v77, %v140
  %v150 = vld [vmem:[%s1] sm:$0x1]
  %v152 = vlaneseq
  %v153 = vshrl.u32 %v152, 7
  %v154 = vsub.s32 0, %v153
  %v155 = vrot.slane %v150, %v154
  %v157 = vmul.f32 %v141, %v155
  %v158 = vmul.f32 %v142, %v155
  %v159 = vmul.f32 %v143, %v155
  %v160 = vmul.f32 %v144, %v155
  %v161 = vmul.f32 %v145, %v155
  %v162 = vmul.f32 %v146, %v155
  %v163 = vmul.f32 %v147, %v155
  %v164 = vmul.f32 %v148, %v155
  %v165 = vmul.f32 %v149, %v155
  %v166 = vld [vmem:[%s2] sm:$0x1]
  %v168 = vlaneseq
  %v169 = vshrl.u32 %v168, 7
  %v170 = vsub.s32 0, %v169
  %v171 = vrot.slane %v166, %v170
  %v173 = vadd.f32 %v157, %v171
  %v174 = vadd.f32 %v158, %v171
  %v175 = vadd.f32 %v159, %v171
  %v176 = vadd.f32 %v160, %v171
  %v177 = vadd.f32 %v161, %v171
  %v178 = vadd.f32 %v162, %v171
  %v179 = vadd.f32 %v163, %v171
  %v180 = vadd.f32 %v164, %v171
  %v181 = vadd.f32 %v165, %v171
  %v182 = vpack.c.bf16 %v174, %v173
  %v183 = vpack.c.bf16 %v176, %v175
  %v184 = vpack.c.bf16 %v178, %v177
  %v185 = vpack.c.bf16 %v180, %v179
  %v186 = vpack.c.bf16 %v181, %v181
  %v187 = vld [vmem:[%s3] sm:$0xf]
  %v188 = vld [vmem:[%s3 + $0x4] sm:$0xf]
  %v189 = vld [vmem:[%s3 + $0x8] sm:$0xf]
  %v190 = vld [vmem:[%s3 + $0xc] sm:$0xf]
  %v191 = vld [vmem:[%s4] sm:$0x1]
  %v193 = vlaneseq
  %v194 = vshrl.u32 %v193, 7
  %v195 = vsub.s32 0, %v194
  %v196 = vrot.slane %v191, %v195
  %v202 = vunpack.c.l.b16 %v187
  %v203 = vunpack.c.l.b16 %v188
  %v204 = vunpack.c.l.b16 %v189
  %v205 = vunpack.c.l.b16 %v190
  %v206 = vpack.c.b16 %v203, %v202
  %v207 = vpack.c.b16 %v205, %v204
  %v211 = vsel %vm30, %v182, 0
  %v214 = vsel %vm30, %v183, 0
  %v217 = vsel %vm30, %v184, 0
  %v220 = vsel %vm30, %v185, 0
  %v223 = vsel %vm30, %v186, 0
  %225 = vmatprep.subr.bf16.mxu0 0
  %226 = vmatpush1.bf16.msra.mxu0 %v206
  %227 = vmatprep.subr.bf16.mxu0 0
  %228 = vmatpush1.bf16.msra.mxu0 %v207
  %229 = vmatprep.subr.bf16.mxu0 0
  %230 = vmatpush1.bf16.msra.mxu0 0
  %231 = vmatprep.subr.bf16.mxu0 0
  %232 = vmatpush1.bf16.msra.mxu0 0
  %233 = vmatprep.subr.bf16.mxu0 0
  %234 = vmatpush1.bf16.msra.mxu0 0
  %235 = vmatprep.subr.bf16.mxu0 0
  %236 = vmatpush1.bf16.msra.mxu0 0
  %237 = vmatprep.subr.bf16.mxu0 0
  %238 = vmatpush1.bf16.msra.mxu0 0
  %239 = vmatprep.subr.bf16.mxu0 0
  %240 = vmatpush1.bf16.msra.mxu0 0
  %241 = vmatprep.subr.bf16.mxu0 0
  %242 = vmatpush1.bf16.msra.mxu0 0
  %243 = vmatprep.subr.bf16.mxu0 0
  %244 = vmatpush1.bf16.msra.mxu0 0
  %245 = vmatprep.subr.bf16.mxu0 0
  %246 = vmatpush1.bf16.msra.mxu0 0
  %247 = vmatprep.subr.bf16.mxu0 0
  %248 = vmatpush1.bf16.msra.mxu0 0
  %249 = vmatprep.subr.bf16.mxu0 0
  %250 = vmatpush1.bf16.msra.mxu0 0
  %251 = vmatprep.subr.bf16.mxu0 0
  %252 = vmatpush1.bf16.msra.mxu0 0
  %253 = vmatprep.subr.bf16.mxu0 0
  %254 = vmatpush1.bf16.msra.mxu0 0
  %255 = vmatprep.subr.bf16.mxu0 0
  %256 = vmatpush1.bf16.msra.mxu0 0
  %257 = vmatprep.mubr.bf16.mxu0 0
  %258 = vmatmul.mubr.bf16.gmra.mrb[0].mxu0 %v211
  %v259 = vpop.f32.mrb[0].mxu0
  %v260 = vadd.f32 %v196, %v259
  %v261 = vpop.f32.mrb[0].mxu0
  %v262 = vpop.f32.mrb[0].mxu0
  %v263 = vadd.f32 %v196, %v262
  %v264 = vpop.f32.mrb[0].mxu0
  %265 = vmatprep.mubr.bf16.mxu0 0
  %266 = vmatmul.mubr.bf16.gmra.mrb[0].mxu0 %v214
  %v267 = vpop.f32.mrb[0].mxu0
  %v268 = vadd.f32 %v196, %v267
  %v269 = vpop.f32.mrb[0].mxu0
  %v270 = vpop.f32.mrb[0].mxu0
  %v271 = vadd.f32 %v196, %v270
  %v272 = vpop.f32.mrb[0].mxu0
  %273 = vmatprep.mubr.bf16.mxu0 0
  %274 = vmatmul.mubr.bf16.gmra.mrb[0].mxu0 %v217
  %v275 = vpop.f32.mrb[0].mxu0
  %v276 = vadd.f32 %v196, %v275
  %v277 = vpop.f32.mrb[0].mxu0
  %v278 = vpop.f32.mrb[0].mxu0
  %v279 = vadd.f32 %v196, %v278
  %v280 = vpop.f32.mrb[0].mxu0
  %281 = vmatprep.mubr.bf16.mxu0 0
  %282 = vmatmul.mubr.bf16.gmra.mrb[0].mxu0 %v220
  %v283 = vpop.f32.mrb[0].mxu0
  %v284 = vadd.f32 %v196, %v283
  %v285 = vpop.f32.mrb[0].mxu0
  %v286 = vpop.f32.mrb[0].mxu0
  %v287 = vadd.f32 %v196, %v286
  %v288 = vpop.f32.mrb[0].mxu0
  %289 = vmatprep.mubr.bf16.mxu0 0
  %290 = vmatmul.mubr.bf16.gmra.mrb[0].mxu0 %v223
  %v291 = vpop.f32.mrb[0].mxu0
  %v292 = vadd.f32 %v196, %v291
  %v293 = vpop.f32.mrb[0].mxu0
  %v294 = vpop.f32.mrb[0].mxu0
  %v295 = vpop.f32.mrb[0].mxu0
  %296 = vdwg.mxu0
  %v297 = vmul.f32 %v260, %v260
  %v298 = vmul.f32 %v263, %v263
  %v299 = vmul.f32 %v268, %v268
  %v300 = vmul.f32 %v271, %v271
  %v301 = vmul.f32 %v276, %v276
  %v302 = vmul.f32 %v279, %v279
  %v303 = vmul.f32 %v284, %v284
  %v304 = vmul.f32 %v287, %v287
  %v305 = vmul.f32 %v292, %v292
  %v306 = vmul.f32 %v260, %v297
  %v307 = vmul.f32 %v263, %v298
  %v308 = vmul.f32 %v268, %v299
  %v309 = vmul.f32 %v271, %v300
  %v310 = vmul.f32 %v276, %v301
  %v311 = vmul.f32 %v279, %v302
  %v312 = vmul.f32 %v284, %v303
  %v313 = vmul.f32 %v287, %v304
  %v314 = vmul.f32 %v292, %v305
  %v315 = vmul.f32 %v306, 0.044715
  %v316 = vmul.f32 %v307, 0.044715
  %v317 = vmul.f32 %v308, 0.044715
  %v318 = vmul.f32 %v309, 0.044715
  %v319 = vmul.f32 %v310, 0.044715
  %v320 = vmul.f32 %v311, 0.044715
  %v321 = vmul.f32 %v312, 0.044715
  %v322 = vmul.f32 %v313, 0.044715
  %v323 = vmul.f32 %v314, 0.044715
  %v324 = vadd.f32 %v260, %v315
  %v325 = vadd.f32 %v263, %v316
  %v326 = vadd.f32 %v268, %v317
  %v327 = vadd.f32 %v271, %v318
  %v328 = vadd.f32 %v276, %v319
  %v329 = vadd.f32 %v279, %v320
  %v330 = vadd.f32 %v284, %v321
  %v331 = vadd.f32 %v287, %v322
  %v332 = vadd.f32 %v292, %v323
  %v333 = vmul.f32 %v324, 0.7978846
  %v334 = vmul.f32 %v325, 0.7978846
  %v335 = vmul.f32 %v326, 0.7978846
  %v336 = vmul.f32 %v327, 0.7978846
  %v337 = vmul.f32 %v328, 0.7978846
  %v338 = vmul.f32 %v329, 0.7978846
  %v339 = vmul.f32 %v330, 0.7978846
  %v340 = vmul.f32 %v331, 0.7978846
  %v341 = vmul.f32 %v332, 0.7978846
  %v342 = vtanh.pop %v333
  %v343 = vtanh.pop %v334
  %v344 = vtanh.pop %v335
  %v345 = vtanh.pop %v336
  %v346 = vtanh.pop %v337
  %v347 = vtanh.pop %v338
  %v348 = vtanh.pop %v339
  %v349 = vtanh.pop %v340
  %v350 = vtanh.pop %v341
  %v351 = vadd.f32 %v342, 1.0
  %v352 = vadd.f32 %v343, 1.0
  %v353 = vadd.f32 %v344, 1.0
  %v354 = vadd.f32 %v345, 1.0
  %v355 = vadd.f32 %v346, 1.0
  %v356 = vadd.f32 %v347, 1.0
  %v357 = vadd.f32 %v348, 1.0
  %v358 = vadd.f32 %v349, 1.0
  %v359 = vadd.f32 %v350, 1.0
  %v360 = vmul.f32 %v351, 0.5
  %v361 = vmul.f32 %v352, 0.5
  %v362 = vmul.f32 %v353, 0.5
  %v363 = vmul.f32 %v354, 0.5
  %v364 = vmul.f32 %v355, 0.5
  %v365 = vmul.f32 %v356, 0.5
  %v366 = vmul.f32 %v357, 0.5
  %v367 = vmul.f32 %v358, 0.5
  %v368 = vmul.f32 %v359, 0.5
  %v369 = vmul.f32 %v260, %v360
  %v370 = vmul.f32 %v263, %v361
  %v371 = vmul.f32 %v268, %v362
  %v372 = vmul.f32 %v271, %v363
  %v373 = vmul.f32 %v276, %v364
  %v374 = vmul.f32 %v279, %v365
  %v375 = vmul.f32 %v284, %v366
  %v376 = vmul.f32 %v287, %v367
  %v377 = vmul.f32 %v292, %v368
  %378 = vst [vmem:[%s5] sm:$0xff] %v369
  %379 = vst [vmem:[%s5 + $0x8] sm:$0xff] %v370
  %380 = vst [vmem:[%s5 + $0x10] sm:$0xff] %v371
  %381 = vst [vmem:[%s5 + $0x18] sm:$0xff] %v372
  %382 = vst [vmem:[%s5 + $0x20] sm:$0xff] %v373
  %383 = vst [vmem:[%s5 + $0x28] sm:$0xff] %v374
  %384 = vst [vmem:[%s5 + $0x30] sm:$0xff] %v375
  %385 = vst [vmem:[%s5 + $0x38] sm:$0xff] %v376
  %386 = vst [vmem:[%s5 + $0x40] sm:$0x3] %v377
  // Predicated region
  $region22: #{mae_encoder_forward.18} parent=0 // pred_check
    _
  $region23: #{mae_encoder_forward.18} parent=0 // pred_check_branch
    %388 = sbr.rel (0) target = $region25
  $region24: #{mae_encoder_forward.18} parent=0 // pred_region
    _
  $region25: #{mae_encoder_forward.18} parent=0 // pred_fallthru
    _
  // Predicated region
  $region26: #{mae_encoder_forward.18} parent=0 // pred_check
    _
  $region27: #{mae_encoder_forward.18} parent=0 // pred_check_branch
    %390 = sbr.rel (0) target = $region29
  $region28: #{mae_encoder_forward.18} parent=0 // pred_region
    _
  $region29: #{mae_encoder_forward.18} parent=0 // pred_fallthru
    _

// kernel: mae_encoder_forward.25
$region0: #{mae_encoder_forward.25}
  #allocation0 [shape = 'u32[]', space=smem, size = 0x4, offset = 0x4, fixed_abs, tag = 'smem constant byte address 0x4 - core index']
  #allocation1 [shape = 'u32[144,128]{1,0:T(1,128)}', space=vmem, size = 0x12000, scoped, tag = 'internal scratch']
  %s0 = inlined_call_operand.vmem [shape: f32[66,32], index: 0, kind: input, shape index: {}]
  %s1 = inlined_call_operand.vmem [shape: f32[1,32], index: 1, kind: input, shape index: {}]
  %s2 = inlined_call_operand.vmem [shape: f32[1,32], index: 2, kind: input, shape index: {}]
  %s3 = inlined_call_operand.vmem [shape: f32[66,32], index: 3, kind: output, shape index: {}]
  %s4 = sld [smem:[#allocation0]]
  $region22: #{mae_encoder_forward.25} parent=0
    _
  %s6 = ssub.s32 1, %s4
  %s7 = scalar_select 0, %s6, %s4
  // Predicated region
  $region2: #{mae_encoder_forward.25} parent=0 // pred_check
    _
  $region3: #{mae_encoder_forward.25} parent=0 // pred_check_branch
    %9 = sbr.rel (0) target = $region5
  $region4: #{mae_encoder_forward.25} parent=0 // pred_region
    _
  $region5: #{mae_encoder_forward.25} parent=0 // pred_fallthru
    _
  // Predicated region
  $region6: #{mae_encoder_forward.25} parent=0 // pred_check
    _
  $region7: #{mae_encoder_forward.25} parent=0 // pred_check_branch
    %11 = sbr.rel (0) target = $region9
  $region8: #{mae_encoder_forward.25} parent=0 // pred_region
    _
  $region9: #{mae_encoder_forward.25} parent=0 // pred_fallthru
    _
  // Predicated region
  $region10: #{mae_encoder_forward.25} parent=0 // pred_check
    _
  $region11: #{mae_encoder_forward.25} parent=0 // pred_check_branch
    %13 = sbr.rel (0) target = $region13
  $region12: #{mae_encoder_forward.25} parent=0 // pred_region
    _
  $region13: #{mae_encoder_forward.25} parent=0 // pred_fallthru
    _
  %v14 = vld [vmem:[%s0] sm:$0xff]
  %v15 = vld [vmem:[%s0 + $0x8] sm:$0xff]
  %v16 = vld [vmem:[%s0 + $0x10] sm:$0xff]
  %v17 = vld [vmem:[%s0 + $0x18] sm:$0xff]
  %v18 = vld [vmem:[%s0 + $0x20] sm:$0xff]
  %v19 = vld [vmem:[%s0 + $0x28] sm:$0xff]
  %v20 = vld [vmem:[%s0 + $0x30] sm:$0xff]
  %v21 = vld [vmem:[%s0 + $0x38] sm:$0xff]
  %v22 = vld [vmem:[%s0 + $0x40] sm:$0x3]
  %vm23 = vcmask 261120
  %v24 = vsel %vm23, %v14, 0.0
  %25 = vadd.xlane.f32.xlu0 %v24
  %v26 = vpop.xlane.xlu0 %25
  %v27 = vsel %vm23, %v15, 0.0
  %28 = vadd.xlane.f32.xlu0 %v27
  %v29 = vpop.xlane.xlu0 %28
  %v30 = vsel %vm23, %v16, 0.0
  %31 = vadd.xlane.f32.xlu0 %v30
  %v32 = vpop.xlane.xlu0 %31
  %v33 = vsel %vm23, %v17, 0.0
  %34 = vadd.xlane.f32.xlu0 %v33
  %v35 = vpop.xlane.xlu0 %34
  %v36 = vsel %vm23, %v18, 0.0
  %37 = vadd.xlane.f32.xlu0 %v36
  %v38 = vpop.xlane.xlu0 %37
  %v39 = vsel %vm23, %v19, 0.0
  %40 = vadd.xlane.f32.xlu0 %v39
  %v41 = vpop.xlane.xlu0 %40
  %v42 = vsel %vm23, %v20, 0.0
  %43 = vadd.xlane.f32.xlu0 %v42
  %v44 = vpop.xlane.xlu0 %43
  %v45 = vsel %vm23, %v21, 0.0
  %46 = vadd.xlane.f32.xlu0 %v45
  %v47 = vpop.xlane.xlu0 %46
  %vm48 = vcmask 254976
  %v49 = vsel %vm48, %v22, 0.0
  %50 = vadd.xlane.f32.xlu0 %v49
  %v51 = vpop.xlane.xlu0 %50
  %v52 = vrcp.pop 32.0
  %v53 = vmul.f32 %v26, %v52
  %v54 = vmul.f32 %v29, %v52
  %v55 = vmul.f32 %v32, %v52
  %v56 = vmul.f32 %v35, %v52
  %v57 = vmul.f32 %v38, %v52
  %v58 = vmul.f32 %v41, %v52
  %v59 = vmul.f32 %v44, %v52
  %v60 = vmul.f32 %v47, %v52
  %v61 = vmul.f32 %v51, %v52
  %v62 = vsub.f32 %v14, %v53
  %v63 = vsub.f32 %v15, %v54
  %v64 = vsub.f32 %v16, %v55
  %v65 = vsub.f32 %v17, %v56
  %v66 = vsub.f32 %v18, %v57
  %v67 = vsub.f32 %v19, %v58
  %v68 = vsub.f32 %v20, %v59
  %v69 = vsub.f32 %v21, %v60
  %v70 = vsub.f32 %v22, %v61
  %v71 = vmul.f32 %v62, %v62
  %v72 = vmul.f32 %v63, %v63
  %v73 = vmul.f32 %v64, %v64
  %v74 = vmul.f32 %v65, %v65
  %v75 = vmul.f32 %v66, %v66
  %v76 = vmul.f32 %v67, %v67
  %v77 = vmul.f32 %v68, %v68
  %v78 = vmul.f32 %v69, %v69
  %v79 = vmul.f32 %v70, %v70
  %v80 = vsel %vm23, %v71, 0.0
  %81 = vadd.xlane.f32.xlu0 %v80
  %v82 = vpop.xlane.xlu0 %81
  %v83 = vsel %vm23, %v72, 0.0
  %84 = vadd.xlane.f32.xlu0 %v83
  %v85 = vpop.xlane.xlu0 %84
  %v86 = vsel %vm23, %v73, 0.0
  %87 = vadd.xlane.f32.xlu0 %v86
  %v88 = vpop.xlane.xlu0 %87
  %v89 = vsel %vm23, %v74, 0.0
  %90 = vadd.xlane.f32.xlu0 %v89
  %v91 = vpop.xlane.xlu0 %90
  %v92 = vsel %vm23, %v75, 0.0
  %93 = vadd.xlane.f32.xlu0 %v92
  %v94 = vpop.xlane.xlu0 %93
  %v95 = vsel %vm23, %v76, 0.0
  %96 = vadd.xlane.f32.xlu0 %v95
  %v97 = vpop.xlane.xlu0 %96
  %v98 = vsel %vm23, %v77, 0.0
  %99 = vadd.xlane.f32.xlu0 %v98
  %v100 = vpop.xlane.xlu0 %99
  %v101 = vsel %vm23, %v78, 0.0
  %102 = vadd.xlane.f32.xlu0 %v101
  %v103 = vpop.xlane.xlu0 %102
  %v104 = vsel %vm48, %v79, 0.0
  %105 = vadd.xlane.f32.xlu0 %v104
  %v106 = vpop.xlane.xlu0 %105
  %v107 = vmul.f32 %v82, %v52
  %v108 = vmul.f32 %v85, %v52
  %v109 = vmul.f32 %v88, %v52
  %v110 = vmul.f32 %v91, %v52
  %v111 = vmul.f32 %v94, %v52
  %v112 = vmul.f32 %v97, %v52
  %v113 = vmul.f32 %v100, %v52
  %v114 = vmul.f32 %v103, %v52
  %v115 = vmul.f32 %v106, %v52
  %v116 = vadd.f32 %v107, 1e-05
  %v117 = vadd.f32 %v108, 1e-05
  %v118 = vadd.f32 %v109, 1e-05
  %v119 = vadd.f32 %v110, 1e-05
  %v120 = vadd.f32 %v111, 1e-05
  %v121 = vadd.f32 %v112, 1e-05
  %v122 = vadd.f32 %v113, 1e-05
  %v123 = vadd.f32 %v114, 1e-05
  %v124 = vadd.f32 %v115, 1e-05
  %v125 = vrsqrt.pop %v116
  %v126 = vrsqrt.pop %v117
  %v127 = vrsqrt.pop %v118
  %v128 = vrsqrt.pop %v119
  %v129 = vrsqrt.pop %v120
  %v130 = vrsqrt.pop %v121
  %v131 = vrsqrt.pop %v122
  %v132 = vrsqrt.pop %v123
  %v133 = vrsqrt.pop %v124
  %v134 = vmul.f32 %v62, %v125
  %v135 = vmul.f32 %v63, %v126
  %v136 = vmul.f32 %v64, %v127
  %v137 = vmul.f32 %v65, %v128
  %v138 = vmul.f32 %v66, %v129
  %v139 = vmul.f32 %v67, %v130
  %v140 = vmul.f32 %v68, %v131
  %v141 = vmul.f32 %v69, %v132
  %v142 = vmul.f32 %v70, %v133
  %v143 = vld [vmem:[%s1] sm:$0x1]
  %v145 = vlaneseq
  %v146 = vshrl.u32 %v145, 7
  %v147 = vsub.s32 0, %v146
  %v148 = vrot.slane %v143, %v147
  %v150 = vmul.f32 %v134, %v148
  %v151 = vmul.f32 %v135, %v148
  %v152 = vmul.f32 %v136, %v148
  %v153 = vmul.f32 %v137, %v148
  %v154 = vmul.f32 %v138, %v148
  %v155 = vmul.f32 %v139, %v148
  %v156 = vmul.f32 %v140, %v148
  %v157 = vmul.f32 %v141, %v148
  %v158 = vmul.f32 %v142, %v148
  %v159 = vld [vmem:[%s2] sm:$0x1]
  %v161 = vlaneseq
  %v162 = vshrl.u32 %v161, 7
  %v163 = vsub.s32 0, %v162
  %v164 = vrot.slane %v159, %v163
  %v166 = vadd.f32 %v150, %v164
  %v167 = vadd.f32 %v151, %v164
  %v168 = vadd.f32 %v152, %v164
  %v169 = vadd.f32 %v153, %v164
  %v170 = vadd.f32 %v154, %v164
  %v171 = vadd.f32 %v155, %v164
  %v172 = vadd.f32 %v156, %v164
  %v173 = vadd.f32 %v157, %v164
  %v174 = vadd.f32 %v158, %v164
  %175 = vst.msk [vmem:[%s3] sm:$0xff] %vm23, %v166
  %176 = vst.msk [vmem:[%s3 + $0x8] sm:$0xff] %vm23, %v167
  %177 = vst.msk [vmem:[%s3 + $0x10] sm:$0xff] %vm23, %v168
  %178 = vst.msk [vmem:[%s3 + $0x18] sm:$0xff] %vm23, %v169
  %179 = vst.msk [vmem:[%s3 + $0x20] sm:$0xff] %vm23, %v170
  %180 = vst.msk [vmem:[%s3 + $0x28] sm:$0xff] %vm23, %v171
  %181 = vst.msk [vmem:[%s3 + $0x30] sm:$0xff] %vm23, %v172
  %182 = vst.msk [vmem:[%s3 + $0x38] sm:$0xff] %vm23, %v173
  %183 = vst.msk [vmem:[%s3 + $0x40] sm:$0x3] %vm48, %v174
  // Predicated region
  $region14: #{mae_encoder_forward.25} parent=0 // pred_check
    _
  $region15: #{mae_encoder_forward.25} parent=0 // pred_check_branch
    %185 = sbr.rel (0) target = $region17
  $region16: #{mae_encoder_forward.25} parent=0 // pred_region
    _
  $region17: #{mae_encoder_forward.25} parent=0 // pred_fallthru
    _
  // Predicated region
  $region18: #{mae_encoder_forward.25} parent=0 // pred_check
    _
  $region19: #{mae_encoder_forward.25} parent=0 // pred_check_branch
    %187 = sbr.rel (0) target = $region21
  $region20: #{mae_encoder_forward.25} parent=0 // pred_region
    _
  $region21: #{mae_encoder_forward.25} parent=0 // pred_fallthru
    _

// kernel: mae_encoder_forward.19
$region0: #{mae_encoder_forward.19}
  #allocation0 [shape = 'u32[]', space=smem, size = 0x4, offset = 0x4, fixed_abs, tag = 'smem constant byte address 0x4 - core index']
  #allocation1 [shape = 'u32[144,128]{1,0:T(1,128)}', space=vmem, size = 0x12000, scoped, tag = 'internal scratch']
  %s0 = inlined_call_operand.vmem [shape: f32[66,128], index: 0, kind: input, shape index: {}]
  %s1 = inlined_call_operand.vmem [shape: bf16[128,32], index: 1, kind: input, shape index: {}]
  %s2 = inlined_call_operand.vmem [shape: f32[1,32], index: 2, kind: input, shape index: {}]
  %s3 = inlined_call_operand.vmem [shape: f32[66,32], index: 3, kind: input, shape index: {}]
  %s4 = inlined_call_operand.vmem [shape: f32[66,32], index: 4, kind: output, shape index: {}]
  %s5 = sld [smem:[#allocation0]]
  $region26: #{mae_encoder_forward.19} parent=0
    _
  %s7 = ssub.s32 1, %s5
  %s8 = scalar_select 0, %s7, %s5
  // Predicated region
  $region2: #{mae_encoder_forward.19} parent=0 // pred_check
    _
  $region3: #{mae_encoder_forward.19} parent=0 // pred_check_branch
    %10 = sbr.rel (0) target = $region5
  $region4: #{mae_encoder_forward.19} parent=0 // pred_region
    _
  $region5: #{mae_encoder_forward.19} parent=0 // pred_fallthru
    _
  // Predicated region
  $region6: #{mae_encoder_forward.19} parent=0 // pred_check
    _
  $region7: #{mae_encoder_forward.19} parent=0 // pred_check_branch
    %12 = sbr.rel (0) target = $region9
  $region8: #{mae_encoder_forward.19} parent=0 // pred_region
    _
  $region9: #{mae_encoder_forward.19} parent=0 // pred_fallthru
    _
  // Predicated region
  $region10: #{mae_encoder_forward.19} parent=0 // pred_check
    _
  $region11: #{mae_encoder_forward.19} parent=0 // pred_check_branch
    %14 = sbr.rel (0) target = $region13
  $region12: #{mae_encoder_forward.19} parent=0 // pred_region
    _
  $region13: #{mae_encoder_forward.19} parent=0 // pred_fallthru
    _
  // Predicated region
  $region14: #{mae_encoder_forward.19} parent=0 // pred_check
    _
  $region15: #{mae_encoder_forward.19} parent=0 // pred_check_branch
    %16 = sbr.rel (0) target = $region17
  $region16: #{mae_encoder_forward.19} parent=0 // pred_region
    _
  $region17: #{mae_encoder_forward.19} parent=0 // pred_fallthru
    _
  %v18 = vld [vmem:[%s0] sm:$0xff]
  %v19 = vld [vmem:[%s0 + $0x8] sm:$0xff]
  %v20 = vld [vmem:[%s0 + $0x10] sm:$0xff]
  %v21 = vld [vmem:[%s0 + $0x18] sm:$0xff]
  %v22 = vld [vmem:[%s0 + $0x20] sm:$0xff]
  %v23 = vld [vmem:[%s0 + $0x28] sm:$0xff]
  %v24 = vld [vmem:[%s0 + $0x30] sm:$0xff]
  %v25 = vld [vmem:[%s0 + $0x38] sm:$0xff]
  %v26 = vld [vmem:[%s0 + $0x40] sm:$0x3]
  %v27 = vpack.c.bf16 %v19, %v18
  %v28 = vpack.c.bf16 %v21, %v20
  %v29 = vpack.c.bf16 %v23, %v22
  %v30 = vpack.c.bf16 %v25, %v24
  %v31 = vpack.c.bf16 %v26, %v26
  %v32 = vld [vmem:[%s1] sm:$0xf]
  %v33 = vld [vmem:[%s1 + $0x4] sm:$0xf]
  %v34 = vld [vmem:[%s1 + $0x8] sm:$0xf]
  %v35 = vld [vmem:[%s1 + $0xc] sm:$0xf]
  %v36 = vld [vmem:[%s1 + $0x10] sm:$0xf]
  %v37 = vld [vmem:[%s1 + $0x14] sm:$0xf]
  %v38 = vld [vmem:[%s1 + $0x18] sm:$0xf]
  %v39 = vld [vmem:[%s1 + $0x1c] sm:$0xf]
  %v40 = vld [vmem:[%s1 + $0x20] sm:$0xf]
  %v41 = vld [vmem:[%s1 + $0x24] sm:$0xf]
  %v42 = vld [vmem:[%s1 + $0x28] sm:$0xf]
  %v43 = vld [vmem:[%s1 + $0x2c] sm:$0xf]
  %v44 = vld [vmem:[%s1 + $0x30] sm:$0xf]
  %v45 = vld [vmem:[%s1 + $0x34] sm:$0xf]
  %v46 = vld [vmem:[%s1 + $0x38] sm:$0xf]
  %v47 = vld [vmem:[%s1 + $0x3c] sm:$0xf]
  %v48 = vld [vmem:[%s2] sm:$0x1]
  %v50 = vlaneseq
  %v51 = vshrl.u32 %v50, 7
  %v52 = vsub.s32 0, %v51
  %v53 = vrot.slane %v48, %v52
  %v71 = vunpack.c.l.b16 %v32
  %v72 = vunpack.c.l.b16 %v33
  %v73 = vunpack.c.l.b16 %v34
  %v74 = vunpack.c.l.b16 %v35
  %v75 = vunpack.c.l.b16 %v36
  %v76 = vunpack.c.l.b16 %v37
  %v77 = vunpack.c.l.b16 %v38
  %v78 = vunpack.c.l.b16 %v39
  %v79 = vunpack.c.l.b16 %v40
  %v80 = vunpack.c.l.b16 %v41
  %v81 = vunpack.c.l.b16 %v42
  %v82 = vunpack.c.l.b16 %v43
  %v83 = vunpack.c.l.b16 %v44
  %v84 = vunpack.c.l.b16 %v45
  %v85 = vunpack.c.l.b16 %v46
  %v86 = vunpack.c.l.b16 %v47
  %v87 = vpack.c.b16 %v72, %v71
  %v88 = vpack.c.b16 %v74, %v73
  %v89 = vpack.c.b16 %v76, %v75
  %v90 = vpack.c.b16 %v78, %v77
  %v91 = vpack.c.b16 %v80, %v79
  %v92 = vpack.c.b16 %v82, %v81
  %v93 = vpack.c.b16 %v84, %v83
  %v94 = vpack.c.b16 %v86, %v85
  %103 = vmatprep.subr.bf16.mxu0 0
  %104 = vmatpush1.bf16.msra.mxu0 %v87
  %105 = vmatprep.subr.bf16.mxu0 0
  %106 = vmatpush1.bf16.msra.mxu0 %v88
  %107 = vmatprep.subr.bf16.mxu0 0
  %108 = vmatpush1.bf16.msra.mxu0 %v89
  %109 = vmatprep.subr.bf16.mxu0 0
  %110 = vmatpush1.bf16.msra.mxu0 %v90
  %111 = vmatprep.subr.bf16.mxu0 0
  %112 = vmatpush1.bf16.msra.mxu0 %v91
  %113 = vmatprep.subr.bf16.mxu0 0
  %114 = vmatpush1.bf16.msra.mxu0 %v92
  %115 = vmatprep.subr.bf16.mxu0 0
  %116 = vmatpush1.bf16.msra.mxu0 %v93
  %117 = vmatprep.subr.bf16.mxu0 0
  %118 = vmatpush1.bf16.msra.mxu0 %v94
  %119 = vmatprep.subr.bf16.mxu0 0
  %120 = vmatpush1.bf16.msra.mxu0 0
  %121 = vmatprep.subr.bf16.mxu0 0
  %122 = vmatpush1.bf16.msra.mxu0 0
  %123 = vmatprep.subr.bf16.mxu0 0
  %124 = vmatpush1.bf16.msra.mxu0 0
  %125 = vmatprep.subr.bf16.mxu0 0
  %126 = vmatpush1.bf16.msra.mxu0 0
  %127 = vmatprep.subr.bf16.mxu0 0
  %128 = vmatpush1.bf16.msra.mxu0 0
  %129 = vmatprep.subr.bf16.mxu0 0
  %130 = vmatpush1.bf16.msra.mxu0 0
  %131 = vmatprep.subr.bf16.mxu0 0
  %132 = vmatpush1.bf16.msra.mxu0 0
  %133 = vmatprep.subr.bf16.mxu0 0
  %134 = vmatpush1.bf16.msra.mxu0 0
  %135 = vmatprep.mubr.bf16.mxu0 0
  %136 = vmatmul.mubr.bf16.gmra.mrb[0].mxu0 %v27
  %v137 = vpop.f32.mrb[0].mxu0
  %v138 = vadd.f32 %v53, %v137
  %v139 = vpop.f32.mrb[0].mxu0
  %v140 = vpop.f32.mrb[0].mxu0
  %v141 = vadd.f32 %v53, %v140
  %v142 = vpop.f32.mrb[0].mxu0
  %143 = vmatprep.mubr.bf16.mxu0 0
  %144 = vmatmul.mubr.bf16.gmra.mrb[0].mxu0 %v28
  %v145 = vpop.f32.mrb[0].mxu0
  %v146 = vadd.f32 %v53, %v145
  %v147 = vpop.f32.mrb[0].mxu0
  %v148 = vpop.f32.mrb[0].mxu0
  %v149 = vadd.f32 %v53, %v148
  %v150 = vpop.f32.mrb[0].mxu0
  %151 = vmatprep.mubr.bf16.mxu0 0
  %152 = vmatmul.mubr.bf16.gmra.mrb[0].mxu0 %v29
  %v153 = vpop.f32.mrb[0].mxu0
  %v154 = vadd.f32 %v53, %v153
  %v155 = vpop.f32.mrb[0].mxu0
  %v156 = vpop.f32.mrb[0].mxu0
  %v157 = vadd.f32 %v53, %v156
  %v158 = vpop.f32.mrb[0].mxu0
  %159 = vmatprep.mubr.bf16.mxu0 0
  %160 = vmatmul.mubr.bf16.gmra.mrb[0].mxu0 %v30
  %v161 = vpop.f32.mrb[0].mxu0
  %v162 = vadd.f32 %v53, %v161
  %v163 = vpop.f32.mrb[0].mxu0
  %v164 = vpop.f32.mrb[0].mxu0
  %v165 = vadd.f32 %v53, %v164
  %v166 = vpop.f32.mrb[0].mxu0
  %167 = vmatprep.mubr.bf16.mxu0 0
  %168 = vmatmul.mubr.bf16.gmra.mrb[0].mxu0 %v31
  %v169 = vpop.f32.mrb[0].mxu0
  %v170 = vadd.f32 %v53, %v169
  %v171 = vpop.f32.mrb[0].mxu0
  %v172 = vpop.f32.mrb[0].mxu0
  %v173 = vpop.f32.mrb[0].mxu0
  %174 = vdwg.mxu0
  %v175 = vld [vmem:[%s3] sm:$0xff]
  %v176 = vld [vmem:[%s3 + $0x8] sm:$0xff]
  %v177 = vld [vmem:[%s3 + $0x10] sm:$0xff]
  %v178 = vld [vmem:[%s3 + $0x18] sm:$0xff]
  %v179 = vld [vmem:[%s3 + $0x20] sm:$0xff]
  %v180 = vld [vmem:[%s3 + $0x28] sm:$0xff]
  %v181 = vld [vmem:[%s3 + $0x30] sm:$0xff]
  %v182 = vld [vmem:[%s3 + $0x38] sm:$0xff]
  %v183 = vld [vmem:[%s3 + $0x40] sm:$0x3]
  %v184 = vadd.f32 %v138, %v175
  %v185 = vadd.f32 %v141, %v176
  %v186 = vadd.f32 %v146, %v177
  %v187 = vadd.f32 %v149, %v178
  %v188 = vadd.f32 %v154, %v179
  %v189 = vadd.f32 %v157, %v180
  %v190 = vadd.f32 %v162, %v181
  %v191 = vadd.f32 %v165, %v182
  %v192 = vadd.f32 %v170, %v183
  %vm193 = vcmask 261120
  %194 = vst.msk [vmem:[%s4] sm:$0xff] %vm193, %v184
  %195 = vst.msk [vmem:[%s4 + $0x8] sm:$0xff] %vm193, %v185
  %196 = vst.msk [vmem:[%s4 + $0x10] sm:$0xff] %vm193, %v186
  %197 = vst.msk [vmem:[%s4 + $0x18] sm:$0xff] %vm193, %v187
  %198 = vst.msk [vmem:[%s4 + $0x20] sm:$0xff] %vm193, %v188
  %199 = vst.msk [vmem:[%s4 + $0x28] sm:$0xff] %vm193, %v189
  %200 = vst.msk [vmem:[%s4 + $0x30] sm:$0xff] %vm193, %v190
  %201 = vst.msk [vmem:[%s4 + $0x38] sm:$0xff] %vm193, %v191
  %vm202 = vcmask 254976
  %203 = vst.msk [vmem:[%s4 + $0x40] sm:$0x3] %vm202, %v192
  // Predicated region
  $region18: #{mae_encoder_forward.19} parent=0 // pred_check
    _
  $region19: #{mae_encoder_forward.19} parent=0 // pred_check_branch
    %205 = sbr.rel (0) target = $region21
  $region20: #{mae_encoder_forward.19} parent=0 // pred_region
    _
  $region21: #{mae_encoder_forward.19} parent=0 // pred_fallthru
    _
  // Predicated region
  $region22: #{mae_encoder_forward.19} parent=0 // pred_check
    _
  $region23: #{mae_encoder_forward.19} parent=0 // pred_check_branch
    %207 = sbr.rel (0) target = $region25
  $region24: #{mae_encoder_forward.19} parent=0 // pred_region
    _
  $region25: #{mae_encoder_forward.19} parent=0 // pred_fallthru
    _

</llo_original>
